<compile_context>
chip_gen: v5e
topology: v5e:2x2
jax: 0.10.0
libtpu: 0.0.40
codegen_flags: <defaults>
</compile_context>

<pallas_src>
import math

import jax
import jax.numpy as jnp
from jax.experimental import pallas as pl
from jax.experimental.pallas import tpu as pltpu


# ----------------------------- packed-vector row layout ----------------------
_ROW_BIN = 0     # concat_linear bias                                  (C lanes)
_ROW_BLK1 = 1    # 8 rows: ln1_g, ln1_b, ln2_g, ln2_b, b_reproj, b_fc2, b_qkv, b_fc1
_ROW_BLK2 = 9    # 8 rows, same layout as block1
_ROW_PE_G = 17   # PatchExpand LayerNorm gamma                         (C//2 lanes)
_ROW_PE_B = 18   # PatchExpand LayerNorm beta                          (C//2 lanes)
_N_ROWS = 19


# ----------------------------- kernel helpers --------------------------------

def _layernorm(x, gamma, beta, eps=1e-5):
    # torch.nn.LayerNorm over the last dim (biased variance, eps=1e-5).
    mu = jnp.mean(x, axis=-1, keepdims=True)
    var = jnp.mean((x - mu) ** 2, axis=-1, keepdims=True)
    return (x - mu) * jax.lax.rsqrt(var + eps) * gamma + beta


def _patch_expand_store(xe, gamma, beta, o_ref, c_out, n_groups):
    # PatchExpand grouped LayerNorm.  The einops rearrange is
    # 'b h w (p1 p2 c) -> b (h p1) (w p2) c' (p1=p2=2), so each contiguous
    # c_out-channel group of the expanded output gets its own LayerNorm(c_out).
    # Each group is written straight to o_ref (no concat copy).
    for gi in range(n_groups):
        seg = xe[:, gi * c_out:(gi + 1) * c_out]
        o_ref[0, :, gi * c_out:(gi + 1) * c_out] = (
            _layernorm(seg, gamma, beta).astype(o_ref.dtype))


def make_decoder_kernel(dims, C, kc, vc, hidden, c_out, n_groups):
    """One fused kernel: concat_linear -> block1 -> block2 -> PatchExpand."""
    qkvw = 2 * kc + vc

    def kernel(x1_ref, x2_ref, win_ref,
               wqkv1_ref, wr1_ref, w11_ref, w21_ref,
               wqkv2_ref, wr2_ref, w12_ref, w22_ref,
               we_ref, vec_ref, o_ref):
        vec = vec_ref[...]

        def row(i, w):
            return vec[i:i + 1, 0:w]

        # --- concat_linear without the XLA-side concat --------------------
        x1 = x1_ref[0].astype(jnp.bfloat16)
        x2 = x2_ref[0].astype(jnp.bfloat16)
        x = (jnp.dot(x1, win_ref[0], preferred_element_type=jnp.float32)
             + jnp.dot(x2, win_ref[1], preferred_element_type=jnp.float32)
             + row(_ROW_BIN, C))                                      # (L, C) f32

        # --- EfficientTransformerBlock ------------------------------------
        def block(xin, wqkv_ref, wr_ref, w1_ref, w2_ref, base):
            ln1_g, ln1_b = row(base + 0, C), row(base + 1, C)
            ln2_g, ln2_b = row(base + 2, C), row(base + 3, C)
            b_r, b_fc2 = row(base + 4, C), row(base + 5, C)
            b_qkv = row(base + 6, qkvw)
            b_fc1 = row(base + 7, hidden)

            # attention half (EfficientAttention, head_count=1)
            n1 = _layernorm(xin, ln1_g, ln1_b)
            qkv = jnp.dot(n1.astype(jnp.bfloat16), wqkv_ref[...],
                          preferred_element_type=jnp.float32) + b_qkv
            k = qkv[:, 0:kc]                       # (L, kc)
            q = qkv[:, kc:2 * kc]                  # (L, kc)
            v = qkv[:, 2 * kc:2 * kc + vc]         # (L, vc)

            # key: softmax over tokens (torch dim=2 on (B,KC,L));
            # query: softmax over channels (torch dim=1 on (B,KC,L)).
            k = jnp.exp(k - jnp.max(k, axis=0, keepdims=True))
            k = k * pl.reciprocal(jnp.sum(k, axis=0, keepdims=True), approx=True)
            q = jnp.exp(q - jnp.max(q, axis=1, keepdims=True))
            q = q * pl.reciprocal(jnp.sum(q, axis=1, keepdims=True), approx=True)

            context = jax.lax.dot_general(
                k.astype(jnp.bfloat16), v.astype(jnp.bfloat16),
                (((0,), (0,)), ((), ())),
                preferred_element_type=jnp.float32)                   # (kc, vc)
            attended = jnp.dot(q.astype(jnp.bfloat16),
                               context.astype(jnp.bfloat16),
                               preferred_element_type=jnp.float32)    # (L, vc)
            attn = jnp.dot(attended.astype(jnp.bfloat16), wr_ref[...],
                           preferred_element_type=jnp.float32) + b_r
            tx = xin + attn                                           # residual 1

            # MLP half (MLP_FFN: fc1 -> GELU -> fc2)
            n2 = _layernorm(tx, ln2_g, ln2_b)
            h = jnp.dot(n2.astype(jnp.bfloat16), w1_ref[...],
                        preferred_element_type=jnp.float32) + b_fc1
            # TODO(synk): torch nn.GELU default is exact erf; tanh approximation
            # used for robust Mosaic lowering (O(1e-3) relative difference).
            h = jax.nn.gelu(h, approximate=True)
            y = jnp.dot(h.astype(jnp.bfloat16), w2_ref[...],
                        preferred_element_type=jnp.float32) + b_fc2
            return tx + y                                             # residual 2

        x = block(x, wqkv1_ref, wr1_ref, w11_ref, w21_ref, _ROW_BLK1)
        x = block(x, wqkv2_ref, wr2_ref, w12_ref, w22_ref, _ROW_BLK2)

        # --- PatchExpand: Linear(C -> 2C, no bias) + grouped LayerNorm(C//2)
        xe = jnp.dot(x.astype(jnp.bfloat16), we_ref[...],
                     preferred_element_type=jnp.float32)              # (L, 2C)
        _patch_expand_store(xe, row(_ROW_PE_G, c_out), row(_ROW_PE_B, c_out),
                            o_ref, c_out, n_groups)

    return kernel


def make_patch_expand_kernel(c_out, n_groups):
    # Standalone PatchExpand kernel for the x2=None forward path.
    def kernel(x_ref, we_ref, gb_ref, o_ref):
        xe = jnp.dot(x_ref[0].astype(jnp.bfloat16), we_ref[...],
                     preferred_element_type=jnp.float32)
        _patch_expand_store(xe, gb_ref[0:1, :], gb_ref[1:2, :],
                            o_ref, c_out, n_groups)
    return kernel


# ----------------------------- pallas_call wrappers ---------------------------

def _const_map(ndim):
    return lambda b: (0,) * ndim


def _pixel_shuffle(y, B, H, W, c_out):
    # 'b h w (p1 p2 c) -> b (h p1) (w p2) c', p1 = p2 = 2   (pure layout glue)
    y = y.reshape(B, H, W, 2, 2, c_out)
    y = jnp.transpose(y, (0, 1, 3, 2, 4, 5))
    return y.reshape(B, 4 * H * W, c_out)


def run_decoder_layer(params, x1, x2f, H, W):
    B, L, dims = x1.shape
    C = params['we'].shape[0]
    vc = params['wr1'].shape[0]
    kc = (params['wqkv1'].shape[1] - vc) // 2
    hidden = params['w11'].shape[1]
    c_out = C // 2

    weights = [params['win'],
               params['wqkv1'], params['wr1'], params['w11'], params['w21'],
               params['wqkv2'], params['wr2'], params['w12'], params['w22'],
               params['we'], params['vec']]

    kernel = make_decoder_kernel(dims, C, kc, vc, hidden, c_out, 4)

    # TODO(synk): at realistic H, W the token-axis key-softmax forces full-L
    # blocks; re-tile with an online/two-pass scheme, make the output store
    # lane-dense, and set pltpu.CompilerParams(vmem_limit_bytes=...) against
    # v7x's 64 MiB VMEM.  At L=64 everything trivially fits.
    y = pl.pallas_call(
        kernel,
        out_shape=jax.ShapeDtypeStruct((B, L, 2 * C), x1.dtype),
        grid=(B,),
        in_specs=[pl.BlockSpec((1, L, dims), lambda b: (b, 0, 0)),
                  pl.BlockSpec((1, L, dims), lambda b: (b, 0, 0))]
                 + [pl.BlockSpec(wt.shape, _const_map(wt.ndim)) for wt in weights],
        out_specs=pl.BlockSpec((1, L, 2 * C), lambda b: (b, 0, 0)),
        compiler_params=pltpu.CompilerParams(dimension_semantics=("parallel",)),
    )(x1, x2f, *weights)
    return _pixel_shuffle(y, B, H, W, c_out)


def run_patch_expand(params, x, H, W):
    B, L, C = x.shape
    c_out = C // 2
    we = params['we']
    gb = params['vec'][_ROW_PE_G:_ROW_PE_B + 1, :c_out]      # (2, c_out) f32
    kernel = make_patch_expand_kernel(c_out, 4)
    y = pl.pallas_call(
        kernel,
        out_shape=jax.ShapeDtypeStruct((B, L, 2 * C), x.dtype),
        grid=(B,),
        in_specs=[pl.BlockSpec((1, L, C), lambda b: (b, 0, 0)),
                  pl.BlockSpec(we.shape, _const_map(2)),
                  pl.BlockSpec(gb.shape, _const_map(2))],
        out_specs=pl.BlockSpec((1, L, 2 * C), lambda b: (b, 0, 0)),
        compiler_params=pltpu.CompilerParams(dimension_semantics=("parallel",)),
    )(x, we, gb)
    return _pixel_shuffle(y, B, H, W, c_out)


# ----------------------------- parameters -------------------------------------

def _xavier(key, fan_in, fan_out):
    # Stored pre-transposed as (in, out) so every in-kernel matmul is x @ W.
    bound = math.sqrt(6.0 / (fan_in + fan_out))
    return jax.random.uniform(key, (fan_in, fan_out), jnp.float32, -bound, bound)


def _xavier_bf16(key, fan_in, fan_out):
    return _xavier(key, fan_in, fan_out).astype(jnp.bfloat16)


def _pack_rows(rows, width):
    padded = []
    for r in rows:
        r = jnp.asarray(r, jnp.float32).reshape(-1)
        padded.append(jnp.pad(r, (0, width - r.shape[0])))
    return jnp.stack(padded)


def init_decoder_layer(key, dims, C, kc, vc):
    ks = jax.random.split(key, 4)
    hidden = int(C * 4)
    c_out = C // 2
    width = max(C, 2 * kc + vc, hidden)

    def block_weights(bkey):
        k0, k1, k2, k3, k4, k5 = jax.random.split(bkey, 6)
        # wk / wq / wv fused into a single (C, 2*kc + vc) bf16 weight.
        wqkv = jnp.concatenate([_xavier(k0, C, kc), _xavier(k1, C, kc),
                                _xavier(k2, C, vc)], axis=1).astype(jnp.bfloat16)
        return dict(wqkv=wqkv,
                    wr=_xavier_bf16(k3, vc, C),
                    w1=_xavier_bf16(k4, C, hidden),
                    w2=_xavier_bf16(k5, hidden, C))

    b1 = block_weights(ks[0])
    b2 = block_weights(ks[1])

    # concat_linear weight (2*dims, C), split as (2, dims, C) for the in-kernel
    # x1 @ Win[0] + x2 @ Win[1] (no XLA-side concat).
    win = _xavier(ks[2], 2 * dims, C).astype(jnp.bfloat16).reshape(2, dims, C)
    we = _xavier_bf16(ks[3], C, 2 * C)          # PatchExpand expand, bias=False

    ones_c = jnp.ones((C,), jnp.float32)
    zeros_c = jnp.zeros((C,), jnp.float32)

    def block_rows():
        return [ones_c, zeros_c,                           # ln1 gamma / beta
                ones_c, zeros_c,                           # ln2 gamma / beta
                zeros_c,                                   # reprojection bias
                zeros_c,                                   # fc2 bias
                jnp.zeros((2 * kc + vc,), jnp.float32),    # fused qkv bias
                jnp.zeros((hidden,), jnp.float32)]         # fc1 bias

    vec = _pack_rows([zeros_c]                             # concat_linear bias
                     + block_rows() + block_rows()
                     + [jnp.ones((c_out,), jnp.float32),   # PatchExpand LN gamma
                        jnp.zeros((c_out,), jnp.float32)], # PatchExpand LN beta
                     width)
    assert vec.shape[0] == _N_ROWS

    return dict(win=win,
                wqkv1=b1['wqkv'], wr1=b1['wr'], w11=b1['w1'], w21=b1['w2'],
                wqkv2=b2['wqkv'], wr2=b2['wr'], w12=b2['w1'], w22=b2['w2'],
                we=we, vec=vec)


# ----------------------------- forward -----------------------------------------

def my_decoder_layer_forward(params, x1, x2=None, H=None, W=None):
    # MyDecoderLayer.forward, is_last=False branch.
    # TODO(synk): is_last=True branch (FinalPatchExpand_X4 + final 1x1 class conv)
    # is not exercised in this synthetic setup.
    # TODO(synk): MixFFN / MixFFN_skip (depthwise-conv FFN) sources were not
    # provided; the MLP_FFN ('mlp' token_mlp_mode) path is implemented.
    if x2 is not None:
        B, h, w, c = x2.shape
        x2f = x2.reshape(B, h * w, c)
        return run_decoder_layer(params, x1, x2f, h, w)
    return run_patch_expand(params, x1, H, W)


# ----------------------------- main ---------------------------------------------

if __name__ == "__main__":
    key = jax.random.PRNGKey(0)
    k_param, k_x1, k_x2 = jax.random.split(key, 3)

    B, Hc, Wc = 2, 8, 8
    dims, out_dim, key_dim, value_dim = 16, 32, 32, 32   # in_out_chan = (16, 32, 32, 32)
    L = Hc * Wc

    params = init_decoder_layer(k_param, dims, out_dim, key_dim, value_dim)
    x1 = jax.random.normal(k_x1, (B, L, dims), jnp.float32)        # (B, H*W, dims)
    x2 = jax.random.normal(k_x2, (B, Hc, Wc, dims), jnp.float32)   # skip connection

    forward = jax.jit(my_decoder_layer_forward)
    out = forward(params, x1, x2)
    out = jax.block_until_ready(out)
    assert out.shape == (B, 4 * L, out_dim // 2), out.shape
    print("KERNEL_OK")
</pallas_src>

<mosaic_0001>
module attributes {stable_mosaic.version = 11 : i64} {
  func.func @kernel(%arg0: i32, %arg1: memref<1x64x16xf32, #tpu.memory_space<vmem>>, %arg2: memref<1x64x16xf32, #tpu.memory_space<vmem>>, %arg3: memref<2x16x32xbf16, #tpu.memory_space<vmem>>, %arg4: memref<32x96xbf16, #tpu.memory_space<vmem>>, %arg5: memref<32x32xbf16, #tpu.memory_space<vmem>>, %arg6: memref<32x128xbf16, #tpu.memory_space<vmem>>, %arg7: memref<128x32xbf16, #tpu.memory_space<vmem>>, %arg8: memref<32x96xbf16, #tpu.memory_space<vmem>>, %arg9: memref<32x32xbf16, #tpu.memory_space<vmem>>, %arg10: memref<32x128xbf16, #tpu.memory_space<vmem>>, %arg11: memref<128x32xbf16, #tpu.memory_space<vmem>>, %arg12: memref<32x64xbf16, #tpu.memory_space<vmem>>, %arg13: memref<19x128xf32, #tpu.memory_space<vmem>>, %arg14: memref<1x64x64xf32, #tpu.memory_space<vmem>>) attributes {dimension_semantics = [#tpu.dimension_semantics<parallel>], iteration_bounds = array<i64: 2>, scalar_prefetch = 0 : i64, scratch_operands = 0 : i64, tpu.core_type = #tpu.core_type<tc>, window_params = [{transform_indices = @transform_0, window_bounds = array<i64: 1, 64, 16>}, {transform_indices = @transform_1, window_bounds = array<i64: 1, 64, 16>}, {pipeline_mode = #tpu.pipeline_mode<synchronous>, transform_indices = @transform_2, window_bounds = array<i64: 2, 16, 32>}, {pipeline_mode = #tpu.pipeline_mode<synchronous>, transform_indices = @transform_3, window_bounds = array<i64: 32, 96>}, {pipeline_mode = #tpu.pipeline_mode<synchronous>, transform_indices = @transform_4, window_bounds = array<i64: 32, 32>}, {pipeline_mode = #tpu.pipeline_mode<synchronous>, transform_indices = @transform_5, window_bounds = array<i64: 32, 128>}, {pipeline_mode = #tpu.pipeline_mode<synchronous>, transform_indices = @transform_6, window_bounds = array<i64: 128, 32>}, {pipeline_mode = #tpu.pipeline_mode<synchronous>, transform_indices = @transform_7, window_bounds = array<i64: 32, 96>}, {pipeline_mode = #tpu.pipeline_mode<synchronous>, transform_indices = @transform_8, window_bounds = array<i64: 32, 32>}, {pipeline_mode = #tpu.pipeline_mode<synchronous>, transform_indices = @transform_9, window_bounds = array<i64: 32, 128>}, {pipeline_mode = #tpu.pipeline_mode<synchronous>, transform_indices = @transform_10, window_bounds = array<i64: 128, 32>}, {pipeline_mode = #tpu.pipeline_mode<synchronous>, transform_indices = @transform_11, window_bounds = array<i64: 32, 64>}, {pipeline_mode = #tpu.pipeline_mode<synchronous>, transform_indices = @transform_12, window_bounds = array<i64: 19, 128>}, {transform_indices = @transform_13, window_bounds = array<i64: 1, 64, 64>}]} {
    %c0 = arith.constant 0 : index
    %c0_0 = arith.constant 0 : index
    %0 = vector.load %arg13[%c0, %c0_0] : memref<19x128xf32, #tpu.memory_space<vmem>>, vector<19x128xf32>
    %c0_1 = arith.constant 0 : index
    %c0_2 = arith.constant 0 : index
    %c0_3 = arith.constant 0 : index
    %1 = vector.load %arg1[%c0_1, %c0_2, %c0_3] : memref<1x64x16xf32, #tpu.memory_space<vmem>>, vector<1x64x16xf32>
    %2 = vector.shape_cast %1 : vector<1x64x16xf32> to vector<64x16xf32>
    %3 = arith.truncf %2 : vector<64x16xf32> to vector<64x16xbf16>
    %c0_4 = arith.constant 0 : index
    %c0_5 = arith.constant 0 : index
    %c0_6 = arith.constant 0 : index
    %4 = vector.load %arg2[%c0_4, %c0_5, %c0_6] : memref<1x64x16xf32, #tpu.memory_space<vmem>>, vector<1x64x16xf32>
    %5 = vector.shape_cast %4 : vector<1x64x16xf32> to vector<64x16xf32>
    %6 = arith.truncf %5 : vector<64x16xf32> to vector<64x16xbf16>
    %c0_7 = arith.constant 0 : index
    %c0_8 = arith.constant 0 : index
    %c0_9 = arith.constant 0 : index
    %7 = vector.load %arg3[%c0_7, %c0_8, %c0_9] : memref<2x16x32xbf16, #tpu.memory_space<vmem>>, vector<1x16x32xbf16>
    %8 = vector.shape_cast %7 : vector<1x16x32xbf16> to vector<16x32xbf16>
    %cst = arith.constant dense<0.000000e+00> : vector<64x32xf32>
    %9 = tpu.matmul %3, %8, %cst {dimension_numbers = #tpu.dot_dimension_numbers<[1], [0], [0], [1], [0, 0, 1, 1], [], []>} : vector<64x16xbf16>, vector<16x32xbf16>, vector<64x32xf32> -> vector<64x32xf32>
    %c1 = arith.constant 1 : index
    %c0_10 = arith.constant 0 : index
    %c0_11 = arith.constant 0 : index
    %10 = vector.load %arg3[%c1, %c0_10, %c0_11] : memref<2x16x32xbf16, #tpu.memory_space<vmem>>, vector<1x16x32xbf16>
    %11 = vector.shape_cast %10 : vector<1x16x32xbf16> to vector<16x32xbf16>
    %cst_12 = arith.constant dense<0.000000e+00> : vector<64x32xf32>
    %12 = tpu.matmul %6, %11, %cst_12 {dimension_numbers = #tpu.dot_dimension_numbers<[1], [0], [0], [1], [0, 0, 1, 1], [], []>} : vector<64x16xbf16>, vector<16x32xbf16>, vector<64x32xf32> -> vector<64x32xf32>
    %13 = arith.addf %9, %12 : vector<64x32xf32>
    %14 = vector.extract_strided_slice %0 {offsets = [0, 0], sizes = [1, 32], strides = [1, 1]} : vector<19x128xf32> to vector<1x32xf32>
    %15 = vector.broadcast %14 : vector<1x32xf32> to vector<64x32xf32>
    %16 = arith.addf %13, %15 : vector<64x32xf32>
    %17 = vector.extract_strided_slice %0 {offsets = [1, 0], sizes = [1, 32], strides = [1, 1]} : vector<19x128xf32> to vector<1x32xf32>
    %18 = vector.extract_strided_slice %0 {offsets = [2, 0], sizes = [1, 32], strides = [1, 1]} : vector<19x128xf32> to vector<1x32xf32>
    %19 = vector.extract_strided_slice %0 {offsets = [3, 0], sizes = [1, 32], strides = [1, 1]} : vector<19x128xf32> to vector<1x32xf32>
    %20 = vector.extract_strided_slice %0 {offsets = [4, 0], sizes = [1, 32], strides = [1, 1]} : vector<19x128xf32> to vector<1x32xf32>
    %21 = vector.extract_strided_slice %0 {offsets = [5, 0], sizes = [1, 32], strides = [1, 1]} : vector<19x128xf32> to vector<1x32xf32>
    %22 = vector.extract_strided_slice %0 {offsets = [6, 0], sizes = [1, 32], strides = [1, 1]} : vector<19x128xf32> to vector<1x32xf32>
    %23 = vector.extract_strided_slice %0 {offsets = [7, 0], sizes = [1, 96], strides = [1, 1]} : vector<19x128xf32> to vector<1x96xf32>
    %24 = vector.extract_strided_slice %0 {offsets = [8, 0], sizes = [1, 128], strides = [1, 1]} : vector<19x128xf32> to vector<1x128xf32>
    %cst_13 = arith.constant dense<0.000000e+00> : vector<64xf32>
    %25 = vector.multi_reduction <add>, %16, %cst_13 [1] : vector<64x32xf32> to vector<64xf32>
    %26 = vector.shape_cast %25 : vector<64xf32> to vector<64x1xf32>
    %cst_14 = arith.constant 3.200000e+01 : f32
    %27 = vector.broadcast %cst_14 : f32 to vector<64x1xf32>
    %28 = arith.divf %26, %27 : vector<64x1xf32>
    %29 = vector.broadcast %28 : vector<64x1xf32> to vector<64x32xf32>
    %30 = arith.subf %16, %29 : vector<64x32xf32>
    %31 = arith.mulf %30, %30 : vector<64x32xf32>
    %cst_15 = arith.constant dense<0.000000e+00> : vector<64xf32>
    %32 = vector.multi_reduction <add>, %31, %cst_15 [1] : vector<64x32xf32> to vector<64xf32>
    %33 = vector.shape_cast %32 : vector<64xf32> to vector<64x1xf32>
    %cst_16 = arith.constant 3.200000e+01 : f32
    %34 = vector.broadcast %cst_16 : f32 to vector<64x1xf32>
    %35 = arith.divf %33, %34 : vector<64x1xf32>
    %36 = vector.broadcast %28 : vector<64x1xf32> to vector<64x32xf32>
    %37 = arith.subf %16, %36 : vector<64x32xf32>
    %cst_17 = arith.constant 9.99999974E-6 : f32
    %38 = vector.broadcast %cst_17 : f32 to vector<64x1xf32>
    %39 = arith.addf %35, %38 : vector<64x1xf32>
    %40 = math.rsqrt %39 : vector<64x1xf32>
    %41 = vector.broadcast %40 : vector<64x1xf32> to vector<64x32xf32>
    %42 = arith.mulf %37, %41 : vector<64x32xf32>
    %43 = vector.broadcast %17 : vector<1x32xf32> to vector<64x32xf32>
    %44 = arith.mulf %42, %43 : vector<64x32xf32>
    %45 = vector.broadcast %18 : vector<1x32xf32> to vector<64x32xf32>
    %46 = arith.addf %44, %45 : vector<64x32xf32>
    %47 = arith.truncf %46 : vector<64x32xf32> to vector<64x32xbf16>
    %c0_18 = arith.constant 0 : index
    %c0_19 = arith.constant 0 : index
    %48 = vector.load %arg4[%c0_18, %c0_19] : memref<32x96xbf16, #tpu.memory_space<vmem>>, vector<32x96xbf16>
    %cst_20 = arith.constant dense<0.000000e+00> : vector<64x96xf32>
    %49 = tpu.matmul %47, %48, %cst_20 {dimension_numbers = #tpu.dot_dimension_numbers<[1], [0], [0], [1], [0, 0, 1, 1], [], []>} : vector<64x32xbf16>, vector<32x96xbf16>, vector<64x96xf32> -> vector<64x96xf32>
    %50 = vector.broadcast %23 : vector<1x96xf32> to vector<64x96xf32>
    %51 = arith.addf %49, %50 : vector<64x96xf32>
    %52 = vector.extract_strided_slice %51 {offsets = [0, 0], sizes = [64, 32], strides = [1, 1]} : vector<64x96xf32> to vector<64x32xf32>
    %53 = vector.extract_strided_slice %51 {offsets = [0, 32], sizes = [64, 32], strides = [1, 1]} : vector<64x96xf32> to vector<64x32xf32>
    %54 = vector.extract_strided_slice %51 {offsets = [0, 64], sizes = [64, 32], strides = [1, 1]} : vector<64x96xf32> to vector<64x32xf32>
    %cst_21 = arith.constant dense<0xFF800000> : vector<32xf32>
    %55 = vector.multi_reduction <maximumf>, %52, %cst_21 [0] : vector<64x32xf32> to vector<32xf32>
    %56 = vector.shape_cast %55 : vector<32xf32> to vector<1x32xf32>
    %57 = vector.broadcast %56 : vector<1x32xf32> to vector<64x32xf32>
    %58 = arith.subf %52, %57 : vector<64x32xf32>
    %59 = math.exp %58 : vector<64x32xf32>
    %cst_22 = arith.constant dense<0.000000e+00> : vector<32xf32>
    %60 = vector.multi_reduction <add>, %59, %cst_22 [0] : vector<64x32xf32> to vector<32xf32>
    %61 = vector.shape_cast %60 : vector<32xf32> to vector<1x32xf32>
    %62 = tpu.reciprocal %61 {approx = true} : vector<1x32xf32> -> vector<1x32xf32>
    %63 = vector.broadcast %62 : vector<1x32xf32> to vector<64x32xf32>
    %64 = arith.mulf %59, %63 : vector<64x32xf32>
    %cst_23 = arith.constant dense<0xFF800000> : vector<64xf32>
    %65 = vector.multi_reduction <maximumf>, %53, %cst_23 [1] : vector<64x32xf32> to vector<64xf32>
    %66 = vector.shape_cast %65 : vector<64xf32> to vector<64x1xf32>
    %67 = vector.broadcast %66 : vector<64x1xf32> to vector<64x32xf32>
    %68 = arith.subf %53, %67 : vector<64x32xf32>
    %69 = math.exp %68 : vector<64x32xf32>
    %cst_24 = arith.constant dense<0.000000e+00> : vector<64xf32>
    %70 = vector.multi_reduction <add>, %69, %cst_24 [1] : vector<64x32xf32> to vector<64xf32>
    %71 = vector.shape_cast %70 : vector<64xf32> to vector<64x1xf32>
    %72 = tpu.reciprocal %71 {approx = true} : vector<64x1xf32> -> vector<64x1xf32>
    %73 = vector.broadcast %72 : vector<64x1xf32> to vector<64x32xf32>
    %74 = arith.mulf %69, %73 : vector<64x32xf32>
    %75 = arith.truncf %64 : vector<64x32xf32> to vector<64x32xbf16>
    %76 = arith.truncf %54 : vector<64x32xf32> to vector<64x32xbf16>
    %cst_25 = arith.constant dense<0.000000e+00> : vector<32x32xf32>
    %77 = tpu.matmul %75, %76, %cst_25 {dimension_numbers = #tpu.dot_dimension_numbers<[0], [0], [1], [1], [0, 1, 1, 1], [], []>} : vector<64x32xbf16>, vector<64x32xbf16>, vector<32x32xf32> -> vector<32x32xf32>
    %78 = arith.truncf %74 : vector<64x32xf32> to vector<64x32xbf16>
    %79 = arith.truncf %77 : vector<32x32xf32> to vector<32x32xbf16>
    %cst_26 = arith.constant dense<0.000000e+00> : vector<64x32xf32>
    %80 = tpu.matmul %78, %79, %cst_26 {dimension_numbers = #tpu.dot_dimension_numbers<[1], [0], [0], [1], [0, 0, 1, 1], [], []>} : vector<64x32xbf16>, vector<32x32xbf16>, vector<64x32xf32> -> vector<64x32xf32>
    %81 = arith.truncf %80 : vector<64x32xf32> to vector<64x32xbf16>
    %c0_27 = arith.constant 0 : index
    %c0_28 = arith.constant 0 : index
    %82 = vector.load %arg5[%c0_27, %c0_28] : memref<32x32xbf16, #tpu.memory_space<vmem>>, vector<32x32xbf16>
    %cst_29 = arith.constant dense<0.000000e+00> : vector<64x32xf32>
    %83 = tpu.matmul %81, %82, %cst_29 {dimension_numbers = #tpu.dot_dimension_numbers<[1], [0], [0], [1], [0, 0, 1, 1], [], []>} : vector<64x32xbf16>, vector<32x32xbf16>, vector<64x32xf32> -> vector<64x32xf32>
    %84 = vector.broadcast %21 : vector<1x32xf32> to vector<64x32xf32>
    %85 = arith.addf %83, %84 : vector<64x32xf32>
    %86 = arith.addf %16, %85 : vector<64x32xf32>
    %cst_30 = arith.constant dense<0.000000e+00> : vector<64xf32>
    %87 = vector.multi_reduction <add>, %86, %cst_30 [1] : vector<64x32xf32> to vector<64xf32>
    %88 = vector.shape_cast %87 : vector<64xf32> to vector<64x1xf32>
    %cst_31 = arith.constant 3.200000e+01 : f32
    %89 = vector.broadcast %cst_31 : f32 to vector<64x1xf32>
    %90 = arith.divf %88, %89 : vector<64x1xf32>
    %91 = vector.broadcast %90 : vector<64x1xf32> to vector<64x32xf32>
    %92 = arith.subf %86, %91 : vector<64x32xf32>
    %93 = arith.mulf %92, %92 : vector<64x32xf32>
    %cst_32 = arith.constant dense<0.000000e+00> : vector<64xf32>
    %94 = vector.multi_reduction <add>, %93, %cst_32 [1] : vector<64x32xf32> to vector<64xf32>
    %95 = vector.shape_cast %94 : vector<64xf32> to vector<64x1xf32>
    %cst_33 = arith.constant 3.200000e+01 : f32
    %96 = vector.broadcast %cst_33 : f32 to vector<64x1xf32>
    %97 = arith.divf %95, %96 : vector<64x1xf32>
    %98 = vector.broadcast %90 : vector<64x1xf32> to vector<64x32xf32>
    %99 = arith.subf %86, %98 : vector<64x32xf32>
    %cst_34 = arith.constant 9.99999974E-6 : f32
    %100 = vector.broadcast %cst_34 : f32 to vector<64x1xf32>
    %101 = arith.addf %97, %100 : vector<64x1xf32>
    %102 = math.rsqrt %101 : vector<64x1xf32>
    %103 = vector.broadcast %102 : vector<64x1xf32> to vector<64x32xf32>
    %104 = arith.mulf %99, %103 : vector<64x32xf32>
    %105 = vector.broadcast %19 : vector<1x32xf32> to vector<64x32xf32>
    %106 = arith.mulf %104, %105 : vector<64x32xf32>
    %107 = vector.broadcast %20 : vector<1x32xf32> to vector<64x32xf32>
    %108 = arith.addf %106, %107 : vector<64x32xf32>
    %109 = arith.truncf %108 : vector<64x32xf32> to vector<64x32xbf16>
    %c0_35 = arith.constant 0 : index
    %c0_36 = arith.constant 0 : index
    %110 = vector.load %arg6[%c0_35, %c0_36] : memref<32x128xbf16, #tpu.memory_space<vmem>>, vector<32x128xbf16>
    %cst_37 = arith.constant dense<0.000000e+00> : vector<64x128xf32>
    %111 = tpu.matmul %109, %110, %cst_37 {dimension_numbers = #tpu.dot_dimension_numbers<[1], [0], [0], [1], [0, 0, 1, 1], [], []>} : vector<64x32xbf16>, vector<32x128xbf16>, vector<64x128xf32> -> vector<64x128xf32>
    %112 = vector.broadcast %24 : vector<1x128xf32> to vector<64x128xf32>
    %113 = arith.addf %111, %112 : vector<64x128xf32>
    %114 = arith.mulf %113, %113 : vector<64x128xf32>
    %115 = arith.mulf %113, %114 : vector<64x128xf32>
    %cst_38 = arith.constant 4.471500e-02 : f32
    %116 = vector.broadcast %cst_38 : f32 to vector<64x128xf32>
    %117 = arith.mulf %116, %115 : vector<64x128xf32>
    %118 = arith.addf %113, %117 : vector<64x128xf32>
    %cst_39 = arith.constant 0.797884583 : f32
    %119 = vector.broadcast %cst_39 : f32 to vector<64x128xf32>
    %120 = arith.mulf %119, %118 : vector<64x128xf32>
    %121 = math.tanh %120 : vector<64x128xf32>
    %cst_40 = arith.constant 1.000000e+00 : f32
    %122 = vector.broadcast %cst_40 : f32 to vector<64x128xf32>
    %123 = arith.addf %122, %121 : vector<64x128xf32>
    %cst_41 = arith.constant 5.000000e-01 : f32
    %124 = vector.broadcast %cst_41 : f32 to vector<64x128xf32>
    %125 = arith.mulf %124, %123 : vector<64x128xf32>
    %126 = arith.mulf %113, %125 : vector<64x128xf32>
    %127 = arith.truncf %126 : vector<64x128xf32> to vector<64x128xbf16>
    %c0_42 = arith.constant 0 : index
    %c0_43 = arith.constant 0 : index
    %128 = vector.load %arg7[%c0_42, %c0_43] : memref<128x32xbf16, #tpu.memory_space<vmem>>, vector<128x32xbf16>
    %cst_44 = arith.constant dense<0.000000e+00> : vector<64x32xf32>
    %129 = tpu.matmul %127, %128, %cst_44 {dimension_numbers = #tpu.dot_dimension_numbers<[1], [0], [0], [1], [0, 0, 1, 1], [], []>} : vector<64x128xbf16>, vector<128x32xbf16>, vector<64x32xf32> -> vector<64x32xf32>
    %130 = vector.broadcast %22 : vector<1x32xf32> to vector<64x32xf32>
    %131 = arith.addf %129, %130 : vector<64x32xf32>
    %132 = arith.addf %86, %131 : vector<64x32xf32>
    %133 = vector.extract_strided_slice %0 {offsets = [9, 0], sizes = [1, 32], strides = [1, 1]} : vector<19x128xf32> to vector<1x32xf32>
    %134 = vector.extract_strided_slice %0 {offsets = [10, 0], sizes = [1, 32], strides = [1, 1]} : vector<19x128xf32> to vector<1x32xf32>
    %135 = vector.extract_strided_slice %0 {offsets = [11, 0], sizes = [1, 32], strides = [1, 1]} : vector<19x128xf32> to vector<1x32xf32>
    %136 = vector.extract_strided_slice %0 {offsets = [12, 0], sizes = [1, 32], strides = [1, 1]} : vector<19x128xf32> to vector<1x32xf32>
    %137 = vector.extract_strided_slice %0 {offsets = [13, 0], sizes = [1, 32], strides = [1, 1]} : vector<19x128xf32> to vector<1x32xf32>
    %138 = vector.extract_strided_slice %0 {offsets = [14, 0], sizes = [1, 32], strides = [1, 1]} : vector<19x128xf32> to vector<1x32xf32>
    %139 = vector.extract_strided_slice %0 {offsets = [15, 0], sizes = [1, 96], strides = [1, 1]} : vector<19x128xf32> to vector<1x96xf32>
    %140 = vector.extract_strided_slice %0 {offsets = [16, 0], sizes = [1, 128], strides = [1, 1]} : vector<19x128xf32> to vector<1x128xf32>
    %cst_45 = arith.constant dense<0.000000e+00> : vector<64xf32>
    %141 = vector.multi_reduction <add>, %132, %cst_45 [1] : vector<64x32xf32> to vector<64xf32>
    %142 = vector.shape_cast %141 : vector<64xf32> to vector<64x1xf32>
    %cst_46 = arith.constant 3.200000e+01 : f32
    %143 = vector.broadcast %cst_46 : f32 to vector<64x1xf32>
    %144 = arith.divf %142, %143 : vector<64x1xf32>
    %145 = vector.broadcast %144 : vector<64x1xf32> to vector<64x32xf32>
    %146 = arith.subf %132, %145 : vector<64x32xf32>
    %147 = arith.mulf %146, %146 : vector<64x32xf32>
    %cst_47 = arith.constant dense<0.000000e+00> : vector<64xf32>
    %148 = vector.multi_reduction <add>, %147, %cst_47 [1] : vector<64x32xf32> to vector<64xf32>
    %149 = vector.shape_cast %148 : vector<64xf32> to vector<64x1xf32>
    %cst_48 = arith.constant 3.200000e+01 : f32
    %150 = vector.broadcast %cst_48 : f32 to vector<64x1xf32>
    %151 = arith.divf %149, %150 : vector<64x1xf32>
    %152 = vector.broadcast %144 : vector<64x1xf32> to vector<64x32xf32>
    %153 = arith.subf %132, %152 : vector<64x32xf32>
    %cst_49 = arith.constant 9.99999974E-6 : f32
    %154 = vector.broadcast %cst_49 : f32 to vector<64x1xf32>
    %155 = arith.addf %151, %154 : vector<64x1xf32>
    %156 = math.rsqrt %155 : vector<64x1xf32>
    %157 = vector.broadcast %156 : vector<64x1xf32> to vector<64x32xf32>
    %158 = arith.mulf %153, %157 : vector<64x32xf32>
    %159 = vector.broadcast %133 : vector<1x32xf32> to vector<64x32xf32>
    %160 = arith.mulf %158, %159 : vector<64x32xf32>
    %161 = vector.broadcast %134 : vector<1x32xf32> to vector<64x32xf32>
    %162 = arith.addf %160, %161 : vector<64x32xf32>
    %163 = arith.truncf %162 : vector<64x32xf32> to vector<64x32xbf16>
    %c0_50 = arith.constant 0 : index
    %c0_51 = arith.constant 0 : index
    %164 = vector.load %arg8[%c0_50, %c0_51] : memref<32x96xbf16, #tpu.memory_space<vmem>>, vector<32x96xbf16>
    %cst_52 = arith.constant dense<0.000000e+00> : vector<64x96xf32>
    %165 = tpu.matmul %163, %164, %cst_52 {dimension_numbers = #tpu.dot_dimension_numbers<[1], [0], [0], [1], [0, 0, 1, 1], [], []>} : vector<64x32xbf16>, vector<32x96xbf16>, vector<64x96xf32> -> vector<64x96xf32>
    %166 = vector.broadcast %139 : vector<1x96xf32> to vector<64x96xf32>
    %167 = arith.addf %165, %166 : vector<64x96xf32>
    %168 = vector.extract_strided_slice %167 {offsets = [0, 0], sizes = [64, 32], strides = [1, 1]} : vector<64x96xf32> to vector<64x32xf32>
    %169 = vector.extract_strided_slice %167 {offsets = [0, 32], sizes = [64, 32], strides = [1, 1]} : vector<64x96xf32> to vector<64x32xf32>
    %170 = vector.extract_strided_slice %167 {offsets = [0, 64], sizes = [64, 32], strides = [1, 1]} : vector<64x96xf32> to vector<64x32xf32>
    %cst_53 = arith.constant dense<0xFF800000> : vector<32xf32>
    %171 = vector.multi_reduction <maximumf>, %168, %cst_53 [0] : vector<64x32xf32> to vector<32xf32>
    %172 = vector.shape_cast %171 : vector<32xf32> to vector<1x32xf32>
    %173 = vector.broadcast %172 : vector<1x32xf32> to vector<64x32xf32>
    %174 = arith.subf %168, %173 : vector<64x32xf32>
    %175 = math.exp %174 : vector<64x32xf32>
    %cst_54 = arith.constant dense<0.000000e+00> : vector<32xf32>
    %176 = vector.multi_reduction <add>, %175, %cst_54 [0] : vector<64x32xf32> to vector<32xf32>
    %177 = vector.shape_cast %176 : vector<32xf32> to vector<1x32xf32>
    %178 = tpu.reciprocal %177 {approx = true} : vector<1x32xf32> -> vector<1x32xf32>
    %179 = vector.broadcast %178 : vector<1x32xf32> to vector<64x32xf32>
    %180 = arith.mulf %175, %179 : vector<64x32xf32>
    %cst_55 = arith.constant dense<0xFF800000> : vector<64xf32>
    %181 = vector.multi_reduction <maximumf>, %169, %cst_55 [1] : vector<64x32xf32> to vector<64xf32>
    %182 = vector.shape_cast %181 : vector<64xf32> to vector<64x1xf32>
    %183 = vector.broadcast %182 : vector<64x1xf32> to vector<64x32xf32>
    %184 = arith.subf %169, %183 : vector<64x32xf32>
    %185 = math.exp %184 : vector<64x32xf32>
    %cst_56 = arith.constant dense<0.000000e+00> : vector<64xf32>
    %186 = vector.multi_reduction <add>, %185, %cst_56 [1] : vector<64x32xf32> to vector<64xf32>
    %187 = vector.shape_cast %186 : vector<64xf32> to vector<64x1xf32>
    %188 = tpu.reciprocal %187 {approx = true} : vector<64x1xf32> -> vector<64x1xf32>
    %189 = vector.broadcast %188 : vector<64x1xf32> to vector<64x32xf32>
    %190 = arith.mulf %185, %189 : vector<64x32xf32>
    %191 = arith.truncf %180 : vector<64x32xf32> to vector<64x32xbf16>
    %192 = arith.truncf %170 : vector<64x32xf32> to vector<64x32xbf16>
    %cst_57 = arith.constant dense<0.000000e+00> : vector<32x32xf32>
    %193 = tpu.matmul %191, %192, %cst_57 {dimension_numbers = #tpu.dot_dimension_numbers<[0], [0], [1], [1], [0, 1, 1, 1], [], []>} : vector<64x32xbf16>, vector<64x32xbf16>, vector<32x32xf32> -> vector<32x32xf32>
    %194 = arith.truncf %190 : vector<64x32xf32> to vector<64x32xbf16>
    %195 = arith.truncf %193 : vector<32x32xf32> to vector<32x32xbf16>
    %cst_58 = arith.constant dense<0.000000e+00> : vector<64x32xf32>
    %196 = tpu.matmul %194, %195, %cst_58 {dimension_numbers = #tpu.dot_dimension_numbers<[1], [0], [0], [1], [0, 0, 1, 1], [], []>} : vector<64x32xbf16>, vector<32x32xbf16>, vector<64x32xf32> -> vector<64x32xf32>
    %197 = arith.truncf %196 : vector<64x32xf32> to vector<64x32xbf16>
    %c0_59 = arith.constant 0 : index
    %c0_60 = arith.constant 0 : index
    %198 = vector.load %arg9[%c0_59, %c0_60] : memref<32x32xbf16, #tpu.memory_space<vmem>>, vector<32x32xbf16>
    %cst_61 = arith.constant dense<0.000000e+00> : vector<64x32xf32>
    %199 = tpu.matmul %197, %198, %cst_61 {dimension_numbers = #tpu.dot_dimension_numbers<[1], [0], [0], [1], [0, 0, 1, 1], [], []>} : vector<64x32xbf16>, vector<32x32xbf16>, vector<64x32xf32> -> vector<64x32xf32>
    %200 = vector.broadcast %137 : vector<1x32xf32> to vector<64x32xf32>
    %201 = arith.addf %199, %200 : vector<64x32xf32>
    %202 = arith.addf %132, %201 : vector<64x32xf32>
    %cst_62 = arith.constant dense<0.000000e+00> : vector<64xf32>
    %203 = vector.multi_reduction <add>, %202, %cst_62 [1] : vector<64x32xf32> to vector<64xf32>
    %204 = vector.shape_cast %203 : vector<64xf32> to vector<64x1xf32>
    %cst_63 = arith.constant 3.200000e+01 : f32
    %205 = vector.broadcast %cst_63 : f32 to vector<64x1xf32>
    %206 = arith.divf %204, %205 : vector<64x1xf32>
    %207 = vector.broadcast %206 : vector<64x1xf32> to vector<64x32xf32>
    %208 = arith.subf %202, %207 : vector<64x32xf32>
    %209 = arith.mulf %208, %208 : vector<64x32xf32>
    %cst_64 = arith.constant dense<0.000000e+00> : vector<64xf32>
    %210 = vector.multi_reduction <add>, %209, %cst_64 [1] : vector<64x32xf32> to vector<64xf32>
    %211 = vector.shape_cast %210 : vector<64xf32> to vector<64x1xf32>
    %cst_65 = arith.constant 3.200000e+01 : f32
    %212 = vector.broadcast %cst_65 : f32 to vector<64x1xf32>
    %213 = arith.divf %211, %212 : vector<64x1xf32>
    %214 = vector.broadcast %206 : vector<64x1xf32> to vector<64x32xf32>
    %215 = arith.subf %202, %214 : vector<64x32xf32>
    %cst_66 = arith.constant 9.99999974E-6 : f32
    %216 = vector.broadcast %cst_66 : f32 to vector<64x1xf32>
    %217 = arith.addf %213, %216 : vector<64x1xf32>
    %218 = math.rsqrt %217 : vector<64x1xf32>
    %219 = vector.broadcast %218 : vector<64x1xf32> to vector<64x32xf32>
    %220 = arith.mulf %215, %219 : vector<64x32xf32>
    %221 = vector.broadcast %135 : vector<1x32xf32> to vector<64x32xf32>
    %222 = arith.mulf %220, %221 : vector<64x32xf32>
    %223 = vector.broadcast %136 : vector<1x32xf32> to vector<64x32xf32>
    %224 = arith.addf %222, %223 : vector<64x32xf32>
    %225 = arith.truncf %224 : vector<64x32xf32> to vector<64x32xbf16>
    %c0_67 = arith.constant 0 : index
    %c0_68 = arith.constant 0 : index
    %226 = vector.load %arg10[%c0_67, %c0_68] : memref<32x128xbf16, #tpu.memory_space<vmem>>, vector<32x128xbf16>
    %cst_69 = arith.constant dense<0.000000e+00> : vector<64x128xf32>
    %227 = tpu.matmul %225, %226, %cst_69 {dimension_numbers = #tpu.dot_dimension_numbers<[1], [0], [0], [1], [0, 0, 1, 1], [], []>} : vector<64x32xbf16>, vector<32x128xbf16>, vector<64x128xf32> -> vector<64x128xf32>
    %228 = vector.broadcast %140 : vector<1x128xf32> to vector<64x128xf32>
    %229 = arith.addf %227, %228 : vector<64x128xf32>
    %230 = arith.mulf %229, %229 : vector<64x128xf32>
    %231 = arith.mulf %229, %230 : vector<64x128xf32>
    %cst_70 = arith.constant 4.471500e-02 : f32
    %232 = vector.broadcast %cst_70 : f32 to vector<64x128xf32>
    %233 = arith.mulf %232, %231 : vector<64x128xf32>
    %234 = arith.addf %229, %233 : vector<64x128xf32>
    %cst_71 = arith.constant 0.797884583 : f32
    %235 = vector.broadcast %cst_71 : f32 to vector<64x128xf32>
    %236 = arith.mulf %235, %234 : vector<64x128xf32>
    %237 = math.tanh %236 : vector<64x128xf32>
    %cst_72 = arith.constant 1.000000e+00 : f32
    %238 = vector.broadcast %cst_72 : f32 to vector<64x128xf32>
    %239 = arith.addf %238, %237 : vector<64x128xf32>
    %cst_73 = arith.constant 5.000000e-01 : f32
    %240 = vector.broadcast %cst_73 : f32 to vector<64x128xf32>
    %241 = arith.mulf %240, %239 : vector<64x128xf32>
    %242 = arith.mulf %229, %241 : vector<64x128xf32>
    %243 = arith.truncf %242 : vector<64x128xf32> to vector<64x128xbf16>
    %c0_74 = arith.constant 0 : index
    %c0_75 = arith.constant 0 : index
    %244 = vector.load %arg11[%c0_74, %c0_75] : memref<128x32xbf16, #tpu.memory_space<vmem>>, vector<128x32xbf16>
    %cst_76 = arith.constant dense<0.000000e+00> : vector<64x32xf32>
    %245 = tpu.matmul %243, %244, %cst_76 {dimension_numbers = #tpu.dot_dimension_numbers<[1], [0], [0], [1], [0, 0, 1, 1], [], []>} : vector<64x128xbf16>, vector<128x32xbf16>, vector<64x32xf32> -> vector<64x32xf32>
    %246 = vector.broadcast %138 : vector<1x32xf32> to vector<64x32xf32>
    %247 = arith.addf %245, %246 : vector<64x32xf32>
    %248 = arith.addf %202, %247 : vector<64x32xf32>
    %249 = arith.truncf %248 : vector<64x32xf32> to vector<64x32xbf16>
    %c0_77 = arith.constant 0 : index
    %c0_78 = arith.constant 0 : index
    %250 = vector.load %arg12[%c0_77, %c0_78] : memref<32x64xbf16, #tpu.memory_space<vmem>>, vector<32x64xbf16>
    %cst_79 = arith.constant dense<0.000000e+00> : vector<64x64xf32>
    %251 = tpu.matmul %249, %250, %cst_79 {dimension_numbers = #tpu.dot_dimension_numbers<[1], [0], [0], [1], [0, 0, 1, 1], [], []>} : vector<64x32xbf16>, vector<32x64xbf16>, vector<64x64xf32> -> vector<64x64xf32>
    %252 = vector.extract_strided_slice %0 {offsets = [17, 0], sizes = [1, 16], strides = [1, 1]} : vector<19x128xf32> to vector<1x16xf32>
    %253 = vector.extract_strided_slice %0 {offsets = [18, 0], sizes = [1, 16], strides = [1, 1]} : vector<19x128xf32> to vector<1x16xf32>
    %254 = vector.extract_strided_slice %251 {offsets = [0, 0], sizes = [64, 16], strides = [1, 1]} : vector<64x64xf32> to vector<64x16xf32>
    %cst_80 = arith.constant dense<0.000000e+00> : vector<64xf32>
    %255 = vector.multi_reduction <add>, %254, %cst_80 [1] : vector<64x16xf32> to vector<64xf32>
    %256 = vector.shape_cast %255 : vector<64xf32> to vector<64x1xf32>
    %cst_81 = arith.constant 1.600000e+01 : f32
    %257 = vector.broadcast %cst_81 : f32 to vector<64x1xf32>
    %258 = arith.divf %256, %257 : vector<64x1xf32>
    %259 = vector.broadcast %258 : vector<64x1xf32> to vector<64x16xf32>
    %260 = arith.subf %254, %259 : vector<64x16xf32>
    %261 = arith.mulf %260, %260 : vector<64x16xf32>
    %cst_82 = arith.constant dense<0.000000e+00> : vector<64xf32>
    %262 = vector.multi_reduction <add>, %261, %cst_82 [1] : vector<64x16xf32> to vector<64xf32>
    %263 = vector.shape_cast %262 : vector<64xf32> to vector<64x1xf32>
    %cst_83 = arith.constant 1.600000e+01 : f32
    %264 = vector.broadcast %cst_83 : f32 to vector<64x1xf32>
    %265 = arith.divf %263, %264 : vector<64x1xf32>
    %266 = vector.broadcast %258 : vector<64x1xf32> to vector<64x16xf32>
    %267 = arith.subf %254, %266 : vector<64x16xf32>
    %cst_84 = arith.constant 9.99999974E-6 : f32
    %268 = vector.broadcast %cst_84 : f32 to vector<64x1xf32>
    %269 = arith.addf %265, %268 : vector<64x1xf32>
    %270 = math.rsqrt %269 : vector<64x1xf32>
    %271 = vector.broadcast %270 : vector<64x1xf32> to vector<64x16xf32>
    %272 = arith.mulf %267, %271 : vector<64x16xf32>
    %273 = vector.broadcast %252 : vector<1x16xf32> to vector<64x16xf32>
    %274 = arith.mulf %272, %273 : vector<64x16xf32>
    %275 = vector.broadcast %253 : vector<1x16xf32> to vector<64x16xf32>
    %276 = arith.addf %274, %275 : vector<64x16xf32>
    %c0_85 = arith.constant 0 : index
    %c0_86 = arith.constant 0 : index
    %c0_87 = arith.constant 0 : index
    %277 = vector.load %arg14[%c0_85, %c0_86, %c0_87] : memref<1x64x64xf32, #tpu.memory_space<vmem>>, vector<1x64x16xf32>
    %278 = vector.shape_cast %277 : vector<1x64x16xf32> to vector<64x16xf32>
    %279 = vector.shape_cast %276 : vector<64x16xf32> to vector<1x64x16xf32>
    tpu.vector_store %arg14[%c0_85, %c0_86, %c0_87], %279 {strides = array<i32>} : memref<1x64x64xf32, #tpu.memory_space<vmem>>, vector<1x64x16xf32>,
    %280 = vector.extract_strided_slice %251 {offsets = [0, 16], sizes = [64, 16], strides = [1, 1]} : vector<64x64xf32> to vector<64x16xf32>
    %cst_88 = arith.constant dense<0.000000e+00> : vector<64xf32>
    %281 = vector.multi_reduction <add>, %280, %cst_88 [1] : vector<64x16xf32> to vector<64xf32>
    %282 = vector.shape_cast %281 : vector<64xf32> to vector<64x1xf32>
    %cst_89 = arith.constant 1.600000e+01 : f32
    %283 = vector.broadcast %cst_89 : f32 to vector<64x1xf32>
    %284 = arith.divf %282, %283 : vector<64x1xf32>
    %285 = vector.broadcast %284 : vector<64x1xf32> to vector<64x16xf32>
    %286 = arith.subf %280, %285 : vector<64x16xf32>
    %287 = arith.mulf %286, %286 : vector<64x16xf32>
    %cst_90 = arith.constant dense<0.000000e+00> : vector<64xf32>
    %288 = vector.multi_reduction <add>, %287, %cst_90 [1] : vector<64x16xf32> to vector<64xf32>
    %289 = vector.shape_cast %288 : vector<64xf32> to vector<64x1xf32>
    %cst_91 = arith.constant 1.600000e+01 : f32
    %290 = vector.broadcast %cst_91 : f32 to vector<64x1xf32>
    %291 = arith.divf %289, %290 : vector<64x1xf32>
    %292 = vector.broadcast %284 : vector<64x1xf32> to vector<64x16xf32>
    %293 = arith.subf %280, %292 : vector<64x16xf32>
    %cst_92 = arith.constant 9.99999974E-6 : f32
    %294 = vector.broadcast %cst_92 : f32 to vector<64x1xf32>
    %295 = arith.addf %291, %294 : vector<64x1xf32>
    %296 = math.rsqrt %295 : vector<64x1xf32>
    %297 = vector.broadcast %296 : vector<64x1xf32> to vector<64x16xf32>
    %298 = arith.mulf %293, %297 : vector<64x16xf32>
    %299 = vector.broadcast %252 : vector<1x16xf32> to vector<64x16xf32>
    %300 = arith.mulf %298, %299 : vector<64x16xf32>
    %301 = vector.broadcast %253 : vector<1x16xf32> to vector<64x16xf32>
    %302 = arith.addf %300, %301 : vector<64x16xf32>
    %c0_93 = arith.constant 0 : index
    %c0_94 = arith.constant 0 : index
    %c16 = arith.constant 16 : index
    %303 = vector.load %arg14[%c0_93, %c0_94, %c16] : memref<1x64x64xf32, #tpu.memory_space<vmem>>, vector<1x64x16xf32>
    %304 = vector.shape_cast %303 : vector<1x64x16xf32> to vector<64x16xf32>
    %305 = vector.shape_cast %302 : vector<64x16xf32> to vector<1x64x16xf32>
    tpu.vector_store %arg14[%c0_93, %c0_94, %c16], %305 {strides = array<i32>} : memref<1x64x64xf32, #tpu.memory_space<vmem>>, vector<1x64x16xf32>,
    %306 = vector.extract_strided_slice %251 {offsets = [0, 32], sizes = [64, 16], strides = [1, 1]} : vector<64x64xf32> to vector<64x16xf32>
    %cst_95 = arith.constant dense<0.000000e+00> : vector<64xf32>
    %307 = vector.multi_reduction <add>, %306, %cst_95 [1] : vector<64x16xf32> to vector<64xf32>
    %308 = vector.shape_cast %307 : vector<64xf32> to vector<64x1xf32>
    %cst_96 = arith.constant 1.600000e+01 : f32
    %309 = vector.broadcast %cst_96 : f32 to vector<64x1xf32>
    %310 = arith.divf %308, %309 : vector<64x1xf32>
    %311 = vector.broadcast %310 : vector<64x1xf32> to vector<64x16xf32>
    %312 = arith.subf %306, %311 : vector<64x16xf32>
    %313 = arith.mulf %312, %312 : vector<64x16xf32>
    %cst_97 = arith.constant dense<0.000000e+00> : vector<64xf32>
    %314 = vector.multi_reduction <add>, %313, %cst_97 [1] : vector<64x16xf32> to vector<64xf32>
    %315 = vector.shape_cast %314 : vector<64xf32> to vector<64x1xf32>
    %cst_98 = arith.constant 1.600000e+01 : f32
    %316 = vector.broadcast %cst_98 : f32 to vector<64x1xf32>
    %317 = arith.divf %315, %316 : vector<64x1xf32>
    %318 = vector.broadcast %310 : vector<64x1xf32> to vector<64x16xf32>
    %319 = arith.subf %306, %318 : vector<64x16xf32>
    %cst_99 = arith.constant 9.99999974E-6 : f32
    %320 = vector.broadcast %cst_99 : f32 to vector<64x1xf32>
    %321 = arith.addf %317, %320 : vector<64x1xf32>
    %322 = math.rsqrt %321 : vector<64x1xf32>
    %323 = vector.broadcast %322 : vector<64x1xf32> to vector<64x16xf32>
    %324 = arith.mulf %319, %323 : vector<64x16xf32>
    %325 = vector.broadcast %252 : vector<1x16xf32> to vector<64x16xf32>
    %326 = arith.mulf %324, %325 : vector<64x16xf32>
    %327 = vector.broadcast %253 : vector<1x16xf32> to vector<64x16xf32>
    %328 = arith.addf %326, %327 : vector<64x16xf32>
    %c0_100 = arith.constant 0 : index
    %c0_101 = arith.constant 0 : index
    %c32 = arith.constant 32 : index
    %329 = vector.load %arg14[%c0_100, %c0_101, %c32] : memref<1x64x64xf32, #tpu.memory_space<vmem>>, vector<1x64x16xf32>
    %330 = vector.shape_cast %329 : vector<1x64x16xf32> to vector<64x16xf32>
    %331 = vector.shape_cast %328 : vector<64x16xf32> to vector<1x64x16xf32>
    tpu.vector_store %arg14[%c0_100, %c0_101, %c32], %331 {strides = array<i32>} : memref<1x64x64xf32, #tpu.memory_space<vmem>>, vector<1x64x16xf32>,
    %332 = vector.extract_strided_slice %251 {offsets = [0, 48], sizes = [64, 16], strides = [1, 1]} : vector<64x64xf32> to vector<64x16xf32>
    %cst_102 = arith.constant dense<0.000000e+00> : vector<64xf32>
    %333 = vector.multi_reduction <add>, %332, %cst_102 [1] : vector<64x16xf32> to vector<64xf32>
    %334 = vector.shape_cast %333 : vector<64xf32> to vector<64x1xf32>
    %cst_103 = arith.constant 1.600000e+01 : f32
    %335 = vector.broadcast %cst_103 : f32 to vector<64x1xf32>
    %336 = arith.divf %334, %335 : vector<64x1xf32>
    %337 = vector.broadcast %336 : vector<64x1xf32> to vector<64x16xf32>
    %338 = arith.subf %332, %337 : vector<64x16xf32>
    %339 = arith.mulf %338, %338 : vector<64x16xf32>
    %cst_104 = arith.constant dense<0.000000e+00> : vector<64xf32>
    %340 = vector.multi_reduction <add>, %339, %cst_104 [1] : vector<64x16xf32> to vector<64xf32>
    %341 = vector.shape_cast %340 : vector<64xf32> to vector<64x1xf32>
    %cst_105 = arith.constant 1.600000e+01 : f32
    %342 = vector.broadcast %cst_105 : f32 to vector<64x1xf32>
    %343 = arith.divf %341, %342 : vector<64x1xf32>
    %344 = vector.broadcast %336 : vector<64x1xf32> to vector<64x16xf32>
    %345 = arith.subf %332, %344 : vector<64x16xf32>
    %cst_106 = arith.constant 9.99999974E-6 : f32
    %346 = vector.broadcast %cst_106 : f32 to vector<64x1xf32>
    %347 = arith.addf %343, %346 : vector<64x1xf32>
    %348 = math.rsqrt %347 : vector<64x1xf32>
    %349 = vector.broadcast %348 : vector<64x1xf32> to vector<64x16xf32>
    %350 = arith.mulf %345, %349 : vector<64x16xf32>
    %351 = vector.broadcast %252 : vector<1x16xf32> to vector<64x16xf32>
    %352 = arith.mulf %350, %351 : vector<64x16xf32>
    %353 = vector.broadcast %253 : vector<1x16xf32> to vector<64x16xf32>
    %354 = arith.addf %352, %353 : vector<64x16xf32>
    %c0_107 = arith.constant 0 : index
    %c0_108 = arith.constant 0 : index
    %c48 = arith.constant 48 : index
    %355 = vector.load %arg14[%c0_107, %c0_108, %c48] : memref<1x64x64xf32, #tpu.memory_space<vmem>>, vector<1x64x16xf32>
    %356 = vector.shape_cast %355 : vector<1x64x16xf32> to vector<64x16xf32>
    %357 = vector.shape_cast %354 : vector<64x16xf32> to vector<1x64x16xf32>
    tpu.vector_store %arg14[%c0_107, %c0_108, %c48], %357 {strides = array<i32>} : memref<1x64x64xf32, #tpu.memory_space<vmem>>, vector<1x64x16xf32>,
    return
  }
  func.func @transform_0(%arg0: i32) -> (i32, i32, i32) {
    %c0_i32 = arith.constant 0 : i32
    %c0_i32_0 = arith.constant 0 : i32
    %c0_i32_1 = arith.constant 0 : i32
    return %arg0, %c0_i32, %c0_i32_0 : i32, i32, i32
  }
  func.func @transform_1(%arg0: i32) -> (i32, i32, i32) {
    %c0_i32 = arith.constant 0 : i32
    %c0_i32_0 = arith.constant 0 : i32
    %c0_i32_1 = arith.constant 0 : i32
    return %arg0, %c0_i32, %c0_i32_0 : i32, i32, i32
  }
  func.func @transform_2(%arg0: i32) -> (i32, i32, i32) {
    %c0_i32 = arith.constant 0 : i32
    %c0_i32_0 = arith.constant 0 : i32
    %c0_i32_1 = arith.constant 0 : i32
    %c0_i32_2 = arith.constant 0 : i32
    return %c0_i32, %c0_i32_0, %c0_i32_1 : i32, i32, i32
  }
  func.func @transform_3(%arg0: i32) -> (i32, i32) {
    %c0_i32 = arith.constant 0 : i32
    %c0_i32_0 = arith.constant 0 : i32
    %c0_i32_1 = arith.constant 0 : i32
    return %c0_i32, %c0_i32_0 : i32, i32
  }
  func.func @transform_4(%arg0: i32) -> (i32, i32) {
    %c0_i32 = arith.constant 0 : i32
    %c0_i32_0 = arith.constant 0 : i32
    %c0_i32_1 = arith.constant 0 : i32
    return %c0_i32, %c0_i32_0 : i32, i32
  }
  func.func @transform_5(%arg0: i32) -> (i32, i32) {
    %c0_i32 = arith.constant 0 : i32
    %c0_i32_0 = arith.constant 0 : i32
    %c0_i32_1 = arith.constant 0 : i32
    return %c0_i32, %c0_i32_0 : i32, i32
  }
  func.func @transform_6(%arg0: i32) -> (i32, i32) {
    %c0_i32 = arith.constant 0 : i32
    %c0_i32_0 = arith.constant 0 : i32
    %c0_i32_1 = arith.constant 0 : i32
    return %c0_i32, %c0_i32_0 : i32, i32
  }
  func.func @transform_7(%arg0: i32) -> (i32, i32) {
    %c0_i32 = arith.constant 0 : i32
    %c0_i32_0 = arith.constant 0 : i32
    %c0_i32_1 = arith.constant 0 : i32
    return %c0_i32, %c0_i32_0 : i32, i32
  }
  func.func @transform_8(%arg0: i32) -> (i32, i32) {
    %c0_i32 = arith.constant 0 : i32
    %c0_i32_0 = arith.constant 0 : i32
    %c0_i32_1 = arith.constant 0 : i32
    return %c0_i32, %c0_i32_0 : i32, i32
  }
  func.func @transform_9(%arg0: i32) -> (i32, i32) {
    %c0_i32 = arith.constant 0 : i32
    %c0_i32_0 = arith.constant 0 : i32
    %c0_i32_1 = arith.constant 0 : i32
    return %c0_i32, %c0_i32_0 : i32, i32
  }
  func.func @transform_10(%arg0: i32) -> (i32, i32) {
    %c0_i32 = arith.constant 0 : i32
    %c0_i32_0 = arith.constant 0 : i32
    %c0_i32_1 = arith.constant 0 : i32
    return %c0_i32, %c0_i32_0 : i32, i32
  }
  func.func @transform_11(%arg0: i32) -> (i32, i32) {
    %c0_i32 = arith.constant 0 : i32
    %c0_i32_0 = arith.constant 0 : i32
    %c0_i32_1 = arith.constant 0 : i32
    return %c0_i32, %c0_i32_0 : i32, i32
  }
  func.func @transform_12(%arg0: i32) -> (i32, i32) {
    %c0_i32 = arith.constant 0 : i32
    %c0_i32_0 = arith.constant 0 : i32
    %c0_i32_1 = arith.constant 0 : i32
    return %c0_i32, %c0_i32_0 : i32, i32
  }
  func.func @transform_13(%arg0: i32) -> (i32, i32, i32) {
    %c0_i32 = arith.constant 0 : i32
    %c0_i32_0 = arith.constant 0 : i32
    %c0_i32_1 = arith.constant 0 : i32
    return %arg0, %c0_i32, %c0_i32_0 : i32, i32, i32
  }
}

</mosaic_0001>

<llo_original>
// kernel: my_decoder_layer_forward.1
$region0: #{my_decoder_layer_forward.1}
  #allocation0 [shape = 'u32[]', space=smem, size = 0x4, offset = 0x4, fixed_abs, tag = 'smem constant byte address 0x4 - core index']
  #allocation1 [shape = 'u32[72,128]{1,0:T(1,128)}', space=vmem, size = 0x9000, scoped, tag = 'internal scratch']
  %s0 = inlined_call_operand.vmem [shape: f32[2,64,16], index: 0, kind: input, shape index: {}]
  %s1 = inlined_call_operand.vmem [shape: f32[2,64,16], index: 1, kind: input, shape index: {}]
  %s2 = inlined_call_operand.vmem [shape: bf16[2,16,32], index: 2, kind: input, shape index: {}]
  %s3 = inlined_call_operand.vmem [shape: bf16[32,96], index: 3, kind: input, shape index: {}]
  %s4 = inlined_call_operand.vmem [shape: bf16[32,32], index: 4, kind: input, shape index: {}]
  %s5 = inlined_call_operand.vmem [shape: bf16[32,128], index: 5, kind: input, shape index: {}]
  %s6 = inlined_call_operand.vmem [shape: bf16[128,32], index: 6, kind: input, shape index: {}]
  %s7 = inlined_call_operand.vmem [shape: bf16[32,96], index: 7, kind: input, shape index: {}]
  %s8 = inlined_call_operand.vmem [shape: bf16[32,32], index: 8, kind: input, shape index: {}]
  %s9 = inlined_call_operand.vmem [shape: bf16[32,128], index: 9, kind: input, shape index: {}]
  %s10 = inlined_call_operand.vmem [shape: bf16[128,32], index: 10, kind: input, shape index: {}]
  %s11 = inlined_call_operand.hbm [shape: bf16[32,64], index: 11, kind: input, shape index: {}]
  %s12 = inlined_call_operand.vmem [shape: f32[19,128], index: 12, kind: input, shape index: {}]
  %s13 = inlined_call_operand.vmem [shape: f32[2,64,64], index: 13, kind: output, shape index: {}]
  %s14 = sld [smem:[#allocation0]]
  $region89: #{my_decoder_layer_forward.1} parent=0
    _
  %s16 = ssub.s32 1, %s14
  %s17 = scalar_select 0, %s16, %s14
  $region1: #{my_decoder_layer_forward.1} parent=0
    #allocation2 [shape = 'u8[8192]{0}', space=vmem, size = 0x2000, scoped, tag = 'input window, operand 11, single buffered']
    #allocation3 [shape = 's32[2]{0}', space=sflag, size = 0x8, scoped, tag = 'scoped memory for my_decoder_layer_forward.1']
    %18 = vsyncpa [#allocation3], 0
    loop: start=0, step=1, limit=4
    $region2: #{my_decoder_layer_forward.1} parent=1 // loop_pre_header
      _
    $region3: #{my_decoder_layer_forward.1} parent=1 // loop_header
      %s20 = sphi 0, %s24
      %p21 = scmp.ge.s32.totalorder %s20, 4
      %s30 = sphi 0, %s32
      %s33 = sphi 0, %s30
      %s34 = sphi 0, %s33
      %s50 = sphi 0, %s34
      %s56 = sphi 0, %s58
      %s59 = sphi 0, %s56
      %s60 = sphi 0, %s59
      %s76 = sphi 0, %s60
      %s80 = sphi 0, %s80
      %s82 = sphi 0, %s80
      %s83 = sphi 0, %s82
      %s97 = sphi 0, %s83
      %s101 = sphi 0, %s101
      %s103 = sphi 0, %s101
      %s104 = sphi 0, %s103
      %s118 = sphi 0, %s104
      %s122 = sphi 0, %s122
      %s124 = sphi 0, %s122
      %s125 = sphi 0, %s124
      %s139 = sphi 0, %s125
      %s143 = sphi 0, %s143
      %s145 = sphi 0, %s143
      %s146 = sphi 0, %s145
      %s160 = sphi 0, %s146
      %s164 = sphi 0, %s164
      %s166 = sphi 0, %s164
      %s167 = sphi 0, %s166
      %s181 = sphi 0, %s167
      %s185 = sphi 0, %s185
      %s187 = sphi 0, %s185
      %s188 = sphi 0, %s187
      %s202 = sphi 0, %s188
      %s206 = sphi 0, %s206
      %s208 = sphi 0, %s206
      %s209 = sphi 0, %s208
      %s223 = sphi 0, %s209
      %s227 = sphi 0, %s227
      %s229 = sphi 0, %s227
      %s230 = sphi 0, %s229
      %s244 = sphi 0, %s230
      %s248 = sphi 0, %s248
      %s250 = sphi 0, %s248
      %s251 = sphi 0, %s250
      %s265 = sphi 0, %s251
      %s269 = sphi 0, %s269
      %s271 = sphi 0, %s269
      %s272 = sphi 0, %s271
      %s286 = sphi 0, %s272
      %s290 = sphi 0, %s290
      %s292 = sphi 0, %s290
      %s293 = sphi 0, %s292
      %s307 = sphi 0, %s293
      %s313 = sphi 0, %s315
      %s316 = sphi 0, %s313
      %s317 = sphi 0, %s316
      %s333 = sphi 0, %s317
    $region4: #{my_decoder_layer_forward.1} parent=1 // loop_header_branch
      %23 = sbr.rel (%p21) target = $region8
    $region5: #{my_decoder_layer_forward.1} parent=1 // loop_body
      %s25 = ssub.s32 %s20, 1
      %s26 = ssub.s32 %s20, 2
      %s27 = sadd.s32 %s20, 1
      %s28 = ssub.s32 %s20, %s27
      %p29 = scmp.eq.s32.totalorder %s28, 0
      %s31 = sadd.s32 %s30, 1
      %s32 = scalar_select %p29, %s30, %s31
      %p35 = pneg %p29
      %p36 = scmp.eq.s32.totalorder %s20, 1
      %p37 = por %p35, %p36
      %p38 = scmp.ne.s32.totalorder %s30, %s33
      %p39 = scmp.eq.s32.totalorder %s20, 0
      %p40 = por %p38, %p39
      %p41 = scmp.ne.s32.totalorder %s30, %s33
      %p42 = scmp.eq.s32.totalorder %s25, 1
      %p43 = por %p41, %p42
      %p44 = scmp.ne.s32.totalorder %s33, %s34
      %p45 = scmp.eq.s32.totalorder %s25, 0
      %p46 = por %p44, %p45
      %p47 = scmp.ne.s32.totalorder %s33, %s34
      %p48 = scmp.eq.s32.totalorder %s26, 1
      %p49 = por %p47, %p48
      %p51 = scmp.ne.s32.totalorder %s34, %s50
      %p52 = scmp.eq.s32.totalorder %s26, 0
      %p53 = por %p51, %p52
      %s54 = ssub.s32 %s20, %s27
      %p55 = scmp.eq.s32.totalorder %s54, 0
      %s57 = sadd.s32 %s56, 1
      %s58 = scalar_select %p55, %s56, %s57
      %p61 = pneg %p55
      %p62 = scmp.eq.s32.totalorder %s20, 1
      %p63 = por %p61, %p62
      %p64 = scmp.ne.s32.totalorder %s56, %s59
      %p65 = scmp.eq.s32.totalorder %s20, 0
      %p66 = por %p64, %p65
      %p67 = scmp.ne.s32.totalorder %s56, %s59
      %p68 = scmp.eq.s32.totalorder %s25, 1
      %p69 = por %p67, %p68
      %p70 = scmp.ne.s32.totalorder %s59, %s60
      %p71 = scmp.eq.s32.totalorder %s25, 0
      %p72 = por %p70, %p71
      %p73 = scmp.ne.s32.totalorder %s59, %s60
      %p74 = scmp.eq.s32.totalorder %s26, 1
      %p75 = por %p73, %p74
      %p77 = scmp.ne.s32.totalorder %s60, %s76
      %p78 = scmp.eq.s32.totalorder %s26, 0
      %p79 = por %p77, %p78
      %s81 = sadd.s32 %s80, 1
      %p84 = scmp.eq.s32.totalorder %s20, 1
      %p85 = scmp.ne.s32.totalorder %s80, %s82
      %p86 = scmp.eq.s32.totalorder %s20, 0
      %p87 = por %p85, %p86
      %p88 = scmp.ne.s32.totalorder %s80, %s82
      %p89 = scmp.eq.s32.totalorder %s25, 1
      %p90 = por %p88, %p89
      %p91 = scmp.ne.s32.totalorder %s82, %s83
      %p92 = scmp.eq.s32.totalorder %s25, 0
      %p93 = por %p91, %p92
      %p94 = scmp.ne.s32.totalorder %s82, %s83
      %p95 = scmp.eq.s32.totalorder %s26, 1
      %p96 = por %p94, %p95
      %p98 = scmp.ne.s32.totalorder %s83, %s97
      %p99 = scmp.eq.s32.totalorder %s26, 0
      %p100 = por %p98, %p99
      %s102 = sadd.s32 %s101, 1
      %p105 = scmp.eq.s32.totalorder %s20, 1
      %p106 = scmp.ne.s32.totalorder %s101, %s103
      %p107 = scmp.eq.s32.totalorder %s20, 0
      %p108 = por %p106, %p107
      %p109 = scmp.ne.s32.totalorder %s101, %s103
      %p110 = scmp.eq.s32.totalorder %s25, 1
      %p111 = por %p109, %p110
      %p112 = scmp.ne.s32.totalorder %s103, %s104
      %p113 = scmp.eq.s32.totalorder %s25, 0
      %p114 = por %p112, %p113
      %p115 = scmp.ne.s32.totalorder %s103, %s104
      %p116 = scmp.eq.s32.totalorder %s26, 1
      %p117 = por %p115, %p116
      %p119 = scmp.ne.s32.totalorder %s104, %s118
      %p120 = scmp.eq.s32.totalorder %s26, 0
      %p121 = por %p119, %p120
      %s123 = sadd.s32 %s122, 1
      %p126 = scmp.eq.s32.totalorder %s20, 1
      %p127 = scmp.ne.s32.totalorder %s122, %s124
      %p128 = scmp.eq.s32.totalorder %s20, 0
      %p129 = por %p127, %p128
      %p130 = scmp.ne.s32.totalorder %s122, %s124
      %p131 = scmp.eq.s32.totalorder %s25, 1
      %p132 = por %p130, %p131
      %p133 = scmp.ne.s32.totalorder %s124, %s125
      %p134 = scmp.eq.s32.totalorder %s25, 0
      %p135 = por %p133, %p134
      %p136 = scmp.ne.s32.totalorder %s124, %s125
      %p137 = scmp.eq.s32.totalorder %s26, 1
      %p138 = por %p136, %p137
      %p140 = scmp.ne.s32.totalorder %s125, %s139
      %p141 = scmp.eq.s32.totalorder %s26, 0
      %p142 = por %p140, %p141
      %s144 = sadd.s32 %s143, 1
      %p147 = scmp.eq.s32.totalorder %s20, 1
      %p148 = scmp.ne.s32.totalorder %s143, %s145
      %p149 = scmp.eq.s32.totalorder %s20, 0
      %p150 = por %p148, %p149
      %p151 = scmp.ne.s32.totalorder %s143, %s145
      %p152 = scmp.eq.s32.totalorder %s25, 1
      %p153 = por %p151, %p152
      %p154 = scmp.ne.s32.totalorder %s145, %s146
      %p155 = scmp.eq.s32.totalorder %s25, 0
      %p156 = por %p154, %p155
      %p157 = scmp.ne.s32.totalorder %s145, %s146
      %p158 = scmp.eq.s32.totalorder %s26, 1
      %p159 = por %p157, %p158
      %p161 = scmp.ne.s32.totalorder %s146, %s160
      %p162 = scmp.eq.s32.totalorder %s26, 0
      %p163 = por %p161, %p162
      %s165 = sadd.s32 %s164, 1
      %p168 = scmp.eq.s32.totalorder %s20, 1
      %p169 = scmp.ne.s32.totalorder %s164, %s166
      %p170 = scmp.eq.s32.totalorder %s20, 0
      %p171 = por %p169, %p170
      %p172 = scmp.ne.s32.totalorder %s164, %s166
      %p173 = scmp.eq.s32.totalorder %s25, 1
      %p174 = por %p172, %p173
      %p175 = scmp.ne.s32.totalorder %s166, %s167
      %p176 = scmp.eq.s32.totalorder %s25, 0
      %p177 = por %p175, %p176
      %p178 = scmp.ne.s32.totalorder %s166, %s167
      %p179 = scmp.eq.s32.totalorder %s26, 1
      %p180 = por %p178, %p179
      %p182 = scmp.ne.s32.totalorder %s167, %s181
      %p183 = scmp.eq.s32.totalorder %s26, 0
      %p184 = por %p182, %p183
      %s186 = sadd.s32 %s185, 1
      %p189 = scmp.eq.s32.totalorder %s20, 1
      %p190 = scmp.ne.s32.totalorder %s185, %s187
      %p191 = scmp.eq.s32.totalorder %s20, 0
      %p192 = por %p190, %p191
      %p193 = scmp.ne.s32.totalorder %s185, %s187
      %p194 = scmp.eq.s32.totalorder %s25, 1
      %p195 = por %p193, %p194
      %p196 = scmp.ne.s32.totalorder %s187, %s188
      %p197 = scmp.eq.s32.totalorder %s25, 0
      %p198 = por %p196, %p197
      %p199 = scmp.ne.s32.totalorder %s187, %s188
      %p200 = scmp.eq.s32.totalorder %s26, 1
      %p201 = por %p199, %p200
      %p203 = scmp.ne.s32.totalorder %s188, %s202
      %p204 = scmp.eq.s32.totalorder %s26, 0
      %p205 = por %p203, %p204
      %s207 = sadd.s32 %s206, 1
      %p210 = scmp.eq.s32.totalorder %s20, 1
      %p211 = scmp.ne.s32.totalorder %s206, %s208
      %p212 = scmp.eq.s32.totalorder %s20, 0
      %p213 = por %p211, %p212
      %p214 = scmp.ne.s32.totalorder %s206, %s208
      %p215 = scmp.eq.s32.totalorder %s25, 1
      %p216 = por %p214, %p215
      %p217 = scmp.ne.s32.totalorder %s208, %s209
      %p218 = scmp.eq.s32.totalorder %s25, 0
      %p219 = por %p217, %p218
      %p220 = scmp.ne.s32.totalorder %s208, %s209
      %p221 = scmp.eq.s32.totalorder %s26, 1
      %p222 = por %p220, %p221
      %p224 = scmp.ne.s32.totalorder %s209, %s223
      %p225 = scmp.eq.s32.totalorder %s26, 0
      %p226 = por %p224, %p225
      %s228 = sadd.s32 %s227, 1
      %p231 = scmp.eq.s32.totalorder %s20, 1
      %p232 = scmp.ne.s32.totalorder %s227, %s229
      %p233 = scmp.eq.s32.totalorder %s20, 0
      %p234 = por %p232, %p233
      %p235 = scmp.ne.s32.totalorder %s227, %s229
      %p236 = scmp.eq.s32.totalorder %s25, 1
      %p237 = por %p235, %p236
      %p238 = scmp.ne.s32.totalorder %s229, %s230
      %p239 = scmp.eq.s32.totalorder %s25, 0
      %p240 = por %p238, %p239
      %p241 = scmp.ne.s32.totalorder %s229, %s230
      %p242 = scmp.eq.s32.totalorder %s26, 1
      %p243 = por %p241, %p242
      %p245 = scmp.ne.s32.totalorder %s230, %s244
      %p246 = scmp.eq.s32.totalorder %s26, 0
      %p247 = por %p245, %p246
      %s249 = sadd.s32 %s248, 1
      %p252 = scmp.eq.s32.totalorder %s20, 1
      %p253 = scmp.ne.s32.totalorder %s248, %s250
      %p254 = scmp.eq.s32.totalorder %s20, 0
      %p255 = por %p253, %p254
      %p256 = scmp.ne.s32.totalorder %s248, %s250
      %p257 = scmp.eq.s32.totalorder %s25, 1
      %p258 = por %p256, %p257
      %p259 = scmp.ne.s32.totalorder %s250, %s251
      %p260 = scmp.eq.s32.totalorder %s25, 0
      %p261 = por %p259, %p260
      %p262 = scmp.ne.s32.totalorder %s250, %s251
      %p263 = scmp.eq.s32.totalorder %s26, 1
      %p264 = por %p262, %p263
      %p266 = scmp.ne.s32.totalorder %s251, %s265
      %p267 = scmp.eq.s32.totalorder %s26, 0
      %p268 = por %p266, %p267
      %s270 = sadd.s32 %s269, 1
      %p273 = scmp.eq.s32.totalorder %s20, 1
      %p274 = scmp.ne.s32.totalorder %s269, %s271
      %p275 = scmp.eq.s32.totalorder %s20, 0
      %p276 = por %p274, %p275
      %p277 = scmp.ne.s32.totalorder %s269, %s271
      %p278 = scmp.eq.s32.totalorder %s25, 1
      %p279 = por %p277, %p278
      %p280 = scmp.ne.s32.totalorder %s271, %s272
      %p281 = scmp.eq.s32.totalorder %s25, 0
      %p282 = por %p280, %p281
      %p283 = scmp.ne.s32.totalorder %s271, %s272
      %p284 = scmp.eq.s32.totalorder %s26, 1
      %p285 = por %p283, %p284
      %p287 = scmp.ne.s32.totalorder %s272, %s286
      %p288 = scmp.eq.s32.totalorder %s26, 0
      %p289 = por %p287, %p288
      %s291 = sadd.s32 %s290, 1
      %p294 = scmp.eq.s32.totalorder %s20, 1
      %p295 = scmp.ne.s32.totalorder %s290, %s292
      %p296 = scmp.eq.s32.totalorder %s20, 0
      %p297 = por %p295, %p296
      %p298 = scmp.ne.s32.totalorder %s290, %s292
      %p299 = scmp.eq.s32.totalorder %s25, 1
      %p300 = por %p298, %p299
      %p301 = scmp.ne.s32.totalorder %s292, %s293
      %p302 = scmp.eq.s32.totalorder %s25, 0
      %p303 = por %p301, %p302
      %p304 = scmp.ne.s32.totalorder %s292, %s293
      %p305 = scmp.eq.s32.totalorder %s26, 1
      %p306 = por %p304, %p305
      %p308 = scmp.ne.s32.totalorder %s293, %s307
      %p309 = scmp.eq.s32.totalorder %s26, 0
      %p310 = por %p308, %p309
      %s311 = ssub.s32 %s20, %s27
      %p312 = scmp.eq.s32.totalorder %s311, 0
      %s314 = sadd.s32 %s313, 1
      %s315 = scalar_select %p312, %s313, %s314
      %p318 = pneg %p312
      %p319 = scmp.eq.s32.totalorder %s20, 1
      %p320 = por %p318, %p319
      %p321 = scmp.ne.s32.totalorder %s313, %s316
      %p322 = scmp.eq.s32.totalorder %s20, 0
      %p323 = por %p321, %p322
      %p324 = scmp.ne.s32.totalorder %s313, %s316
      %p325 = scmp.eq.s32.totalorder %s25, 1
      %p326 = por %p324, %p325
      %p327 = scmp.ne.s32.totalorder %s316, %s317
      %p328 = scmp.eq.s32.totalorder %s25, 0
      %p329 = por %p327, %p328
      %p330 = scmp.ne.s32.totalorder %s316, %s317
      %p331 = scmp.eq.s32.totalorder %s26, 1
      %p332 = por %p330, %p331
      %p334 = scmp.ne.s32.totalorder %s317, %s333
      %p335 = scmp.eq.s32.totalorder %s26, 0
      %p336 = por %p334, %p335
      %p337 = scmp.le.s32.totalorder 1, %s20
      %p338 = scmp.lt.s32.totalorder %s20, 3
      %p339 = pnand %p337, %p338
      %p340 = pneg %p339
      // Predicated region
      $region9: #{my_decoder_layer_forward.1} parent=5 // pred_check
        _
      $region10: #{my_decoder_layer_forward.1} parent=5 // pred_check_branch
        %342 = sbr.rel (%p339) target = $region12
      $region11: #{my_decoder_layer_forward.1} parent=5 // pred_region
        %s343 = ssub.s32 %s20, 1
        // Predicated region
        $region13: #{my_decoder_layer_forward.1} parent=11 // pred_check
          %p344 = pneg %p93
        $region14: #{my_decoder_layer_forward.1} parent=11 // pred_check_branch
          %346 = sbr.rel (%p344) target = $region16
        $region15: #{my_decoder_layer_forward.1} parent=11 // pred_region
          _
        $region16: #{my_decoder_layer_forward.1} parent=11 // pred_fallthru
          _
        // Predicated region
        $region17: #{my_decoder_layer_forward.1} parent=11 // pred_check
          %p347 = pneg %p114
        $region18: #{my_decoder_layer_forward.1} parent=11 // pred_check_branch
          %349 = sbr.rel (%p347) target = $region20
        $region19: #{my_decoder_layer_forward.1} parent=11 // pred_region
          _
        $region20: #{my_decoder_layer_forward.1} parent=11 // pred_fallthru
          _
        // Predicated region
        $region21: #{my_decoder_layer_forward.1} parent=11 // pred_check
          %p350 = pneg %p135
        $region22: #{my_decoder_layer_forward.1} parent=11 // pred_check_branch
          %352 = sbr.rel (%p350) target = $region24
        $region23: #{my_decoder_layer_forward.1} parent=11 // pred_region
          _
        $region24: #{my_decoder_layer_forward.1} parent=11 // pred_fallthru
          _
        // Predicated region
        $region25: #{my_decoder_layer_forward.1} parent=11 // pred_check
          %p353 = pneg %p156
        $region26: #{my_decoder_layer_forward.1} parent=11 // pred_check_branch
          %355 = sbr.rel (%p353) target = $region28
        $region27: #{my_decoder_layer_forward.1} parent=11 // pred_region
          _
        $region28: #{my_decoder_layer_forward.1} parent=11 // pred_fallthru
          _
        // Predicated region
        $region29: #{my_decoder_layer_forward.1} parent=11 // pred_check
          %p356 = pneg %p177
        $region30: #{my_decoder_layer_forward.1} parent=11 // pred_check_branch
          %358 = sbr.rel (%p356) target = $region32
        $region31: #{my_decoder_layer_forward.1} parent=11 // pred_region
          _
        $region32: #{my_decoder_layer_forward.1} parent=11 // pred_fallthru
          _
        // Predicated region
        $region33: #{my_decoder_layer_forward.1} parent=11 // pred_check
          %p359 = pneg %p198
        $region34: #{my_decoder_layer_forward.1} parent=11 // pred_check_branch
          %361 = sbr.rel (%p359) target = $region36
        $region35: #{my_decoder_layer_forward.1} parent=11 // pred_region
          _
        $region36: #{my_decoder_layer_forward.1} parent=11 // pred_fallthru
          _
        // Predicated region
        $region37: #{my_decoder_layer_forward.1} parent=11 // pred_check
          %p362 = pneg %p219
        $region38: #{my_decoder_layer_forward.1} parent=11 // pred_check_branch
          %364 = sbr.rel (%p362) target = $region40
        $region39: #{my_decoder_layer_forward.1} parent=11 // pred_region
          _
        $region40: #{my_decoder_layer_forward.1} parent=11 // pred_fallthru
          _
        // Predicated region
        $region41: #{my_decoder_layer_forward.1} parent=11 // pred_check
          %p365 = pneg %p240
        $region42: #{my_decoder_layer_forward.1} parent=11 // pred_check_branch
          %367 = sbr.rel (%p365) target = $region44
        $region43: #{my_decoder_layer_forward.1} parent=11 // pred_region
          _
        $region44: #{my_decoder_layer_forward.1} parent=11 // pred_fallthru
          _
        // Predicated region
        $region45: #{my_decoder_layer_forward.1} parent=11 // pred_check
          %p368 = pneg %p261
        $region46: #{my_decoder_layer_forward.1} parent=11 // pred_check_branch
          %370 = sbr.rel (%p368) target = $region48
        $region47: #{my_decoder_layer_forward.1} parent=11 // pred_region
          _
        $region48: #{my_decoder_layer_forward.1} parent=11 // pred_fallthru
          _
        // Predicated region
        $region49: #{my_decoder_layer_forward.1} parent=11 // pred_check
          %p371 = pneg %p282
        $region50: #{my_decoder_layer_forward.1} parent=11 // pred_check_branch
          %373 = sbr.rel (%p371) target = $region52
        $region51: #{my_decoder_layer_forward.1} parent=11 // pred_region
          %375 = vsyncadd [#allocation3], 0
          %s376 = sshll.u32 %s11, 4
          %s377 = int_to_ptr.hbm [resolvable:$true] %s376
          %s378 = sshll.u32 [#allocation2], 4
          %s379 = int_to_ptr.vmem [resolvable:$true] %s378
          %384 = dma.hbm_to_vmem [thread:$0]  %s377, 256, %s379, [#allocation3], 64, 64, 4
        $region52: #{my_decoder_layer_forward.1} parent=11 // pred_fallthru
          _
        // Predicated region
        $region53: #{my_decoder_layer_forward.1} parent=11 // pred_check
          %p385 = pneg %p303
        $region54: #{my_decoder_layer_forward.1} parent=11 // pred_check_branch
          %387 = sbr.rel (%p385) target = $region56
        $region55: #{my_decoder_layer_forward.1} parent=11 // pred_region
          _
        $region56: #{my_decoder_layer_forward.1} parent=11 // pred_fallthru
          _
      $region12: #{my_decoder_layer_forward.1} parent=5 // pred_fallthru
        _
      %p388 = scmp.lt.s32.totalorder %s20, 2
      // Predicated region
      $region57: #{my_decoder_layer_forward.1} parent=5 // pred_check
        %p389 = pneg %p388
      $region58: #{my_decoder_layer_forward.1} parent=5 // pred_check_branch
        %391 = sbr.rel (%p389) target = $region60
      $region59: #{my_decoder_layer_forward.1} parent=5 // pred_region
        // Predicated region
        $region61: #{my_decoder_layer_forward.1} parent=59 // pred_check
          %p392 = pneg %p40
        $region62: #{my_decoder_layer_forward.1} parent=59 // pred_check_branch
          %394 = sbr.rel (%p392) target = $region64
        $region63: #{my_decoder_layer_forward.1} parent=59 // pred_region
          %p395 = scmp.lt.s32.totalorder %s20, 1
          %s396 = scalar_select %p395, %s20, 1
          %s397 = smul.addr %s396, 8
          %s398 = smul.addr %s397, 8
          %s399 = scalar_lea.vmem %s0, %s398
        $region64: #{my_decoder_layer_forward.1} parent=59 // pred_fallthru
          _
        // Predicated region
        $region65: #{my_decoder_layer_forward.1} parent=59 // pred_check
          %p400 = pneg %p66
        $region66: #{my_decoder_layer_forward.1} parent=59 // pred_check_branch
          %402 = sbr.rel (%p400) target = $region68
        $region67: #{my_decoder_layer_forward.1} parent=59 // pred_region
          %p403 = scmp.lt.s32.totalorder %s20, 1
          %s404 = scalar_select %p403, %s20, 1
          %s405 = smul.addr %s404, 8
          %s406 = smul.addr %s405, 8
          %s407 = scalar_lea.vmem %s1, %s406
        $region68: #{my_decoder_layer_forward.1} parent=59 // pred_fallthru
          _
      $region60: #{my_decoder_layer_forward.1} parent=5 // pred_fallthru
        _
      %p408 = scmp.le.s32.totalorder 1, %s20
      %p409 = scmp.lt.s32.totalorder %s20, 3
      %p410 = pnand %p408, %p409
      %p411 = pneg %p410
      // Predicated region
      $region69: #{my_decoder_layer_forward.1} parent=5 // pred_check
        _
      $region70: #{my_decoder_layer_forward.1} parent=5 // pred_check_branch
        %413 = sbr.rel (%p410) target = $region72
      $region71: #{my_decoder_layer_forward.1} parent=5 // pred_region
        %s414 = ssub.s32 %s20, 1
        // Predicated region
        $region73: #{my_decoder_layer_forward.1} parent=71 // pred_check
          %p415 = pneg %p282
        $region74: #{my_decoder_layer_forward.1} parent=71 // pred_check_branch
          %417 = sbr.rel (%p415) target = $region76
        $region75: #{my_decoder_layer_forward.1} parent=71 // pred_region
          %419 = dma.done [#allocation3], 256
        $region76: #{my_decoder_layer_forward.1} parent=71 // pred_fallthru
          _
        %p420 = scmp.lt.s32.totalorder %s25, 1
        %s421 = scalar_select %p420, %s25, 1
        %s422 = smul.addr %s421, 8
        %s423 = smul.addr %s422, 8
        %s424 = scalar_lea.vmem %s0, %s423
        %p425 = pneg %p46
        %p426 = pneg %p43
        %p427 = scmp.lt.s32.totalorder %s25, 1
        %s428 = scalar_select %p427, %s25, 1
        %s429 = smul.addr %s428, 8
        %s430 = smul.addr %s429, 8
        %s431 = scalar_lea.vmem %s1, %s430
        %p432 = pneg %p72
        %p433 = pneg %p69
        %p434 = pneg %p93
        %p435 = pneg %p90
        %p436 = pneg %p114
        %p437 = pneg %p111
        %p438 = pneg %p135
        %p439 = pneg %p132
        %p440 = pneg %p156
        %p441 = pneg %p153
        %p442 = pneg %p177
        %p443 = pneg %p174
        %p444 = pneg %p198
        %p445 = pneg %p195
        %p446 = pneg %p219
        %p447 = pneg %p216
        %p448 = pneg %p240
        %p449 = pneg %p237
        %p450 = pneg %p261
        %p451 = pneg %p258
        %p452 = pneg %p282
        %p453 = pneg %p279
        %p454 = pneg %p303
        %p455 = pneg %p300
        %p456 = pneg %p329
        %p457 = pneg %p326
        %p458 = scmp.lt.s32.totalorder %s25, 1
        %s459 = scalar_select %p458, %s25, 1
        %s460 = smul.addr %s459, 8
        %s461 = smul.addr %s460, 8
        %s462 = scalar_lea.vmem %s13, %s461
        %p463 = scmp.lt.s32.totalorder %s25, 1
        %s464 = scalar_select %p463, %s25, 1
        %s465 = smul.addr %s464, 8
        %s466 = smul.addr %s465, 8
        %s467 = scalar_lea.vmem %s0, %s466
        %p468 = scmp.lt.s32.totalorder %s25, 1
        %s469 = scalar_select %p468, %s25, 1
        %s470 = smul.addr %s469, 8
        %s471 = smul.addr %s470, 8
        %s472 = scalar_lea.vmem %s1, %s471
        %p473 = scmp.lt.s32.totalorder %s25, 1
        %s474 = scalar_select %p473, %s25, 1
        %s475 = smul.addr %s474, 8
        %s476 = smul.addr %s475, 8
        %s477 = scalar_lea.vmem %s13, %s476
        %v479 = vld [vmem:[%s12] sm:$0xff]
        %v480 = vld [vmem:[%s12 + $0x8] sm:$0xff]
        %v481 = vld [vmem:[%s12 + $0x10] sm:$0x7]
        %v482 = vld [vmem:[%s467] sm:$0xff]
        %v483 = vld [vmem:[%s467 + $0x8] sm:$0xff]
        %v484 = vld [vmem:[%s467 + $0x10] sm:$0xff]
        %v485 = vld [vmem:[%s467 + $0x18] sm:$0xff]
        %v486 = vld [vmem:[%s467 + $0x20] sm:$0xff]
        %v487 = vld [vmem:[%s467 + $0x28] sm:$0xff]
        %v488 = vld [vmem:[%s467 + $0x30] sm:$0xff]
        %v489 = vld [vmem:[%s467 + $0x38] sm:$0xff]
        %v490 = vpack.c.bf16 %v483, %v482
        %v491 = vpack.c.bf16 %v485, %v484
        %v492 = vpack.c.bf16 %v487, %v486
        %v493 = vpack.c.bf16 %v489, %v488
        %v494 = vld [vmem:[%s472] sm:$0xff]
        %v495 = vld [vmem:[%s472 + $0x8] sm:$0xff]
        %v496 = vld [vmem:[%s472 + $0x10] sm:$0xff]
        %v497 = vld [vmem:[%s472 + $0x18] sm:$0xff]
        %v498 = vld [vmem:[%s472 + $0x20] sm:$0xff]
        %v499 = vld [vmem:[%s472 + $0x28] sm:$0xff]
        %v500 = vld [vmem:[%s472 + $0x30] sm:$0xff]
        %v501 = vld [vmem:[%s472 + $0x38] sm:$0xff]
        %v502 = vpack.c.bf16 %v495, %v494
        %v503 = vpack.c.bf16 %v497, %v496
        %v504 = vpack.c.bf16 %v499, %v498
        %v505 = vpack.c.bf16 %v501, %v500
        %v506 = vld [vmem:[%s2] sm:$0xf]
        %v507 = vld [vmem:[%s2 + $0x4] sm:$0xf]
        %s508 = scalar_lea.vmem %s2, 8
        %v509 = vld [vmem:[%s508] sm:$0xf]
        %v510 = vld [vmem:[%s508 + $0x4] sm:$0xf]
        %v513 = vunpack.c.l.b16 %v509
        %v514 = vunpack.c.l.b16 %v510
        %v515 = vpack.c.b16 %v514, %v513
        %vm517 = vcmask 130048
        %v519 = vsel %vm517, %v502, 0
        %v522 = vsel %vm517, %v503, 0
        %v525 = vsel %vm517, %v504, 0
        %v528 = vsel %vm517, %v505, 0
        %530 = vmatpush.bf16.msra.mxu0 0
        %531 = vmatpush.bf16.msra.mxu0 0
        %532 = vmatpush.bf16.msra.mxu0 0
        %533 = vmatpush.bf16.msra.mxu0 0
        %534 = vmatpush.bf16.msra.mxu0 0
        %535 = vmatpush.bf16.msra.mxu0 0
        %536 = vmatpush.bf16.msra.mxu0 0
        %537 = vmatpush.bf16.msra.mxu0 %v515
        %538 = vmatmul.bf16.gmra.mxu0 %v519
        %v539 = vpop.f32.mrf.mxu0
        %v540 = vadd.f32 0.0, %v539
        %v541 = vpop.f32.mrf.mxu0
        %v542 = vadd.f32 0.0, %v541
        %543 = vmatmul.bf16.gmra.mxu0 %v522
        %v544 = vpop.f32.mrf.mxu0
        %v545 = vadd.f32 0.0, %v544
        %v546 = vpop.f32.mrf.mxu0
        %v547 = vadd.f32 0.0, %v546
        %548 = vmatmul.bf16.gmra.mxu0 %v525
        %v549 = vpop.f32.mrf.mxu0
        %v550 = vadd.f32 0.0, %v549
        %v551 = vpop.f32.mrf.mxu0
        %v552 = vadd.f32 0.0, %v551
        %553 = vmatmul.bf16.gmra.mxu0 %v528
        %v554 = vpop.f32.mrf.mxu0
        %v555 = vadd.f32 0.0, %v554
        %v556 = vpop.f32.mrf.mxu0
        %v557 = vadd.f32 0.0, %v556
        %558 = vdwg.mxu0
        %v561 = vunpack.c.l.b16 %v506
        %v562 = vunpack.c.l.b16 %v507
        %v563 = vpack.c.b16 %v562, %v561
        %v566 = vsel %vm517, %v490, 0
        %v569 = vsel %vm517, %v491, 0
        %v572 = vsel %vm517, %v492, 0
        %v575 = vsel %vm517, %v493, 0
        %577 = vmatpush.bf16.msra.mxu0 0
        %578 = vmatpush.bf16.msra.mxu0 0
        %579 = vmatpush.bf16.msra.mxu0 0
        %580 = vmatpush.bf16.msra.mxu0 0
        %581 = vmatpush.bf16.msra.mxu0 0
        %582 = vmatpush.bf16.msra.mxu0 0
        %583 = vmatpush.bf16.msra.mxu0 0
        %584 = vmatpush.bf16.msra.mxu0 %v563
        %585 = vmatmul.bf16.gmra.mxu0 %v566
        %v586 = vpop.f32.mrf.mxu0
        %v587 = vadd.f32 %v540, %v586
        %v588 = vpop.f32.mrf.mxu0
        %v589 = vadd.f32 %v542, %v588
        %590 = vmatmul.bf16.gmra.mxu0 %v569
        %v591 = vpop.f32.mrf.mxu0
        %v592 = vadd.f32 %v545, %v591
        %v593 = vpop.f32.mrf.mxu0
        %v594 = vadd.f32 %v547, %v593
        %595 = vmatmul.bf16.gmra.mxu0 %v572
        %v596 = vpop.f32.mrf.mxu0
        %v597 = vadd.f32 %v550, %v596
        %v598 = vpop.f32.mrf.mxu0
        %v599 = vadd.f32 %v552, %v598
        %600 = vmatmul.bf16.gmra.mxu0 %v575
        %v601 = vpop.f32.mrf.mxu0
        %v602 = vadd.f32 %v555, %v601
        %v603 = vpop.f32.mrf.mxu0
        %v604 = vadd.f32 %v557, %v603
        %605 = vdwg.mxu0
        %v606 = vperm.slane %v479, 0
        %v607 = vadd.f32 %v587, %v606
        %v608 = vadd.f32 %v589, %v606
        %v609 = vadd.f32 %v592, %v606
        %v610 = vadd.f32 %v594, %v606
        %v611 = vadd.f32 %v597, %v606
        %v612 = vadd.f32 %v599, %v606
        %v613 = vadd.f32 %v602, %v606
        %v614 = vadd.f32 %v604, %v606
        %vm615 = vcmask 261120
        %v616 = vsel %vm615, %v607, 0.0
        %617 = vadd.xlane.f32.xlu0 %v616
        %v618 = vpop.xlane.xlu0 %617
        %v619 = vsel %vm615, %v608, 0.0
        %620 = vadd.xlane.f32.xlu0 %v619
        %v621 = vpop.xlane.xlu0 %620
        %v622 = vsel %vm615, %v609, 0.0
        %623 = vadd.xlane.f32.xlu0 %v622
        %v624 = vpop.xlane.xlu0 %623
        %v625 = vsel %vm615, %v610, 0.0
        %626 = vadd.xlane.f32.xlu0 %v625
        %v627 = vpop.xlane.xlu0 %626
        %v628 = vsel %vm615, %v611, 0.0
        %629 = vadd.xlane.f32.xlu0 %v628
        %v630 = vpop.xlane.xlu0 %629
        %v631 = vsel %vm615, %v612, 0.0
        %632 = vadd.xlane.f32.xlu0 %v631
        %v633 = vpop.xlane.xlu0 %632
        %v634 = vsel %vm615, %v613, 0.0
        %635 = vadd.xlane.f32.xlu0 %v634
        %v636 = vpop.xlane.xlu0 %635
        %v637 = vsel %vm615, %v614, 0.0
        %638 = vadd.xlane.f32.xlu0 %v637
        %v639 = vpop.xlane.xlu0 %638
        %v640 = vrcp.pop 32.0
        %v641 = vmul.f32 32.0, %v640
        %v642 = vsub.f32 1.0, %v641
        %v643 = vmul.f32 %v640, %v642
        %v644 = vadd.f32 %v640, %v643
        %vm645 = vweird.f32 %v640
        %v646 = vsel %vm645, %v640, %v644
        %v647 = vmul.f32 %v618, %v646
        %v648 = vmul.f32 %v621, %v646
        %v649 = vmul.f32 %v624, %v646
        %v650 = vmul.f32 %v627, %v646
        %v651 = vmul.f32 %v630, %v646
        %v652 = vmul.f32 %v633, %v646
        %v653 = vmul.f32 %v636, %v646
        %v654 = vmul.f32 %v639, %v646
        %v655 = vsub.f32 %v607, %v647
        %v656 = vsub.f32 %v608, %v648
        %v657 = vsub.f32 %v609, %v649
        %v658 = vsub.f32 %v610, %v650
        %v659 = vsub.f32 %v611, %v651
        %v660 = vsub.f32 %v612, %v652
        %v661 = vsub.f32 %v613, %v653
        %v662 = vsub.f32 %v614, %v654
        %v663 = vmul.f32 %v655, %v655
        %v664 = vmul.f32 %v656, %v656
        %v665 = vmul.f32 %v657, %v657
        %v666 = vmul.f32 %v658, %v658
        %v667 = vmul.f32 %v659, %v659
        %v668 = vmul.f32 %v660, %v660
        %v669 = vmul.f32 %v661, %v661
        %v670 = vmul.f32 %v662, %v662
        %v671 = vsel %vm615, %v663, 0.0
        %672 = vadd.xlane.f32.xlu0 %v671
        %v673 = vpop.xlane.xlu0 %672
        %v674 = vsel %vm615, %v664, 0.0
        %675 = vadd.xlane.f32.xlu0 %v674
        %v676 = vpop.xlane.xlu0 %675
        %v677 = vsel %vm615, %v665, 0.0
        %678 = vadd.xlane.f32.xlu0 %v677
        %v679 = vpop.xlane.xlu0 %678
        %v680 = vsel %vm615, %v666, 0.0
        %681 = vadd.xlane.f32.xlu0 %v680
        %v682 = vpop.xlane.xlu0 %681
        %v683 = vsel %vm615, %v667, 0.0
        %684 = vadd.xlane.f32.xlu0 %v683
        %v685 = vpop.xlane.xlu0 %684
        %v686 = vsel %vm615, %v668, 0.0
        %687 = vadd.xlane.f32.xlu0 %v686
        %v688 = vpop.xlane.xlu0 %687
        %v689 = vsel %vm615, %v669, 0.0
        %690 = vadd.xlane.f32.xlu0 %v689
        %v691 = vpop.xlane.xlu0 %690
        %v692 = vsel %vm615, %v670, 0.0
        %693 = vadd.xlane.f32.xlu0 %v692
        %v694 = vpop.xlane.xlu0 %693
        %v695 = vmul.f32 %v673, %v646
        %v696 = vmul.f32 %v676, %v646
        %v697 = vmul.f32 %v679, %v646
        %v698 = vmul.f32 %v682, %v646
        %v699 = vmul.f32 %v685, %v646
        %v700 = vmul.f32 %v688, %v646
        %v701 = vmul.f32 %v691, %v646
        %v702 = vmul.f32 %v694, %v646
        %v703 = vadd.f32 %v695, 1e-05
        %v704 = vadd.f32 %v696, 1e-05
        %v705 = vadd.f32 %v697, 1e-05
        %v706 = vadd.f32 %v698, 1e-05
        %v707 = vadd.f32 %v699, 1e-05
        %v708 = vadd.f32 %v700, 1e-05
        %v709 = vadd.f32 %v701, 1e-05
        %v710 = vadd.f32 %v702, 1e-05
        %v711 = vrsqrt.pop %v703
        %v712 = vmul.f32 %v711, %v703
        %v713 = vmul.f32 %v712, %v711
        %v714 = vmul.f32 0.5, %v713
        %v715 = vsub.f32 1.5, %v714
        %v716 = vmul.f32 %v711, %v715
        %vm717 = vweird.f32 %v703
        %vm718 = vweird.f32 %v711
        %vm719 = vmor %vm717, %vm718
        %v720 = vsel %vm719, %v711, %v716
        %v721 = vrsqrt.pop %v704
        %v722 = vmul.f32 %v721, %v704
        %v723 = vmul.f32 %v722, %v721
        %v724 = vmul.f32 0.5, %v723
        %v725 = vsub.f32 1.5, %v724
        %v726 = vmul.f32 %v721, %v725
        %vm727 = vweird.f32 %v704
        %vm728 = vweird.f32 %v721
        %vm729 = vmor %vm727, %vm728
        %v730 = vsel %vm729, %v721, %v726
        %v731 = vrsqrt.pop %v705
        %v732 = vmul.f32 %v731, %v705
        %v733 = vmul.f32 %v732, %v731
        %v734 = vmul.f32 0.5, %v733
        %v735 = vsub.f32 1.5, %v734
        %v736 = vmul.f32 %v731, %v735
        %vm737 = vweird.f32 %v705
        %vm738 = vweird.f32 %v731
        %vm739 = vmor %vm737, %vm738
        %v740 = vsel %vm739, %v731, %v736
        %v741 = vrsqrt.pop %v706
        %v742 = vmul.f32 %v741, %v706
        %v743 = vmul.f32 %v742, %v741
        %v744 = vmul.f32 0.5, %v743
        %v745 = vsub.f32 1.5, %v744
        %v746 = vmul.f32 %v741, %v745
        %vm747 = vweird.f32 %v706
        %vm748 = vweird.f32 %v741
        %vm749 = vmor %vm747, %vm748
        %v750 = vsel %vm749, %v741, %v746
        %v751 = vrsqrt.pop %v707
        %v752 = vmul.f32 %v751, %v707
        %v753 = vmul.f32 %v752, %v751
        %v754 = vmul.f32 0.5, %v753
        %v755 = vsub.f32 1.5, %v754
        %v756 = vmul.f32 %v751, %v755
        %vm757 = vweird.f32 %v707
        %vm758 = vweird.f32 %v751
        %vm759 = vmor %vm757, %vm758
        %v760 = vsel %vm759, %v751, %v756
        %v761 = vrsqrt.pop %v708
        %v762 = vmul.f32 %v761, %v708
        %v763 = vmul.f32 %v762, %v761
        %v764 = vmul.f32 0.5, %v763
        %v765 = vsub.f32 1.5, %v764
        %v766 = vmul.f32 %v761, %v765
        %vm767 = vweird.f32 %v708
        %vm768 = vweird.f32 %v761
        %vm769 = vmor %vm767, %vm768
        %v770 = vsel %vm769, %v761, %v766
        %v771 = vrsqrt.pop %v709
        %v772 = vmul.f32 %v771, %v709
        %v773 = vmul.f32 %v772, %v771
        %v774 = vmul.f32 0.5, %v773
        %v775 = vsub.f32 1.5, %v774
        %v776 = vmul.f32 %v771, %v775
        %vm777 = vweird.f32 %v709
        %vm778 = vweird.f32 %v771
        %vm779 = vmor %vm777, %vm778
        %v780 = vsel %vm779, %v771, %v776
        %v781 = vrsqrt.pop %v710
        %v782 = vmul.f32 %v781, %v710
        %v783 = vmul.f32 %v782, %v781
        %v784 = vmul.f32 0.5, %v783
        %v785 = vsub.f32 1.5, %v784
        %v786 = vmul.f32 %v781, %v785
        %vm787 = vweird.f32 %v710
        %vm788 = vweird.f32 %v781
        %vm789 = vmor %vm787, %vm788
        %v790 = vsel %vm789, %v781, %v786
        %v791 = vmul.f32 %v655, %v720
        %v792 = vmul.f32 %v656, %v730
        %v793 = vmul.f32 %v657, %v740
        %v794 = vmul.f32 %v658, %v750
        %v795 = vmul.f32 %v659, %v760
        %v796 = vmul.f32 %v660, %v770
        %v797 = vmul.f32 %v661, %v780
        %v798 = vmul.f32 %v662, %v790
        %v799 = vperm.slane %v479, 1
        %v800 = vmul.f32 %v791, %v799
        %v801 = vmul.f32 %v792, %v799
        %v802 = vmul.f32 %v793, %v799
        %v803 = vmul.f32 %v794, %v799
        %v804 = vmul.f32 %v795, %v799
        %v805 = vmul.f32 %v796, %v799
        %v806 = vmul.f32 %v797, %v799
        %v807 = vmul.f32 %v798, %v799
        %v808 = vperm.slane %v479, 2
        %v809 = vadd.f32 %v800, %v808
        %v810 = vadd.f32 %v801, %v808
        %v811 = vadd.f32 %v802, %v808
        %v812 = vadd.f32 %v803, %v808
        %v813 = vadd.f32 %v804, %v808
        %v814 = vadd.f32 %v805, %v808
        %v815 = vadd.f32 %v806, %v808
        %v816 = vadd.f32 %v807, %v808
        %v817 = vpack.c.bf16 %v810, %v809
        %v818 = vpack.c.bf16 %v812, %v811
        %v819 = vpack.c.bf16 %v814, %v813
        %v820 = vpack.c.bf16 %v816, %v815
        %v821 = vld [vmem:[%s3] sm:$0xf]
        %v822 = vld [vmem:[%s3 + $0x4] sm:$0xf]
        %v823 = vld [vmem:[%s3 + $0x8] sm:$0xf]
        %v824 = vld [vmem:[%s3 + $0xc] sm:$0xf]
        %v825 = vperm.slane %v479, 7
        %v830 = vunpack.c.l.b16 %v821
        %v831 = vunpack.c.l.b16 %v822
        %v832 = vunpack.c.l.b16 %v823
        %v833 = vunpack.c.l.b16 %v824
        %v834 = vpack.c.b16 %v831, %v830
        %v835 = vpack.c.b16 %v833, %v832
        %v839 = vsel %vm615, %v817, 0
        %v842 = vsel %vm615, %v818, 0
        %v845 = vsel %vm615, %v819, 0
        %v848 = vsel %vm615, %v820, 0
        %850 = vmatpush.bf16.msra.mxu0 0
        %851 = vmatpush.bf16.msra.mxu0 0
        %852 = vmatpush.bf16.msra.mxu0 0
        %853 = vmatpush.bf16.msra.mxu0 0
        %854 = vmatpush.bf16.msra.mxu0 0
        %855 = vmatpush.bf16.msra.mxu0 0
        %856 = vmatpush.bf16.msra.mxu0 %v835
        %857 = vmatpush.bf16.msra.mxu0 %v834
        %858 = vmatmul.bf16.gmra.mxu0 %v839
        %v859 = vpop.f32.mrf.mxu0
        %v860 = vadd.f32 %v825, %v859
        %v861 = vpop.f32.mrf.mxu0
        %v862 = vadd.f32 %v825, %v861
        %863 = vmatmul.bf16.gmra.mxu0 %v842
        %v864 = vpop.f32.mrf.mxu0
        %v865 = vadd.f32 %v825, %v864
        %v866 = vpop.f32.mrf.mxu0
        %v867 = vadd.f32 %v825, %v866
        %868 = vmatmul.bf16.gmra.mxu0 %v845
        %v869 = vpop.f32.mrf.mxu0
        %v870 = vadd.f32 %v825, %v869
        %v871 = vpop.f32.mrf.mxu0
        %v872 = vadd.f32 %v825, %v871
        %873 = vmatmul.bf16.gmra.mxu0 %v848
        %v874 = vpop.f32.mrf.mxu0
        %v875 = vadd.f32 %v825, %v874
        %v876 = vpop.f32.mrf.mxu0
        %v877 = vadd.f32 %v825, %v876
        %878 = vdwg.mxu0
        %v879 = vsel %vm615, %v860, -inf
        %v880 = vsel %vm615, %v862, -inf
        %v881 = vsel %vm615, %v865, -inf
        %v882 = vsel %vm615, %v867, -inf
        %v883 = vsel %vm615, %v870, -inf
        %v884 = vmax.f32 %v879, %v883
        %v885 = vsel %vm615, %v872, -inf
        %v886 = vmax.f32 %v880, %v885
        %v887 = vsel %vm615, %v875, -inf
        %v888 = vmax.f32 %v881, %v887
        %v889 = vsel %vm615, %v877, -inf
        %v890 = vmax.f32 %v882, %v889
        %v891 = vmax.f32 %v884, %v886
        %v892 = vmax.f32 %v888, %v890
        %v893 = vmax.f32 %v891, %v892
        %v894 = vrot.slane %v893, 4
        %v895 = vmax.f32 %v893, %v894
        %v896 = vrot.slane %v895, 2
        %v897 = vmax.f32 %v895, %v896
        %v898 = vrot.slane %v897, 1
        %v899 = vmax.f32 %v897, %v898
        %v900 = vsub.f32 %v860, %v899
        %v901 = vsub.f32 %v862, %v899
        %v902 = vsub.f32 %v865, %v899
        %v903 = vsub.f32 %v867, %v899
        %v904 = vsub.f32 %v870, %v899
        %v905 = vsub.f32 %v872, %v899
        %v906 = vsub.f32 %v875, %v899
        %v907 = vsub.f32 %v877, %v899
        %v908 = vmul.f32 %v900, 1.442695
        %v909 = vpow.pop %v908
        %v910 = vmul.f32 %v901, 1.442695
        %v911 = vpow.pop %v910
        %v912 = vmul.f32 %v902, 1.442695
        %v913 = vpow.pop %v912
        %v914 = vmul.f32 %v903, 1.442695
        %v915 = vpow.pop %v914
        %v916 = vmul.f32 %v904, 1.442695
        %v917 = vpow.pop %v916
        %v918 = vmul.f32 %v905, 1.442695
        %v919 = vpow.pop %v918
        %v920 = vmul.f32 %v906, 1.442695
        %v921 = vpow.pop %v920
        %v922 = vmul.f32 %v907, 1.442695
        %v923 = vpow.pop %v922
        %v924 = vsel %vm615, %v909, 0.0
        %v925 = vsel %vm615, %v911, 0.0
        %v926 = vadd.f32 %v924, %v925
        %v927 = vsel %vm615, %v913, 0.0
        %v928 = vadd.f32 %v926, %v927
        %v929 = vsel %vm615, %v915, 0.0
        %v930 = vadd.f32 %v928, %v929
        %v931 = vsel %vm615, %v917, 0.0
        %v932 = vadd.f32 %v930, %v931
        %v933 = vsel %vm615, %v919, 0.0
        %v934 = vadd.f32 %v932, %v933
        %v935 = vsel %vm615, %v921, 0.0
        %v936 = vadd.f32 %v934, %v935
        %v937 = vsel %vm615, %v923, 0.0
        %v938 = vadd.f32 %v936, %v937
        %v939 = vrot.slane %v938, 4
        %v940 = vadd.f32 %v938, %v939
        %v941 = vrot.slane %v940, 2
        %v942 = vadd.f32 %v940, %v941
        %v943 = vrot.slane %v942, 1
        %v944 = vadd.f32 %v942, %v943
        %v945 = vrcp.pop %v944
        %v946 = vmul.f32 %v909, %v945
        %v947 = vmul.f32 %v911, %v945
        %v948 = vmul.f32 %v913, %v945
        %v949 = vmul.f32 %v915, %v945
        %v950 = vmul.f32 %v917, %v945
        %v951 = vmul.f32 %v919, %v945
        %v952 = vmul.f32 %v921, %v945
        %v953 = vmul.f32 %v923, %v945
        %vm954 = vcmask 523520
        %v955 = vsel %vm954, %v860, -inf
        %956 = vmax.xlane.f32.xlu0 %v955
        %v957 = vpop.xlane.xlu0 %956
        %v958 = vsel %vm954, %v862, -inf
        %959 = vmax.xlane.f32.xlu0 %v958
        %v960 = vpop.xlane.xlu0 %959
        %v961 = vsel %vm954, %v865, -inf
        %962 = vmax.xlane.f32.xlu0 %v961
        %v963 = vpop.xlane.xlu0 %962
        %v964 = vsel %vm954, %v867, -inf
        %965 = vmax.xlane.f32.xlu0 %v964
        %v966 = vpop.xlane.xlu0 %965
        %v967 = vsel %vm954, %v870, -inf
        %968 = vmax.xlane.f32.xlu0 %v967
        %v969 = vpop.xlane.xlu0 %968
        %v970 = vsel %vm954, %v872, -inf
        %971 = vmax.xlane.f32.xlu0 %v970
        %v972 = vpop.xlane.xlu0 %971
        %v973 = vsel %vm954, %v875, -inf
        %974 = vmax.xlane.f32.xlu0 %v973
        %v975 = vpop.xlane.xlu0 %974
        %v976 = vsel %vm954, %v877, -inf
        %977 = vmax.xlane.f32.xlu0 %v976
        %v978 = vpop.xlane.xlu0 %977
        %v979 = vsub.f32 %v860, %v957
        %v980 = vsub.f32 %v862, %v960
        %v981 = vsub.f32 %v865, %v963
        %v982 = vsub.f32 %v867, %v966
        %v983 = vsub.f32 %v870, %v969
        %v984 = vsub.f32 %v872, %v972
        %v985 = vsub.f32 %v875, %v975
        %v986 = vsub.f32 %v877, %v978
        %v987 = vmul.f32 %v979, 1.442695
        %v988 = vpow.pop %v987
        %v989 = vmul.f32 %v980, 1.442695
        %v990 = vpow.pop %v989
        %v991 = vmul.f32 %v981, 1.442695
        %v992 = vpow.pop %v991
        %v993 = vmul.f32 %v982, 1.442695
        %v994 = vpow.pop %v993
        %v995 = vmul.f32 %v983, 1.442695
        %v996 = vpow.pop %v995
        %v997 = vmul.f32 %v984, 1.442695
        %v998 = vpow.pop %v997
        %v999 = vmul.f32 %v985, 1.442695
        %v1000 = vpow.pop %v999
        %v1001 = vmul.f32 %v986, 1.442695
        %v1002 = vpow.pop %v1001
        %1011 = vrot.lane.b32.xlu0 %v988, 96
        %v1012 = vpop.permute.xlu0 %1011
        %1013 = vrot.lane.b32.xlu0 %v990, 96
        %v1014 = vpop.permute.xlu0 %1013
        %1015 = vrot.lane.b32.xlu0 %v992, 96
        %v1016 = vpop.permute.xlu0 %1015
        %1017 = vrot.lane.b32.xlu0 %v994, 96
        %v1018 = vpop.permute.xlu0 %1017
        %1019 = vrot.lane.b32.xlu0 %v996, 96
        %v1020 = vpop.permute.xlu0 %1019
        %1021 = vrot.lane.b32.xlu0 %v998, 96
        %v1022 = vpop.permute.xlu0 %1021
        %1023 = vrot.lane.b32.xlu0 %v1000, 96
        %v1024 = vpop.permute.xlu0 %1023
        %1025 = vrot.lane.b32.xlu0 %v1002, 96
        %v1026 = vpop.permute.xlu0 %1025
        %v1035 = vsel %vm615, %v1012, 0.0
        %1036 = vadd.xlane.f32.xlu0 %v1035
        %v1037 = vpop.xlane.xlu0 %1036
        %v1038 = vsel %vm615, %v1014, 0.0
        %1039 = vadd.xlane.f32.xlu0 %v1038
        %v1040 = vpop.xlane.xlu0 %1039
        %v1041 = vsel %vm615, %v1016, 0.0
        %1042 = vadd.xlane.f32.xlu0 %v1041
        %v1043 = vpop.xlane.xlu0 %1042
        %v1044 = vsel %vm615, %v1018, 0.0
        %1045 = vadd.xlane.f32.xlu0 %v1044
        %v1046 = vpop.xlane.xlu0 %1045
        %v1047 = vsel %vm615, %v1020, 0.0
        %1048 = vadd.xlane.f32.xlu0 %v1047
        %v1049 = vpop.xlane.xlu0 %1048
        %v1050 = vsel %vm615, %v1022, 0.0
        %1051 = vadd.xlane.f32.xlu0 %v1050
        %v1052 = vpop.xlane.xlu0 %1051
        %v1053 = vsel %vm615, %v1024, 0.0
        %1054 = vadd.xlane.f32.xlu0 %v1053
        %v1055 = vpop.xlane.xlu0 %1054
        %v1056 = vsel %vm615, %v1026, 0.0
        %1057 = vadd.xlane.f32.xlu0 %v1056
        %v1058 = vpop.xlane.xlu0 %1057
        %v1059 = vrcp.pop %v1037
        %v1060 = vrcp.pop %v1040
        %v1061 = vrcp.pop %v1043
        %v1062 = vrcp.pop %v1046
        %v1063 = vrcp.pop %v1049
        %v1064 = vrcp.pop %v1052
        %v1065 = vrcp.pop %v1055
        %v1066 = vrcp.pop %v1058
        %v1067 = vmul.f32 %v988, %v1059
        %v1068 = vmul.f32 %v990, %v1060
        %v1069 = vmul.f32 %v992, %v1061
        %v1070 = vmul.f32 %v994, %v1062
        %v1071 = vmul.f32 %v996, %v1063
        %v1072 = vmul.f32 %v998, %v1064
        %v1073 = vmul.f32 %v1000, %v1065
        %v1074 = vmul.f32 %v1002, %v1066
        %v1075 = vpack.c.bf16 %v947, %v946
        %v1076 = vpack.c.bf16 %v949, %v948
        %v1077 = vpack.c.bf16 %v951, %v950
        %v1078 = vpack.c.bf16 %v953, %v952
        %v1079 = vpack.c.bf16 %v862, %v860
        %v1080 = vpack.c.bf16 %v867, %v865
        %v1081 = vpack.c.bf16 %v872, %v870
        %v1082 = vpack.c.bf16 %v877, %v875
        %1083 = vxpose.xlu0.c.b16.start [1/8] %v1075, 128
        %1084 = vxpose.xlu0.c.b16.cont [2/8] %v1076, 128
        %1085 = vxpose.xlu0.c.b16.cont [3/8] %v1077, 128
        %1086 = vxpose.xlu0.c.b16.cont [4/8] %v1078, 128
        %1087 = vxpose.xlu0.c.b16.cont [5/8] 0, 128
        %1088 = vxpose.xlu0.c.b16.cont [6/8] 0, 128
        %1089 = vxpose.xlu0.c.b16.cont [7/8] 0, 128
        %1090 = vxpose.xlu0.c.b16.end [8/8] 0, 128
        %v1091 = vpop.trf.xlu0
        %v1092 = vpop.trf.xlu0
        %v1093 = vpop.trf.xlu0
        %v1094 = vpop.trf.xlu0
        %v1095 = vpop.trf.xlu0
        %v1096 = vpop.trf.xlu0
        %v1097 = vpop.trf.xlu0
        %v1098 = vpop.trf.xlu0
        %1103 = vrot.lane.b32.xlu0 %v1079, 64
        %v1104 = vpop.permute.xlu0 %1103
        %1105 = vrot.lane.b32.xlu0 %v1080, 64
        %v1106 = vpop.permute.xlu0 %1105
        %1107 = vrot.lane.b32.xlu0 %v1081, 64
        %v1108 = vpop.permute.xlu0 %1107
        %1109 = vrot.lane.b32.xlu0 %v1082, 64
        %v1110 = vpop.permute.xlu0 %1109
        %vm1115 = vcmask 523264
        %v1117 = vsel %vm1115, %v1091, 0
        %v1120 = vsel %vm1115, %v1092, 0
        %1122 = vmatpush.bf16.msra.mxu0 0
        %1123 = vmatpush.bf16.msra.mxu0 0
        %1124 = vmatpush.bf16.msra.mxu0 0
        %1125 = vmatpush.bf16.msra.mxu0 0
        %1126 = vmatpush.bf16.msra.mxu0 %v1110
        %1127 = vmatpush.bf16.msra.mxu0 %v1108
        %1128 = vmatpush.bf16.msra.mxu0 %v1106
        %1129 = vmatpush.bf16.msra.mxu0 %v1104
        %1130 = vmatmul.bf16.gmra.mxu0 %v1117
        %v1131 = vpop.f32.mrf.mxu0
        %v1132 = vadd.f32 0.0, %v1131
        %v1133 = vpop.f32.mrf.mxu0
        %v1134 = vadd.f32 0.0, %v1133
        %1135 = vmatmul.bf16.gmra.mxu0 %v1120
        %v1136 = vpop.f32.mrf.mxu0
        %v1137 = vadd.f32 0.0, %v1136
        %v1138 = vpop.f32.mrf.mxu0
        %v1139 = vadd.f32 0.0, %v1138
        %1140 = vdwg.mxu0
        %v1141 = vpack.c.bf16 %v1068, %v1067
        %v1142 = vpack.c.bf16 %v1070, %v1069
        %v1143 = vpack.c.bf16 %v1072, %v1071
        %v1144 = vpack.c.bf16 %v1074, %v1073
        %v1145 = vpack.c.bf16 %v1134, %v1132
        %v1146 = vpack.c.bf16 %v1139, %v1137
        %1151 = vrot.lane.b32.xlu0 %v1141, 96
        %v1152 = vpop.permute.xlu0 %1151
        %1153 = vrot.lane.b32.xlu0 %v1142, 96
        %v1154 = vpop.permute.xlu0 %1153
        %1155 = vrot.lane.b32.xlu0 %v1143, 96
        %v1156 = vpop.permute.xlu0 %1155
        %1157 = vrot.lane.b32.xlu0 %v1144, 96
        %v1158 = vpop.permute.xlu0 %1157
        %v1160 = vsel %vm615, %v1152, 0
        %v1163 = vsel %vm615, %v1154, 0
        %v1166 = vsel %vm615, %v1156, 0
        %v1169 = vsel %vm615, %v1158, 0
        %1171 = vmatpush.bf16.msra.mxu0 0
        %1172 = vmatpush.bf16.msra.mxu0 0
        %1173 = vmatpush.bf16.msra.mxu0 0
        %1174 = vmatpush.bf16.msra.mxu0 0
        %1175 = vmatpush.bf16.msra.mxu0 0
        %1176 = vmatpush.bf16.msra.mxu0 0
        %1177 = vmatpush.bf16.msra.mxu0 %v1146
        %1178 = vmatpush.bf16.msra.mxu0 %v1145
        %1179 = vmatmul.bf16.gmra.mxu0 %v1160
        %v1180 = vpop.f32.mrf.mxu0
        %v1181 = vadd.f32 0.0, %v1180
        %v1182 = vpop.f32.mrf.mxu0
        %v1183 = vadd.f32 0.0, %v1182
        %1184 = vmatmul.bf16.gmra.mxu0 %v1163
        %v1185 = vpop.f32.mrf.mxu0
        %v1186 = vadd.f32 0.0, %v1185
        %v1187 = vpop.f32.mrf.mxu0
        %v1188 = vadd.f32 0.0, %v1187
        %1189 = vmatmul.bf16.gmra.mxu0 %v1166
        %v1190 = vpop.f32.mrf.mxu0
        %v1191 = vadd.f32 0.0, %v1190
        %v1192 = vpop.f32.mrf.mxu0
        %v1193 = vadd.f32 0.0, %v1192
        %1194 = vmatmul.bf16.gmra.mxu0 %v1169
        %v1195 = vpop.f32.mrf.mxu0
        %v1196 = vadd.f32 0.0, %v1195
        %v1197 = vpop.f32.mrf.mxu0
        %v1198 = vadd.f32 0.0, %v1197
        %1199 = vdwg.mxu0
        %v1200 = vpack.c.bf16 %v1183, %v1181
        %v1201 = vpack.c.bf16 %v1188, %v1186
        %v1202 = vpack.c.bf16 %v1193, %v1191
        %v1203 = vpack.c.bf16 %v1198, %v1196
        %v1204 = vld [vmem:[%s4] sm:$0xf]
        %v1205 = vld [vmem:[%s4 + $0x4] sm:$0xf]
        %v1206 = vld [vmem:[%s4 + $0x8] sm:$0xf]
        %v1207 = vld [vmem:[%s4 + $0xc] sm:$0xf]
        %v1208 = vperm.slane %v479, 5
        %v1213 = vunpack.c.l.b16 %v1204
        %v1214 = vunpack.c.l.b16 %v1205
        %v1215 = vunpack.c.l.b16 %v1206
        %v1216 = vunpack.c.l.b16 %v1207
        %v1217 = vpack.c.b16 %v1214, %v1213
        %v1218 = vpack.c.b16 %v1216, %v1215
        %v1222 = vsel %vm615, %v1200, 0
        %v1225 = vsel %vm615, %v1201, 0
        %v1228 = vsel %vm615, %v1202, 0
        %v1231 = vsel %vm615, %v1203, 0
        %1233 = vmatpush.bf16.msra.mxu0 0
        %1234 = vmatpush.bf16.msra.mxu0 0
        %1235 = vmatpush.bf16.msra.mxu0 0
        %1236 = vmatpush.bf16.msra.mxu0 0
        %1237 = vmatpush.bf16.msra.mxu0 0
        %1238 = vmatpush.bf16.msra.mxu0 0
        %1239 = vmatpush.bf16.msra.mxu0 %v1218
        %1240 = vmatpush.bf16.msra.mxu0 %v1217
        %1241 = vmatmul.bf16.gmra.mxu0 %v1222
        %v1242 = vpop.f32.mrf.mxu0
        %v1243 = vadd.f32 %v1208, %v1242
        %v1244 = vpop.f32.mrf.mxu0
        %v1245 = vadd.f32 %v1208, %v1244
        %1246 = vmatmul.bf16.gmra.mxu0 %v1225
        %v1247 = vpop.f32.mrf.mxu0
        %v1248 = vadd.f32 %v1208, %v1247
        %v1249 = vpop.f32.mrf.mxu0
        %v1250 = vadd.f32 %v1208, %v1249
        %1251 = vmatmul.bf16.gmra.mxu0 %v1228
        %v1252 = vpop.f32.mrf.mxu0
        %v1253 = vadd.f32 %v1208, %v1252
        %v1254 = vpop.f32.mrf.mxu0
        %v1255 = vadd.f32 %v1208, %v1254
        %1256 = vmatmul.bf16.gmra.mxu0 %v1231
        %v1257 = vpop.f32.mrf.mxu0
        %v1258 = vadd.f32 %v1208, %v1257
        %v1259 = vpop.f32.mrf.mxu0
        %v1260 = vadd.f32 %v1208, %v1259
        %1261 = vdwg.mxu0
        %v1262 = vadd.f32 %v607, %v1243
        %v1263 = vadd.f32 %v608, %v1245
        %v1264 = vadd.f32 %v609, %v1248
        %v1265 = vadd.f32 %v610, %v1250
        %v1266 = vadd.f32 %v611, %v1253
        %v1267 = vadd.f32 %v612, %v1255
        %v1268 = vadd.f32 %v613, %v1258
        %v1269 = vadd.f32 %v614, %v1260
        %v1270 = vsel %vm615, %v1262, 0.0
        %1271 = vadd.xlane.f32.xlu0 %v1270
        %v1272 = vpop.xlane.xlu0 %1271
        %v1273 = vsel %vm615, %v1263, 0.0
        %1274 = vadd.xlane.f32.xlu0 %v1273
        %v1275 = vpop.xlane.xlu0 %1274
        %v1276 = vsel %vm615, %v1264, 0.0
        %1277 = vadd.xlane.f32.xlu0 %v1276
        %v1278 = vpop.xlane.xlu0 %1277
        %v1279 = vsel %vm615, %v1265, 0.0
        %1280 = vadd.xlane.f32.xlu0 %v1279
        %v1281 = vpop.xlane.xlu0 %1280
        %v1282 = vsel %vm615, %v1266, 0.0
        %1283 = vadd.xlane.f32.xlu0 %v1282
        %v1284 = vpop.xlane.xlu0 %1283
        %v1285 = vsel %vm615, %v1267, 0.0
        %1286 = vadd.xlane.f32.xlu0 %v1285
        %v1287 = vpop.xlane.xlu0 %1286
        %v1288 = vsel %vm615, %v1268, 0.0
        %1289 = vadd.xlane.f32.xlu0 %v1288
        %v1290 = vpop.xlane.xlu0 %1289
        %v1291 = vsel %vm615, %v1269, 0.0
        %1292 = vadd.xlane.f32.xlu0 %v1291
        %v1293 = vpop.xlane.xlu0 %1292
        %v1294 = vmul.f32 %v1272, %v646
        %v1295 = vmul.f32 %v1275, %v646
        %v1296 = vmul.f32 %v1278, %v646
        %v1297 = vmul.f32 %v1281, %v646
        %v1298 = vmul.f32 %v1284, %v646
        %v1299 = vmul.f32 %v1287, %v646
        %v1300 = vmul.f32 %v1290, %v646
        %v1301 = vmul.f32 %v1293, %v646
        %v1302 = vsub.f32 %v1262, %v1294
        %v1303 = vsub.f32 %v1263, %v1295
        %v1304 = vsub.f32 %v1264, %v1296
        %v1305 = vsub.f32 %v1265, %v1297
        %v1306 = vsub.f32 %v1266, %v1298
        %v1307 = vsub.f32 %v1267, %v1299
        %v1308 = vsub.f32 %v1268, %v1300
        %v1309 = vsub.f32 %v1269, %v1301
        %v1310 = vmul.f32 %v1302, %v1302
        %v1311 = vmul.f32 %v1303, %v1303
        %v1312 = vmul.f32 %v1304, %v1304
        %v1313 = vmul.f32 %v1305, %v1305
        %v1314 = vmul.f32 %v1306, %v1306
        %v1315 = vmul.f32 %v1307, %v1307
        %v1316 = vmul.f32 %v1308, %v1308
        %v1317 = vmul.f32 %v1309, %v1309
        %v1318 = vsel %vm615, %v1310, 0.0
        %1319 = vadd.xlane.f32.xlu0 %v1318
        %v1320 = vpop.xlane.xlu0 %1319
        %v1321 = vsel %vm615, %v1311, 0.0
        %1322 = vadd.xlane.f32.xlu0 %v1321
        %v1323 = vpop.xlane.xlu0 %1322
        %v1324 = vsel %vm615, %v1312, 0.0
        %1325 = vadd.xlane.f32.xlu0 %v1324
        %v1326 = vpop.xlane.xlu0 %1325
        %v1327 = vsel %vm615, %v1313, 0.0
        %1328 = vadd.xlane.f32.xlu0 %v1327
        %v1329 = vpop.xlane.xlu0 %1328
        %v1330 = vsel %vm615, %v1314, 0.0
        %1331 = vadd.xlane.f32.xlu0 %v1330
        %v1332 = vpop.xlane.xlu0 %1331
        %v1333 = vsel %vm615, %v1315, 0.0
        %1334 = vadd.xlane.f32.xlu0 %v1333
        %v1335 = vpop.xlane.xlu0 %1334
        %v1336 = vsel %vm615, %v1316, 0.0
        %1337 = vadd.xlane.f32.xlu0 %v1336
        %v1338 = vpop.xlane.xlu0 %1337
        %v1339 = vsel %vm615, %v1317, 0.0
        %1340 = vadd.xlane.f32.xlu0 %v1339
        %v1341 = vpop.xlane.xlu0 %1340
        %v1342 = vmul.f32 %v1320, %v646
        %v1343 = vmul.f32 %v1323, %v646
        %v1344 = vmul.f32 %v1326, %v646
        %v1345 = vmul.f32 %v1329, %v646
        %v1346 = vmul.f32 %v1332, %v646
        %v1347 = vmul.f32 %v1335, %v646
        %v1348 = vmul.f32 %v1338, %v646
        %v1349 = vmul.f32 %v1341, %v646
        %v1350 = vadd.f32 %v1342, 1e-05
        %v1351 = vadd.f32 %v1343, 1e-05
        %v1352 = vadd.f32 %v1344, 1e-05
        %v1353 = vadd.f32 %v1345, 1e-05
        %v1354 = vadd.f32 %v1346, 1e-05
        %v1355 = vadd.f32 %v1347, 1e-05
        %v1356 = vadd.f32 %v1348, 1e-05
        %v1357 = vadd.f32 %v1349, 1e-05
        %v1358 = vrsqrt.pop %v1350
        %v1359 = vmul.f32 %v1358, %v1350
        %v1360 = vmul.f32 %v1359, %v1358
        %v1361 = vmul.f32 0.5, %v1360
        %v1362 = vsub.f32 1.5, %v1361
        %v1363 = vmul.f32 %v1358, %v1362
        %vm1364 = vweird.f32 %v1350
        %vm1365 = vweird.f32 %v1358
        %vm1366 = vmor %vm1364, %vm1365
        %v1367 = vsel %vm1366, %v1358, %v1363
        %v1368 = vrsqrt.pop %v1351
        %v1369 = vmul.f32 %v1368, %v1351
        %v1370 = vmul.f32 %v1369, %v1368
        %v1371 = vmul.f32 0.5, %v1370
        %v1372 = vsub.f32 1.5, %v1371
        %v1373 = vmul.f32 %v1368, %v1372
        %vm1374 = vweird.f32 %v1351
        %vm1375 = vweird.f32 %v1368
        %vm1376 = vmor %vm1374, %vm1375
        %v1377 = vsel %vm1376, %v1368, %v1373
        %v1378 = vrsqrt.pop %v1352
        %v1379 = vmul.f32 %v1378, %v1352
        %v1380 = vmul.f32 %v1379, %v1378
        %v1381 = vmul.f32 0.5, %v1380
        %v1382 = vsub.f32 1.5, %v1381
        %v1383 = vmul.f32 %v1378, %v1382
        %vm1384 = vweird.f32 %v1352
        %vm1385 = vweird.f32 %v1378
        %vm1386 = vmor %vm1384, %vm1385
        %v1387 = vsel %vm1386, %v1378, %v1383
        %v1388 = vrsqrt.pop %v1353
        %v1389 = vmul.f32 %v1388, %v1353
        %v1390 = vmul.f32 %v1389, %v1388
        %v1391 = vmul.f32 0.5, %v1390
        %v1392 = vsub.f32 1.5, %v1391
        %v1393 = vmul.f32 %v1388, %v1392
        %vm1394 = vweird.f32 %v1353
        %vm1395 = vweird.f32 %v1388
        %vm1396 = vmor %vm1394, %vm1395
        %v1397 = vsel %vm1396, %v1388, %v1393
        %v1398 = vrsqrt.pop %v1354
        %v1399 = vmul.f32 %v1398, %v1354
        %v1400 = vmul.f32 %v1399, %v1398
        %v1401 = vmul.f32 0.5, %v1400
        %v1402 = vsub.f32 1.5, %v1401
        %v1403 = vmul.f32 %v1398, %v1402
        %vm1404 = vweird.f32 %v1354
        %vm1405 = vweird.f32 %v1398
        %vm1406 = vmor %vm1404, %vm1405
        %v1407 = vsel %vm1406, %v1398, %v1403
        %v1408 = vrsqrt.pop %v1355
        %v1409 = vmul.f32 %v1408, %v1355
        %v1410 = vmul.f32 %v1409, %v1408
        %v1411 = vmul.f32 0.5, %v1410
        %v1412 = vsub.f32 1.5, %v1411
        %v1413 = vmul.f32 %v1408, %v1412
        %vm1414 = vweird.f32 %v1355
        %vm1415 = vweird.f32 %v1408
        %vm1416 = vmor %vm1414, %vm1415
        %v1417 = vsel %vm1416, %v1408, %v1413
        %v1418 = vrsqrt.pop %v1356
        %v1419 = vmul.f32 %v1418, %v1356
        %v1420 = vmul.f32 %v1419, %v1418
        %v1421 = vmul.f32 0.5, %v1420
        %v1422 = vsub.f32 1.5, %v1421
        %v1423 = vmul.f32 %v1418, %v1422
        %vm1424 = vweird.f32 %v1356
        %vm1425 = vweird.f32 %v1418
        %vm1426 = vmor %vm1424, %vm1425
        %v1427 = vsel %vm1426, %v1418, %v1423
        %v1428 = vrsqrt.pop %v1357
        %v1429 = vmul.f32 %v1428, %v1357
        %v1430 = vmul.f32 %v1429, %v1428
        %v1431 = vmul.f32 0.5, %v1430
        %v1432 = vsub.f32 1.5, %v1431
        %v1433 = vmul.f32 %v1428, %v1432
        %vm1434 = vweird.f32 %v1357
        %vm1435 = vweird.f32 %v1428
        %vm1436 = vmor %vm1434, %vm1435
        %v1437 = vsel %vm1436, %v1428, %v1433
        %v1438 = vmul.f32 %v1302, %v1367
        %v1439 = vmul.f32 %v1303, %v1377
        %v1440 = vmul.f32 %v1304, %v1387
        %v1441 = vmul.f32 %v1305, %v1397
        %v1442 = vmul.f32 %v1306, %v1407
        %v1443 = vmul.f32 %v1307, %v1417
        %v1444 = vmul.f32 %v1308, %v1427
        %v1445 = vmul.f32 %v1309, %v1437
        %v1446 = vperm.slane %v479, 3
        %v1447 = vmul.f32 %v1438, %v1446
        %v1448 = vmul.f32 %v1439, %v1446
        %v1449 = vmul.f32 %v1440, %v1446
        %v1450 = vmul.f32 %v1441, %v1446
        %v1451 = vmul.f32 %v1442, %v1446
        %v1452 = vmul.f32 %v1443, %v1446
        %v1453 = vmul.f32 %v1444, %v1446
        %v1454 = vmul.f32 %v1445, %v1446
        %v1455 = vperm.slane %v479, 4
        %v1456 = vadd.f32 %v1447, %v1455
        %v1457 = vadd.f32 %v1448, %v1455
        %v1458 = vadd.f32 %v1449, %v1455
        %v1459 = vadd.f32 %v1450, %v1455
        %v1460 = vadd.f32 %v1451, %v1455
        %v1461 = vadd.f32 %v1452, %v1455
        %v1462 = vadd.f32 %v1453, %v1455
        %v1463 = vadd.f32 %v1454, %v1455
        %v1464 = vpack.c.bf16 %v1457, %v1456
        %v1465 = vpack.c.bf16 %v1459, %v1458
        %v1466 = vpack.c.bf16 %v1461, %v1460
        %v1467 = vpack.c.bf16 %v1463, %v1462
        %v1468 = vld [vmem:[%s5] sm:$0xf]
        %v1469 = vld [vmem:[%s5 + $0x4] sm:$0xf]
        %v1470 = vld [vmem:[%s5 + $0x8] sm:$0xf]
        %v1471 = vld [vmem:[%s5 + $0xc] sm:$0xf]
        %v1472 = vperm.slane %v480, 0
        %v1477 = vunpack.c.l.b16 %v1468
        %v1478 = vunpack.c.l.b16 %v1469
        %v1479 = vunpack.c.l.b16 %v1470
        %v1480 = vunpack.c.l.b16 %v1471
        %v1481 = vpack.c.b16 %v1478, %v1477
        %v1482 = vpack.c.b16 %v1480, %v1479
        %v1486 = vsel %vm615, %v1464, 0
        %v1489 = vsel %vm615, %v1465, 0
        %v1492 = vsel %vm615, %v1466, 0
        %v1495 = vsel %vm615, %v1467, 0
        %1497 = vmatpush.bf16.msra.mxu0 0
        %1498 = vmatpush.bf16.msra.mxu0 0
        %1499 = vmatpush.bf16.msra.mxu0 0
        %1500 = vmatpush.bf16.msra.mxu0 0
        %1501 = vmatpush.bf16.msra.mxu0 0
        %1502 = vmatpush.bf16.msra.mxu0 0
        %1503 = vmatpush.bf16.msra.mxu0 %v1482
        %1504 = vmatpush.bf16.msra.mxu0 %v1481
        %1505 = vmatmul.bf16.gmra.mxu0 %v1486
        %v1506 = vpop.f32.mrf.mxu0
        %v1507 = vadd.f32 %v1472, %v1506
        %v1508 = vpop.f32.mrf.mxu0
        %v1509 = vadd.f32 %v1472, %v1508
        %1510 = vmatmul.bf16.gmra.mxu0 %v1489
        %v1511 = vpop.f32.mrf.mxu0
        %v1512 = vadd.f32 %v1472, %v1511
        %v1513 = vpop.f32.mrf.mxu0
        %v1514 = vadd.f32 %v1472, %v1513
        %1515 = vmatmul.bf16.gmra.mxu0 %v1492
        %v1516 = vpop.f32.mrf.mxu0
        %v1517 = vadd.f32 %v1472, %v1516
        %v1518 = vpop.f32.mrf.mxu0
        %v1519 = vadd.f32 %v1472, %v1518
        %1520 = vmatmul.bf16.gmra.mxu0 %v1495
        %v1521 = vpop.f32.mrf.mxu0
        %v1522 = vadd.f32 %v1472, %v1521
        %v1523 = vpop.f32.mrf.mxu0
        %v1524 = vadd.f32 %v1472, %v1523
        %1525 = vdwg.mxu0
        %v1526 = vmul.f32 %v1507, %v1507
        %v1527 = vmul.f32 %v1509, %v1509
        %v1528 = vmul.f32 %v1512, %v1512
        %v1529 = vmul.f32 %v1514, %v1514
        %v1530 = vmul.f32 %v1517, %v1517
        %v1531 = vmul.f32 %v1519, %v1519
        %v1532 = vmul.f32 %v1522, %v1522
        %v1533 = vmul.f32 %v1524, %v1524
        %v1534 = vmul.f32 %v1507, %v1526
        %v1535 = vmul.f32 %v1509, %v1527
        %v1536 = vmul.f32 %v1512, %v1528
        %v1537 = vmul.f32 %v1514, %v1529
        %v1538 = vmul.f32 %v1517, %v1530
        %v1539 = vmul.f32 %v1519, %v1531
        %v1540 = vmul.f32 %v1522, %v1532
        %v1541 = vmul.f32 %v1524, %v1533
        %v1542 = vmul.f32 %v1534, 0.044715
        %v1543 = vmul.f32 %v1535, 0.044715
        %v1544 = vmul.f32 %v1536, 0.044715
        %v1545 = vmul.f32 %v1537, 0.044715
        %v1546 = vmul.f32 %v1538, 0.044715
        %v1547 = vmul.f32 %v1539, 0.044715
        %v1548 = vmul.f32 %v1540, 0.044715
        %v1549 = vmul.f32 %v1541, 0.044715
        %v1550 = vadd.f32 %v1507, %v1542
        %v1551 = vadd.f32 %v1509, %v1543
        %v1552 = vadd.f32 %v1512, %v1544
        %v1553 = vadd.f32 %v1514, %v1545
        %v1554 = vadd.f32 %v1517, %v1546
        %v1555 = vadd.f32 %v1519, %v1547
        %v1556 = vadd.f32 %v1522, %v1548
        %v1557 = vadd.f32 %v1524, %v1549
        %v1558 = vmul.f32 %v1550, 0.7978846
        %v1559 = vmul.f32 %v1551, 0.7978846
        %v1560 = vmul.f32 %v1552, 0.7978846
        %v1561 = vmul.f32 %v1553, 0.7978846
        %v1562 = vmul.f32 %v1554, 0.7978846
        %v1563 = vmul.f32 %v1555, 0.7978846
        %v1564 = vmul.f32 %v1556, 0.7978846
        %v1565 = vmul.f32 %v1557, 0.7978846
        %v1566 = vtanh.pop %v1558
        %v1567 = vtanh.pop %v1559
        %v1568 = vtanh.pop %v1560
        %v1569 = vtanh.pop %v1561
        %v1570 = vtanh.pop %v1562
        %v1571 = vtanh.pop %v1563
        %v1572 = vtanh.pop %v1564
        %v1573 = vtanh.pop %v1565
        %v1574 = vadd.f32 %v1566, 1.0
        %v1575 = vadd.f32 %v1567, 1.0
        %v1576 = vadd.f32 %v1568, 1.0
        %v1577 = vadd.f32 %v1569, 1.0
        %v1578 = vadd.f32 %v1570, 1.0
        %v1579 = vadd.f32 %v1571, 1.0
        %v1580 = vadd.f32 %v1572, 1.0
        %v1581 = vadd.f32 %v1573, 1.0
        %v1582 = vmul.f32 %v1574, 0.5
        %v1583 = vmul.f32 %v1575, 0.5
        %v1584 = vmul.f32 %v1576, 0.5
        %v1585 = vmul.f32 %v1577, 0.5
        %v1586 = vmul.f32 %v1578, 0.5
        %v1587 = vmul.f32 %v1579, 0.5
        %v1588 = vmul.f32 %v1580, 0.5
        %v1589 = vmul.f32 %v1581, 0.5
        %v1590 = vmul.f32 %v1507, %v1582
        %v1591 = vmul.f32 %v1509, %v1583
        %v1592 = vmul.f32 %v1512, %v1584
        %v1593 = vmul.f32 %v1514, %v1585
        %v1594 = vmul.f32 %v1517, %v1586
        %v1595 = vmul.f32 %v1519, %v1587
        %v1596 = vmul.f32 %v1522, %v1588
        %v1597 = vmul.f32 %v1524, %v1589
        %v1598 = vpack.c.bf16 %v1591, %v1590
        %v1599 = vpack.c.bf16 %v1593, %v1592
        %v1600 = vpack.c.bf16 %v1595, %v1594
        %v1601 = vpack.c.bf16 %v1597, %v1596
        %v1602 = vld [vmem:[%s6] sm:$0xf]
        %v1603 = vld [vmem:[%s6 + $0x4] sm:$0xf]
        %v1604 = vld [vmem:[%s6 + $0x8] sm:$0xf]
        %v1605 = vld [vmem:[%s6 + $0xc] sm:$0xf]
        %v1606 = vld [vmem:[%s6 + $0x10] sm:$0xf]
        %v1607 = vld [vmem:[%s6 + $0x14] sm:$0xf]
        %v1608 = vld [vmem:[%s6 + $0x18] sm:$0xf]
        %v1609 = vld [vmem:[%s6 + $0x1c] sm:$0xf]
        %v1610 = vld [vmem:[%s6 + $0x20] sm:$0xf]
        %v1611 = vld [vmem:[%s6 + $0x24] sm:$0xf]
        %v1612 = vld [vmem:[%s6 + $0x28] sm:$0xf]
        %v1613 = vld [vmem:[%s6 + $0x2c] sm:$0xf]
        %v1614 = vld [vmem:[%s6 + $0x30] sm:$0xf]
        %v1615 = vld [vmem:[%s6 + $0x34] sm:$0xf]
        %v1616 = vld [vmem:[%s6 + $0x38] sm:$0xf]
        %v1617 = vld [vmem:[%s6 + $0x3c] sm:$0xf]
        %v1618 = vperm.slane %v479, 6
        %v1635 = vunpack.c.l.b16 %v1602
        %v1636 = vunpack.c.l.b16 %v1603
        %v1637 = vunpack.c.l.b16 %v1604
        %v1638 = vunpack.c.l.b16 %v1605
        %v1639 = vunpack.c.l.b16 %v1606
        %v1640 = vunpack.c.l.b16 %v1607
        %v1641 = vunpack.c.l.b16 %v1608
        %v1642 = vunpack.c.l.b16 %v1609
        %v1643 = vunpack.c.l.b16 %v1610
        %v1644 = vunpack.c.l.b16 %v1611
        %v1645 = vunpack.c.l.b16 %v1612
        %v1646 = vunpack.c.l.b16 %v1613
        %v1647 = vunpack.c.l.b16 %v1614
        %v1648 = vunpack.c.l.b16 %v1615
        %v1649 = vunpack.c.l.b16 %v1616
        %v1650 = vunpack.c.l.b16 %v1617
        %v1651 = vpack.c.b16 %v1636, %v1635
        %v1652 = vpack.c.b16 %v1638, %v1637
        %v1653 = vpack.c.b16 %v1640, %v1639
        %v1654 = vpack.c.b16 %v1642, %v1641
        %v1655 = vpack.c.b16 %v1644, %v1643
        %v1656 = vpack.c.b16 %v1646, %v1645
        %v1657 = vpack.c.b16 %v1648, %v1647
        %v1658 = vpack.c.b16 %v1650, %v1649
        %1667 = vmatpush.bf16.msra.mxu0 %v1658
        %1668 = vmatpush.bf16.msra.mxu0 %v1657
        %1669 = vmatpush.bf16.msra.mxu0 %v1656
        %1670 = vmatpush.bf16.msra.mxu0 %v1655
        %1671 = vmatpush.bf16.msra.mxu0 %v1654
        %1672 = vmatpush.bf16.msra.mxu0 %v1653
        %1673 = vmatpush.bf16.msra.mxu0 %v1652
        %1674 = vmatpush.bf16.msra.mxu0 %v1651
        %1675 = vmatmul.bf16.gmra.mxu0 %v1598
        %v1676 = vpop.f32.mrf.mxu0
        %v1677 = vadd.f32 %v1618, %v1676
        %v1678 = vpop.f32.mrf.mxu0
        %v1679 = vadd.f32 %v1618, %v1678
        %1680 = vmatmul.bf16.gmra.mxu0 %v1599
        %v1681 = vpop.f32.mrf.mxu0
        %v1682 = vadd.f32 %v1618, %v1681
        %v1683 = vpop.f32.mrf.mxu0
        %v1684 = vadd.f32 %v1618, %v1683
        %1685 = vmatmul.bf16.gmra.mxu0 %v1600
        %v1686 = vpop.f32.mrf.mxu0
        %v1687 = vadd.f32 %v1618, %v1686
        %v1688 = vpop.f32.mrf.mxu0
        %v1689 = vadd.f32 %v1618, %v1688
        %1690 = vmatmul.bf16.gmra.mxu0 %v1601
        %v1691 = vpop.f32.mrf.mxu0
        %v1692 = vadd.f32 %v1618, %v1691
        %v1693 = vpop.f32.mrf.mxu0
        %v1694 = vadd.f32 %v1618, %v1693
        %1695 = vdwg.mxu0
        %v1696 = vadd.f32 %v1262, %v1677
        %v1697 = vadd.f32 %v1263, %v1679
        %v1698 = vadd.f32 %v1264, %v1682
        %v1699 = vadd.f32 %v1265, %v1684
        %v1700 = vadd.f32 %v1266, %v1687
        %v1701 = vadd.f32 %v1267, %v1689
        %v1702 = vadd.f32 %v1268, %v1692
        %v1703 = vadd.f32 %v1269, %v1694
        %v1704 = vsel %vm615, %v1696, 0.0
        %1705 = vadd.xlane.f32.xlu0 %v1704
        %v1706 = vpop.xlane.xlu0 %1705
        %v1707 = vsel %vm615, %v1697, 0.0
        %1708 = vadd.xlane.f32.xlu0 %v1707
        %v1709 = vpop.xlane.xlu0 %1708
        %v1710 = vsel %vm615, %v1698, 0.0
        %1711 = vadd.xlane.f32.xlu0 %v1710
        %v1712 = vpop.xlane.xlu0 %1711
        %v1713 = vsel %vm615, %v1699, 0.0
        %1714 = vadd.xlane.f32.xlu0 %v1713
        %v1715 = vpop.xlane.xlu0 %1714
        %v1716 = vsel %vm615, %v1700, 0.0
        %1717 = vadd.xlane.f32.xlu0 %v1716
        %v1718 = vpop.xlane.xlu0 %1717
        %v1719 = vsel %vm615, %v1701, 0.0
        %1720 = vadd.xlane.f32.xlu0 %v1719
        %v1721 = vpop.xlane.xlu0 %1720
        %v1722 = vsel %vm615, %v1702, 0.0
        %1723 = vadd.xlane.f32.xlu0 %v1722
        %v1724 = vpop.xlane.xlu0 %1723
        %v1725 = vsel %vm615, %v1703, 0.0
        %1726 = vadd.xlane.f32.xlu0 %v1725
        %v1727 = vpop.xlane.xlu0 %1726
        %v1728 = vmul.f32 %v1706, %v646
        %v1729 = vmul.f32 %v1709, %v646
        %v1730 = vmul.f32 %v1712, %v646
        %v1731 = vmul.f32 %v1715, %v646
        %v1732 = vmul.f32 %v1718, %v646
        %v1733 = vmul.f32 %v1721, %v646
        %v1734 = vmul.f32 %v1724, %v646
        %v1735 = vmul.f32 %v1727, %v646
        %v1736 = vsub.f32 %v1696, %v1728
        %v1737 = vsub.f32 %v1697, %v1729
        %v1738 = vsub.f32 %v1698, %v1730
        %v1739 = vsub.f32 %v1699, %v1731
        %v1740 = vsub.f32 %v1700, %v1732
        %v1741 = vsub.f32 %v1701, %v1733
        %v1742 = vsub.f32 %v1702, %v1734
        %v1743 = vsub.f32 %v1703, %v1735
        %v1744 = vmul.f32 %v1736, %v1736
        %v1745 = vmul.f32 %v1737, %v1737
        %v1746 = vmul.f32 %v1738, %v1738
        %v1747 = vmul.f32 %v1739, %v1739
        %v1748 = vmul.f32 %v1740, %v1740
        %v1749 = vmul.f32 %v1741, %v1741
        %v1750 = vmul.f32 %v1742, %v1742
        %v1751 = vmul.f32 %v1743, %v1743
        %v1752 = vsel %vm615, %v1744, 0.0
        %1753 = vadd.xlane.f32.xlu0 %v1752
        %v1754 = vpop.xlane.xlu0 %1753
        %v1755 = vsel %vm615, %v1745, 0.0
        %1756 = vadd.xlane.f32.xlu0 %v1755
        %v1757 = vpop.xlane.xlu0 %1756
        %v1758 = vsel %vm615, %v1746, 0.0
        %1759 = vadd.xlane.f32.xlu0 %v1758
        %v1760 = vpop.xlane.xlu0 %1759
        %v1761 = vsel %vm615, %v1747, 0.0
        %1762 = vadd.xlane.f32.xlu0 %v1761
        %v1763 = vpop.xlane.xlu0 %1762
        %v1764 = vsel %vm615, %v1748, 0.0
        %1765 = vadd.xlane.f32.xlu0 %v1764
        %v1766 = vpop.xlane.xlu0 %1765
        %v1767 = vsel %vm615, %v1749, 0.0
        %1768 = vadd.xlane.f32.xlu0 %v1767
        %v1769 = vpop.xlane.xlu0 %1768
        %v1770 = vsel %vm615, %v1750, 0.0
        %1771 = vadd.xlane.f32.xlu0 %v1770
        %v1772 = vpop.xlane.xlu0 %1771
        %v1773 = vsel %vm615, %v1751, 0.0
        %1774 = vadd.xlane.f32.xlu0 %v1773
        %v1775 = vpop.xlane.xlu0 %1774
        %v1776 = vmul.f32 %v1754, %v646
        %v1777 = vmul.f32 %v1757, %v646
        %v1778 = vmul.f32 %v1760, %v646
        %v1779 = vmul.f32 %v1763, %v646
        %v1780 = vmul.f32 %v1766, %v646
        %v1781 = vmul.f32 %v1769, %v646
        %v1782 = vmul.f32 %v1772, %v646
        %v1783 = vmul.f32 %v1775, %v646
        %v1784 = vadd.f32 %v1776, 1e-05
        %v1785 = vadd.f32 %v1777, 1e-05
        %v1786 = vadd.f32 %v1778, 1e-05
        %v1787 = vadd.f32 %v1779, 1e-05
        %v1788 = vadd.f32 %v1780, 1e-05
        %v1789 = vadd.f32 %v1781, 1e-05
        %v1790 = vadd.f32 %v1782, 1e-05
        %v1791 = vadd.f32 %v1783, 1e-05
        %v1792 = vrsqrt.pop %v1784
        %v1793 = vmul.f32 %v1792, %v1784
        %v1794 = vmul.f32 %v1793, %v1792
        %v1795 = vmul.f32 0.5, %v1794
        %v1796 = vsub.f32 1.5, %v1795
        %v1797 = vmul.f32 %v1792, %v1796
        %vm1798 = vweird.f32 %v1784
        %vm1799 = vweird.f32 %v1792
        %vm1800 = vmor %vm1798, %vm1799
        %v1801 = vsel %vm1800, %v1792, %v1797
        %v1802 = vrsqrt.pop %v1785
        %v1803 = vmul.f32 %v1802, %v1785
        %v1804 = vmul.f32 %v1803, %v1802
        %v1805 = vmul.f32 0.5, %v1804
        %v1806 = vsub.f32 1.5, %v1805
        %v1807 = vmul.f32 %v1802, %v1806
        %vm1808 = vweird.f32 %v1785
        %vm1809 = vweird.f32 %v1802
        %vm1810 = vmor %vm1808, %vm1809
        %v1811 = vsel %vm1810, %v1802, %v1807
        %v1812 = vrsqrt.pop %v1786
        %v1813 = vmul.f32 %v1812, %v1786
        %v1814 = vmul.f32 %v1813, %v1812
        %v1815 = vmul.f32 0.5, %v1814
        %v1816 = vsub.f32 1.5, %v1815
        %v1817 = vmul.f32 %v1812, %v1816
        %vm1818 = vweird.f32 %v1786
        %vm1819 = vweird.f32 %v1812
        %vm1820 = vmor %vm1818, %vm1819
        %v1821 = vsel %vm1820, %v1812, %v1817
        %v1822 = vrsqrt.pop %v1787
        %v1823 = vmul.f32 %v1822, %v1787
        %v1824 = vmul.f32 %v1823, %v1822
        %v1825 = vmul.f32 0.5, %v1824
        %v1826 = vsub.f32 1.5, %v1825
        %v1827 = vmul.f32 %v1822, %v1826
        %vm1828 = vweird.f32 %v1787
        %vm1829 = vweird.f32 %v1822
        %vm1830 = vmor %vm1828, %vm1829
        %v1831 = vsel %vm1830, %v1822, %v1827
        %v1832 = vrsqrt.pop %v1788
        %v1833 = vmul.f32 %v1832, %v1788
        %v1834 = vmul.f32 %v1833, %v1832
        %v1835 = vmul.f32 0.5, %v1834
        %v1836 = vsub.f32 1.5, %v1835
        %v1837 = vmul.f32 %v1832, %v1836
        %vm1838 = vweird.f32 %v1788
        %vm1839 = vweird.f32 %v1832
        %vm1840 = vmor %vm1838, %vm1839
        %v1841 = vsel %vm1840, %v1832, %v1837
        %v1842 = vrsqrt.pop %v1789
        %v1843 = vmul.f32 %v1842, %v1789
        %v1844 = vmul.f32 %v1843, %v1842
        %v1845 = vmul.f32 0.5, %v1844
        %v1846 = vsub.f32 1.5, %v1845
        %v1847 = vmul.f32 %v1842, %v1846
        %vm1848 = vweird.f32 %v1789
        %vm1849 = vweird.f32 %v1842
        %vm1850 = vmor %vm1848, %vm1849
        %v1851 = vsel %vm1850, %v1842, %v1847
        %v1852 = vrsqrt.pop %v1790
        %v1853 = vmul.f32 %v1852, %v1790
        %v1854 = vmul.f32 %v1853, %v1852
        %v1855 = vmul.f32 0.5, %v1854
        %v1856 = vsub.f32 1.5, %v1855
        %v1857 = vmul.f32 %v1852, %v1856
        %vm1858 = vweird.f32 %v1790
        %vm1859 = vweird.f32 %v1852
        %vm1860 = vmor %vm1858, %vm1859
        %v1861 = vsel %vm1860, %v1852, %v1857
        %v1862 = vrsqrt.pop %v1791
        %v1863 = vmul.f32 %v1862, %v1791
        %v1864 = vmul.f32 %v1863, %v1862
        %v1865 = vmul.f32 0.5, %v1864
        %v1866 = vsub.f32 1.5, %v1865
        %v1867 = vmul.f32 %v1862, %v1866
        %vm1868 = vweird.f32 %v1791
        %vm1869 = vweird.f32 %v1862
        %vm1870 = vmor %vm1868, %vm1869
        %v1871 = vsel %vm1870, %v1862, %v1867
        %v1872 = vmul.f32 %v1736, %v1801
        %v1873 = vmul.f32 %v1737, %v1811
        %v1874 = vmul.f32 %v1738, %v1821
        %v1875 = vmul.f32 %v1739, %v1831
        %v1876 = vmul.f32 %v1740, %v1841
        %v1877 = vmul.f32 %v1741, %v1851
        %v1878 = vmul.f32 %v1742, %v1861
        %v1879 = vmul.f32 %v1743, %v1871
        %v1880 = vperm.slane %v480, 1
        %v1881 = vmul.f32 %v1872, %v1880
        %v1882 = vmul.f32 %v1873, %v1880
        %v1883 = vmul.f32 %v1874, %v1880
        %v1884 = vmul.f32 %v1875, %v1880
        %v1885 = vmul.f32 %v1876, %v1880
        %v1886 = vmul.f32 %v1877, %v1880
        %v1887 = vmul.f32 %v1878, %v1880
        %v1888 = vmul.f32 %v1879, %v1880
        %v1889 = vperm.slane %v480, 2
        %v1890 = vadd.f32 %v1881, %v1889
        %v1891 = vadd.f32 %v1882, %v1889
        %v1892 = vadd.f32 %v1883, %v1889
        %v1893 = vadd.f32 %v1884, %v1889
        %v1894 = vadd.f32 %v1885, %v1889
        %v1895 = vadd.f32 %v1886, %v1889
        %v1896 = vadd.f32 %v1887, %v1889
        %v1897 = vadd.f32 %v1888, %v1889
        %v1898 = vpack.c.bf16 %v1891, %v1890
        %v1899 = vpack.c.bf16 %v1893, %v1892
        %v1900 = vpack.c.bf16 %v1895, %v1894
        %v1901 = vpack.c.bf16 %v1897, %v1896
        %v1902 = vld [vmem:[%s7] sm:$0xf]
        %v1903 = vld [vmem:[%s7 + $0x4] sm:$0xf]
        %v1904 = vld [vmem:[%s7 + $0x8] sm:$0xf]
        %v1905 = vld [vmem:[%s7 + $0xc] sm:$0xf]
        %v1906 = vperm.slane %v480, 7
        %v1911 = vunpack.c.l.b16 %v1902
        %v1912 = vunpack.c.l.b16 %v1903
        %v1913 = vunpack.c.l.b16 %v1904
        %v1914 = vunpack.c.l.b16 %v1905
        %v1915 = vpack.c.b16 %v1912, %v1911
        %v1916 = vpack.c.b16 %v1914, %v1913
        %v1920 = vsel %vm615, %v1898, 0
        %v1923 = vsel %vm615, %v1899, 0
        %v1926 = vsel %vm615, %v1900, 0
        %v1929 = vsel %vm615, %v1901, 0
        %1931 = vmatpush.bf16.msra.mxu0 0
        %1932 = vmatpush.bf16.msra.mxu0 0
        %1933 = vmatpush.bf16.msra.mxu0 0
        %1934 = vmatpush.bf16.msra.mxu0 0
        %1935 = vmatpush.bf16.msra.mxu0 0
        %1936 = vmatpush.bf16.msra.mxu0 0
        %1937 = vmatpush.bf16.msra.mxu0 %v1916
        %1938 = vmatpush.bf16.msra.mxu0 %v1915
        %1939 = vmatmul.bf16.gmra.mxu0 %v1920
        %v1940 = vpop.f32.mrf.mxu0
        %v1941 = vadd.f32 %v1906, %v1940
        %v1942 = vpop.f32.mrf.mxu0
        %v1943 = vadd.f32 %v1906, %v1942
        %1944 = vmatmul.bf16.gmra.mxu0 %v1923
        %v1945 = vpop.f32.mrf.mxu0
        %v1946 = vadd.f32 %v1906, %v1945
        %v1947 = vpop.f32.mrf.mxu0
        %v1948 = vadd.f32 %v1906, %v1947
        %1949 = vmatmul.bf16.gmra.mxu0 %v1926
        %v1950 = vpop.f32.mrf.mxu0
        %v1951 = vadd.f32 %v1906, %v1950
        %v1952 = vpop.f32.mrf.mxu0
        %v1953 = vadd.f32 %v1906, %v1952
        %1954 = vmatmul.bf16.gmra.mxu0 %v1929
        %v1955 = vpop.f32.mrf.mxu0
        %v1956 = vadd.f32 %v1906, %v1955
        %v1957 = vpop.f32.mrf.mxu0
        %v1958 = vadd.f32 %v1906, %v1957
        %1959 = vdwg.mxu0
        %v1960 = vsel %vm615, %v1941, -inf
        %v1961 = vsel %vm615, %v1943, -inf
        %v1962 = vsel %vm615, %v1946, -inf
        %v1963 = vsel %vm615, %v1948, -inf
        %v1964 = vsel %vm615, %v1951, -inf
        %v1965 = vmax.f32 %v1960, %v1964
        %v1966 = vsel %vm615, %v1953, -inf
        %v1967 = vmax.f32 %v1961, %v1966
        %v1968 = vsel %vm615, %v1956, -inf
        %v1969 = vmax.f32 %v1962, %v1968
        %v1970 = vsel %vm615, %v1958, -inf
        %v1971 = vmax.f32 %v1963, %v1970
        %v1972 = vmax.f32 %v1965, %v1967
        %v1973 = vmax.f32 %v1969, %v1971
        %v1974 = vmax.f32 %v1972, %v1973
        %v1975 = vrot.slane %v1974, 4
        %v1976 = vmax.f32 %v1974, %v1975
        %v1977 = vrot.slane %v1976, 2
        %v1978 = vmax.f32 %v1976, %v1977
        %v1979 = vrot.slane %v1978, 1
        %v1980 = vmax.f32 %v1978, %v1979
        %v1981 = vsub.f32 %v1941, %v1980
        %v1982 = vsub.f32 %v1943, %v1980
        %v1983 = vsub.f32 %v1946, %v1980
        %v1984 = vsub.f32 %v1948, %v1980
        %v1985 = vsub.f32 %v1951, %v1980
        %v1986 = vsub.f32 %v1953, %v1980
        %v1987 = vsub.f32 %v1956, %v1980
        %v1988 = vsub.f32 %v1958, %v1980
        %v1989 = vmul.f32 %v1981, 1.442695
        %v1990 = vpow.pop %v1989
        %v1991 = vmul.f32 %v1982, 1.442695
        %v1992 = vpow.pop %v1991
        %v1993 = vmul.f32 %v1983, 1.442695
        %v1994 = vpow.pop %v1993
        %v1995 = vmul.f32 %v1984, 1.442695
        %v1996 = vpow.pop %v1995
        %v1997 = vmul.f32 %v1985, 1.442695
        %v1998 = vpow.pop %v1997
        %v1999 = vmul.f32 %v1986, 1.442695
        %v2000 = vpow.pop %v1999
        %v2001 = vmul.f32 %v1987, 1.442695
        %v2002 = vpow.pop %v2001
        %v2003 = vmul.f32 %v1988, 1.442695
        %v2004 = vpow.pop %v2003
        %v2005 = vsel %vm615, %v1990, 0.0
        %v2006 = vsel %vm615, %v1992, 0.0
        %v2007 = vadd.f32 %v2005, %v2006
        %v2008 = vsel %vm615, %v1994, 0.0
        %v2009 = vadd.f32 %v2007, %v2008
        %v2010 = vsel %vm615, %v1996, 0.0
        %v2011 = vadd.f32 %v2009, %v2010
        %v2012 = vsel %vm615, %v1998, 0.0
        %v2013 = vadd.f32 %v2011, %v2012
        %v2014 = vsel %vm615, %v2000, 0.0
        %v2015 = vadd.f32 %v2013, %v2014
        %v2016 = vsel %vm615, %v2002, 0.0
        %v2017 = vadd.f32 %v2015, %v2016
        %v2018 = vsel %vm615, %v2004, 0.0
        %v2019 = vadd.f32 %v2017, %v2018
        %v2020 = vrot.slane %v2019, 4
        %v2021 = vadd.f32 %v2019, %v2020
        %v2022 = vrot.slane %v2021, 2
        %v2023 = vadd.f32 %v2021, %v2022
        %v2024 = vrot.slane %v2023, 1
        %v2025 = vadd.f32 %v2023, %v2024
        %v2026 = vrcp.pop %v2025
        %v2027 = vmul.f32 %v1990, %v2026
        %v2028 = vmul.f32 %v1992, %v2026
        %v2029 = vmul.f32 %v1994, %v2026
        %v2030 = vmul.f32 %v1996, %v2026
        %v2031 = vmul.f32 %v1998, %v2026
        %v2032 = vmul.f32 %v2000, %v2026
        %v2033 = vmul.f32 %v2002, %v2026
        %v2034 = vmul.f32 %v2004, %v2026
        %v2035 = vsel %vm954, %v1941, -inf
        %2036 = vmax.xlane.f32.xlu0 %v2035
        %v2037 = vpop.xlane.xlu0 %2036
        %v2038 = vsel %vm954, %v1943, -inf
        %2039 = vmax.xlane.f32.xlu0 %v2038
        %v2040 = vpop.xlane.xlu0 %2039
        %v2041 = vsel %vm954, %v1946, -inf
        %2042 = vmax.xlane.f32.xlu0 %v2041
        %v2043 = vpop.xlane.xlu0 %2042
        %v2044 = vsel %vm954, %v1948, -inf
        %2045 = vmax.xlane.f32.xlu0 %v2044
        %v2046 = vpop.xlane.xlu0 %2045
        %v2047 = vsel %vm954, %v1951, -inf
        %2048 = vmax.xlane.f32.xlu0 %v2047
        %v2049 = vpop.xlane.xlu0 %2048
        %v2050 = vsel %vm954, %v1953, -inf
        %2051 = vmax.xlane.f32.xlu0 %v2050
        %v2052 = vpop.xlane.xlu0 %2051
        %v2053 = vsel %vm954, %v1956, -inf
        %2054 = vmax.xlane.f32.xlu0 %v2053
        %v2055 = vpop.xlane.xlu0 %2054
        %v2056 = vsel %vm954, %v1958, -inf
        %2057 = vmax.xlane.f32.xlu0 %v2056
        %v2058 = vpop.xlane.xlu0 %2057
        %v2059 = vsub.f32 %v1941, %v2037
        %v2060 = vsub.f32 %v1943, %v2040
        %v2061 = vsub.f32 %v1946, %v2043
        %v2062 = vsub.f32 %v1948, %v2046
        %v2063 = vsub.f32 %v1951, %v2049
        %v2064 = vsub.f32 %v1953, %v2052
        %v2065 = vsub.f32 %v1956, %v2055
        %v2066 = vsub.f32 %v1958, %v2058
        %v2067 = vmul.f32 %v2059, 1.442695
        %v2068 = vpow.pop %v2067
        %v2069 = vmul.f32 %v2060, 1.442695
        %v2070 = vpow.pop %v2069
        %v2071 = vmul.f32 %v2061, 1.442695
        %v2072 = vpow.pop %v2071
        %v2073 = vmul.f32 %v2062, 1.442695
        %v2074 = vpow.pop %v2073
        %v2075 = vmul.f32 %v2063, 1.442695
        %v2076 = vpow.pop %v2075
        %v2077 = vmul.f32 %v2064, 1.442695
        %v2078 = vpow.pop %v2077
        %v2079 = vmul.f32 %v2065, 1.442695
        %v2080 = vpow.pop %v2079
        %v2081 = vmul.f32 %v2066, 1.442695
        %v2082 = vpow.pop %v2081
        %2091 = vrot.lane.b32.xlu0 %v2068, 96
        %v2092 = vpop.permute.xlu0 %2091
        %2093 = vrot.lane.b32.xlu0 %v2070, 96
        %v2094 = vpop.permute.xlu0 %2093
        %2095 = vrot.lane.b32.xlu0 %v2072, 96
        %v2096 = vpop.permute.xlu0 %2095
        %2097 = vrot.lane.b32.xlu0 %v2074, 96
        %v2098 = vpop.permute.xlu0 %2097
        %2099 = vrot.lane.b32.xlu0 %v2076, 96
        %v2100 = vpop.permute.xlu0 %2099
        %2101 = vrot.lane.b32.xlu0 %v2078, 96
        %v2102 = vpop.permute.xlu0 %2101
        %2103 = vrot.lane.b32.xlu0 %v2080, 96
        %v2104 = vpop.permute.xlu0 %2103
        %2105 = vrot.lane.b32.xlu0 %v2082, 96
        %v2106 = vpop.permute.xlu0 %2105
        %v2115 = vsel %vm615, %v2092, 0.0
        %2116 = vadd.xlane.f32.xlu0 %v2115
        %v2117 = vpop.xlane.xlu0 %2116
        %v2118 = vsel %vm615, %v2094, 0.0
        %2119 = vadd.xlane.f32.xlu0 %v2118
        %v2120 = vpop.xlane.xlu0 %2119
        %v2121 = vsel %vm615, %v2096, 0.0
        %2122 = vadd.xlane.f32.xlu0 %v2121
        %v2123 = vpop.xlane.xlu0 %2122
        %v2124 = vsel %vm615, %v2098, 0.0
        %2125 = vadd.xlane.f32.xlu0 %v2124
        %v2126 = vpop.xlane.xlu0 %2125
        %v2127 = vsel %vm615, %v2100, 0.0
        %2128 = vadd.xlane.f32.xlu0 %v2127
        %v2129 = vpop.xlane.xlu0 %2128
        %v2130 = vsel %vm615, %v2102, 0.0
        %2131 = vadd.xlane.f32.xlu0 %v2130
        %v2132 = vpop.xlane.xlu0 %2131
        %v2133 = vsel %vm615, %v2104, 0.0
        %2134 = vadd.xlane.f32.xlu0 %v2133
        %v2135 = vpop.xlane.xlu0 %2134
        %v2136 = vsel %vm615, %v2106, 0.0
        %2137 = vadd.xlane.f32.xlu0 %v2136
        %v2138 = vpop.xlane.xlu0 %2137
        %v2139 = vrcp.pop %v2117
        %v2140 = vrcp.pop %v2120
        %v2141 = vrcp.pop %v2123
        %v2142 = vrcp.pop %v2126
        %v2143 = vrcp.pop %v2129
        %v2144 = vrcp.pop %v2132
        %v2145 = vrcp.pop %v2135
        %v2146 = vrcp.pop %v2138
        %v2147 = vmul.f32 %v2068, %v2139
        %v2148 = vmul.f32 %v2070, %v2140
        %v2149 = vmul.f32 %v2072, %v2141
        %v2150 = vmul.f32 %v2074, %v2142
        %v2151 = vmul.f32 %v2076, %v2143
        %v2152 = vmul.f32 %v2078, %v2144
        %v2153 = vmul.f32 %v2080, %v2145
        %v2154 = vmul.f32 %v2082, %v2146
        %v2155 = vpack.c.bf16 %v2028, %v2027
        %v2156 = vpack.c.bf16 %v2030, %v2029
        %v2157 = vpack.c.bf16 %v2032, %v2031
        %v2158 = vpack.c.bf16 %v2034, %v2033
        %v2159 = vpack.c.bf16 %v1943, %v1941
        %v2160 = vpack.c.bf16 %v1948, %v1946
        %v2161 = vpack.c.bf16 %v1953, %v1951
        %v2162 = vpack.c.bf16 %v1958, %v1956
        %2163 = vxpose.xlu0.c.b16.start [1/8] %v2155, 128
        %2164 = vxpose.xlu0.c.b16.cont [2/8] %v2156, 128
        %2165 = vxpose.xlu0.c.b16.cont [3/8] %v2157, 128
        %2166 = vxpose.xlu0.c.b16.cont [4/8] %v2158, 128
        %2167 = vxpose.xlu0.c.b16.cont [5/8] 0, 128
        %2168 = vxpose.xlu0.c.b16.cont [6/8] 0, 128
        %2169 = vxpose.xlu0.c.b16.cont [7/8] 0, 128
        %2170 = vxpose.xlu0.c.b16.end [8/8] 0, 128
        %v2171 = vpop.trf.xlu0
        %v2172 = vpop.trf.xlu0
        %v2173 = vpop.trf.xlu0
        %v2174 = vpop.trf.xlu0
        %v2175 = vpop.trf.xlu0
        %v2176 = vpop.trf.xlu0
        %v2177 = vpop.trf.xlu0
        %v2178 = vpop.trf.xlu0
        %2183 = vrot.lane.b32.xlu0 %v2159, 64
        %v2184 = vpop.permute.xlu0 %2183
        %2185 = vrot.lane.b32.xlu0 %v2160, 64
        %v2186 = vpop.permute.xlu0 %2185
        %2187 = vrot.lane.b32.xlu0 %v2161, 64
        %v2188 = vpop.permute.xlu0 %2187
        %2189 = vrot.lane.b32.xlu0 %v2162, 64
        %v2190 = vpop.permute.xlu0 %2189
        %v2196 = vsel %vm1115, %v2171, 0
        %v2199 = vsel %vm1115, %v2172, 0
        %2201 = vmatpush.bf16.msra.mxu0 0
        %2202 = vmatpush.bf16.msra.mxu0 0
        %2203 = vmatpush.bf16.msra.mxu0 0
        %2204 = vmatpush.bf16.msra.mxu0 0
        %2205 = vmatpush.bf16.msra.mxu0 %v2190
        %2206 = vmatpush.bf16.msra.mxu0 %v2188
        %2207 = vmatpush.bf16.msra.mxu0 %v2186
        %2208 = vmatpush.bf16.msra.mxu0 %v2184
        %2209 = vmatmul.bf16.gmra.mxu0 %v2196
        %v2210 = vpop.f32.mrf.mxu0
        %v2211 = vadd.f32 0.0, %v2210
        %v2212 = vpop.f32.mrf.mxu0
        %v2213 = vadd.f32 0.0, %v2212
        %2214 = vmatmul.bf16.gmra.mxu0 %v2199
        %v2215 = vpop.f32.mrf.mxu0
        %v2216 = vadd.f32 0.0, %v2215
        %v2217 = vpop.f32.mrf.mxu0
        %v2218 = vadd.f32 0.0, %v2217
        %2219 = vdwg.mxu0
        %v2220 = vpack.c.bf16 %v2148, %v2147
        %v2221 = vpack.c.bf16 %v2150, %v2149
        %v2222 = vpack.c.bf16 %v2152, %v2151
        %v2223 = vpack.c.bf16 %v2154, %v2153
        %v2224 = vpack.c.bf16 %v2213, %v2211
        %v2225 = vpack.c.bf16 %v2218, %v2216
        %2230 = vrot.lane.b32.xlu0 %v2220, 96
        %v2231 = vpop.permute.xlu0 %2230
        %2232 = vrot.lane.b32.xlu0 %v2221, 96
        %v2233 = vpop.permute.xlu0 %2232
        %2234 = vrot.lane.b32.xlu0 %v2222, 96
        %v2235 = vpop.permute.xlu0 %2234
        %2236 = vrot.lane.b32.xlu0 %v2223, 96
        %v2237 = vpop.permute.xlu0 %2236
        %v2239 = vsel %vm615, %v2231, 0
        %v2242 = vsel %vm615, %v2233, 0
        %v2245 = vsel %vm615, %v2235, 0
        %v2248 = vsel %vm615, %v2237, 0
        %2250 = vmatpush.bf16.msra.mxu0 0
        %2251 = vmatpush.bf16.msra.mxu0 0
        %2252 = vmatpush.bf16.msra.mxu0 0
        %2253 = vmatpush.bf16.msra.mxu0 0
        %2254 = vmatpush.bf16.msra.mxu0 0
        %2255 = vmatpush.bf16.msra.mxu0 0
        %2256 = vmatpush.bf16.msra.mxu0 %v2225
        %2257 = vmatpush.bf16.msra.mxu0 %v2224
        %2258 = vmatmul.bf16.gmra.mxu0 %v2239
        %v2259 = vpop.f32.mrf.mxu0
        %v2260 = vadd.f32 0.0, %v2259
        %v2261 = vpop.f32.mrf.mxu0
        %v2262 = vadd.f32 0.0, %v2261
        %2263 = vmatmul.bf16.gmra.mxu0 %v2242
        %v2264 = vpop.f32.mrf.mxu0
        %v2265 = vadd.f32 0.0, %v2264
        %v2266 = vpop.f32.mrf.mxu0
        %v2267 = vadd.f32 0.0, %v2266
        %2268 = vmatmul.bf16.gmra.mxu0 %v2245
        %v2269 = vpop.f32.mrf.mxu0
        %v2270 = vadd.f32 0.0, %v2269
        %v2271 = vpop.f32.mrf.mxu0
        %v2272 = vadd.f32 0.0, %v2271
        %2273 = vmatmul.bf16.gmra.mxu0 %v2248
        %v2274 = vpop.f32.mrf.mxu0
        %v2275 = vadd.f32 0.0, %v2274
        %v2276 = vpop.f32.mrf.mxu0
        %v2277 = vadd.f32 0.0, %v2276
        %2278 = vdwg.mxu0
        %v2279 = vpack.c.bf16 %v2262, %v2260
        %v2280 = vpack.c.bf16 %v2267, %v2265
        %v2281 = vpack.c.bf16 %v2272, %v2270
        %v2282 = vpack.c.bf16 %v2277, %v2275
        %v2283 = vld [vmem:[%s8] sm:$0xf]
        %v2284 = vld [vmem:[%s8 + $0x4] sm:$0xf]
        %v2285 = vld [vmem:[%s8 + $0x8] sm:$0xf]
        %v2286 = vld [vmem:[%s8 + $0xc] sm:$0xf]
        %v2287 = vperm.slane %v480, 5
        %v2292 = vunpack.c.l.b16 %v2283
        %v2293 = vunpack.c.l.b16 %v2284
        %v2294 = vunpack.c.l.b16 %v2285
        %v2295 = vunpack.c.l.b16 %v2286
        %v2296 = vpack.c.b16 %v2293, %v2292
        %v2297 = vpack.c.b16 %v2295, %v2294
        %v2301 = vsel %vm615, %v2279, 0
        %v2304 = vsel %vm615, %v2280, 0
        %v2307 = vsel %vm615, %v2281, 0
        %v2310 = vsel %vm615, %v2282, 0
        %2312 = vmatpush.bf16.msra.mxu0 0
        %2313 = vmatpush.bf16.msra.mxu0 0
        %2314 = vmatpush.bf16.msra.mxu0 0
        %2315 = vmatpush.bf16.msra.mxu0 0
        %2316 = vmatpush.bf16.msra.mxu0 0
        %2317 = vmatpush.bf16.msra.mxu0 0
        %2318 = vmatpush.bf16.msra.mxu0 %v2297
        %2319 = vmatpush.bf16.msra.mxu0 %v2296
        %2320 = vmatmul.bf16.gmra.mxu0 %v2301
        %v2321 = vpop.f32.mrf.mxu0
        %v2322 = vadd.f32 %v2287, %v2321
        %v2323 = vpop.f32.mrf.mxu0
        %v2324 = vadd.f32 %v2287, %v2323
        %2325 = vmatmul.bf16.gmra.mxu0 %v2304
        %v2326 = vpop.f32.mrf.mxu0
        %v2327 = vadd.f32 %v2287, %v2326
        %v2328 = vpop.f32.mrf.mxu0
        %v2329 = vadd.f32 %v2287, %v2328
        %2330 = vmatmul.bf16.gmra.mxu0 %v2307
        %v2331 = vpop.f32.mrf.mxu0
        %v2332 = vadd.f32 %v2287, %v2331
        %v2333 = vpop.f32.mrf.mxu0
        %v2334 = vadd.f32 %v2287, %v2333
        %2335 = vmatmul.bf16.gmra.mxu0 %v2310
        %v2336 = vpop.f32.mrf.mxu0
        %v2337 = vadd.f32 %v2287, %v2336
        %v2338 = vpop.f32.mrf.mxu0
        %v2339 = vadd.f32 %v2287, %v2338
        %2340 = vdwg.mxu0
        %v2341 = vadd.f32 %v1696, %v2322
        %v2342 = vadd.f32 %v1697, %v2324
        %v2343 = vadd.f32 %v1698, %v2327
        %v2344 = vadd.f32 %v1699, %v2329
        %v2345 = vadd.f32 %v1700, %v2332
        %v2346 = vadd.f32 %v1701, %v2334
        %v2347 = vadd.f32 %v1702, %v2337
        %v2348 = vadd.f32 %v1703, %v2339
        %v2349 = vsel %vm615, %v2341, 0.0
        %2350 = vadd.xlane.f32.xlu0 %v2349
        %v2351 = vpop.xlane.xlu0 %2350
        %v2352 = vsel %vm615, %v2342, 0.0
        %2353 = vadd.xlane.f32.xlu0 %v2352
        %v2354 = vpop.xlane.xlu0 %2353
        %v2355 = vsel %vm615, %v2343, 0.0
        %2356 = vadd.xlane.f32.xlu0 %v2355
        %v2357 = vpop.xlane.xlu0 %2356
        %v2358 = vsel %vm615, %v2344, 0.0
        %2359 = vadd.xlane.f32.xlu0 %v2358
        %v2360 = vpop.xlane.xlu0 %2359
        %v2361 = vsel %vm615, %v2345, 0.0
        %2362 = vadd.xlane.f32.xlu0 %v2361
        %v2363 = vpop.xlane.xlu0 %2362
        %v2364 = vsel %vm615, %v2346, 0.0
        %2365 = vadd.xlane.f32.xlu0 %v2364
        %v2366 = vpop.xlane.xlu0 %2365
        %v2367 = vsel %vm615, %v2347, 0.0
        %2368 = vadd.xlane.f32.xlu0 %v2367
        %v2369 = vpop.xlane.xlu0 %2368
        %v2370 = vsel %vm615, %v2348, 0.0
        %2371 = vadd.xlane.f32.xlu0 %v2370
        %v2372 = vpop.xlane.xlu0 %2371
        %v2373 = vmul.f32 %v2351, %v646
        %v2374 = vmul.f32 %v2354, %v646
        %v2375 = vmul.f32 %v2357, %v646
        %v2376 = vmul.f32 %v2360, %v646
        %v2377 = vmul.f32 %v2363, %v646
        %v2378 = vmul.f32 %v2366, %v646
        %v2379 = vmul.f32 %v2369, %v646
        %v2380 = vmul.f32 %v2372, %v646
        %v2381 = vsub.f32 %v2341, %v2373
        %v2382 = vsub.f32 %v2342, %v2374
        %v2383 = vsub.f32 %v2343, %v2375
        %v2384 = vsub.f32 %v2344, %v2376
        %v2385 = vsub.f32 %v2345, %v2377
        %v2386 = vsub.f32 %v2346, %v2378
        %v2387 = vsub.f32 %v2347, %v2379
        %v2388 = vsub.f32 %v2348, %v2380
        %v2389 = vmul.f32 %v2381, %v2381
        %v2390 = vmul.f32 %v2382, %v2382
        %v2391 = vmul.f32 %v2383, %v2383
        %v2392 = vmul.f32 %v2384, %v2384
        %v2393 = vmul.f32 %v2385, %v2385
        %v2394 = vmul.f32 %v2386, %v2386
        %v2395 = vmul.f32 %v2387, %v2387
        %v2396 = vmul.f32 %v2388, %v2388
        %v2397 = vsel %vm615, %v2389, 0.0
        %2398 = vadd.xlane.f32.xlu0 %v2397
        %v2399 = vpop.xlane.xlu0 %2398
        %v2400 = vsel %vm615, %v2390, 0.0
        %2401 = vadd.xlane.f32.xlu0 %v2400
        %v2402 = vpop.xlane.xlu0 %2401
        %v2403 = vsel %vm615, %v2391, 0.0
        %2404 = vadd.xlane.f32.xlu0 %v2403
        %v2405 = vpop.xlane.xlu0 %2404
        %v2406 = vsel %vm615, %v2392, 0.0
        %2407 = vadd.xlane.f32.xlu0 %v2406
        %v2408 = vpop.xlane.xlu0 %2407
        %v2409 = vsel %vm615, %v2393, 0.0
        %2410 = vadd.xlane.f32.xlu0 %v2409
        %v2411 = vpop.xlane.xlu0 %2410
        %v2412 = vsel %vm615, %v2394, 0.0
        %2413 = vadd.xlane.f32.xlu0 %v2412
        %v2414 = vpop.xlane.xlu0 %2413
        %v2415 = vsel %vm615, %v2395, 0.0
        %2416 = vadd.xlane.f32.xlu0 %v2415
        %v2417 = vpop.xlane.xlu0 %2416
        %v2418 = vsel %vm615, %v2396, 0.0
        %2419 = vadd.xlane.f32.xlu0 %v2418
        %v2420 = vpop.xlane.xlu0 %2419
        %v2421 = vmul.f32 %v2399, %v646
        %v2422 = vmul.f32 %v2402, %v646
        %v2423 = vmul.f32 %v2405, %v646
        %v2424 = vmul.f32 %v2408, %v646
        %v2425 = vmul.f32 %v2411, %v646
        %v2426 = vmul.f32 %v2414, %v646
        %v2427 = vmul.f32 %v2417, %v646
        %v2428 = vmul.f32 %v2420, %v646
        %v2429 = vadd.f32 %v2421, 1e-05
        %v2430 = vadd.f32 %v2422, 1e-05
        %v2431 = vadd.f32 %v2423, 1e-05
        %v2432 = vadd.f32 %v2424, 1e-05
        %v2433 = vadd.f32 %v2425, 1e-05
        %v2434 = vadd.f32 %v2426, 1e-05
        %v2435 = vadd.f32 %v2427, 1e-05
        %v2436 = vadd.f32 %v2428, 1e-05
        %v2437 = vrsqrt.pop %v2429
        %v2438 = vmul.f32 %v2437, %v2429
        %v2439 = vmul.f32 %v2438, %v2437
        %v2440 = vmul.f32 0.5, %v2439
        %v2441 = vsub.f32 1.5, %v2440
        %v2442 = vmul.f32 %v2437, %v2441
        %vm2443 = vweird.f32 %v2429
        %vm2444 = vweird.f32 %v2437
        %vm2445 = vmor %vm2443, %vm2444
        %v2446 = vsel %vm2445, %v2437, %v2442
        %v2447 = vrsqrt.pop %v2430
        %v2448 = vmul.f32 %v2447, %v2430
        %v2449 = vmul.f32 %v2448, %v2447
        %v2450 = vmul.f32 0.5, %v2449
        %v2451 = vsub.f32 1.5, %v2450
        %v2452 = vmul.f32 %v2447, %v2451
        %vm2453 = vweird.f32 %v2430
        %vm2454 = vweird.f32 %v2447
        %vm2455 = vmor %vm2453, %vm2454
        %v2456 = vsel %vm2455, %v2447, %v2452
        %v2457 = vrsqrt.pop %v2431
        %v2458 = vmul.f32 %v2457, %v2431
        %v2459 = vmul.f32 %v2458, %v2457
        %v2460 = vmul.f32 0.5, %v2459
        %v2461 = vsub.f32 1.5, %v2460
        %v2462 = vmul.f32 %v2457, %v2461
        %vm2463 = vweird.f32 %v2431
        %vm2464 = vweird.f32 %v2457
        %vm2465 = vmor %vm2463, %vm2464
        %v2466 = vsel %vm2465, %v2457, %v2462
        %v2467 = vrsqrt.pop %v2432
        %v2468 = vmul.f32 %v2467, %v2432
        %v2469 = vmul.f32 %v2468, %v2467
        %v2470 = vmul.f32 0.5, %v2469
        %v2471 = vsub.f32 1.5, %v2470
        %v2472 = vmul.f32 %v2467, %v2471
        %vm2473 = vweird.f32 %v2432
        %vm2474 = vweird.f32 %v2467
        %vm2475 = vmor %vm2473, %vm2474
        %v2476 = vsel %vm2475, %v2467, %v2472
        %v2477 = vrsqrt.pop %v2433
        %v2478 = vmul.f32 %v2477, %v2433
        %v2479 = vmul.f32 %v2478, %v2477
        %v2480 = vmul.f32 0.5, %v2479
        %v2481 = vsub.f32 1.5, %v2480
        %v2482 = vmul.f32 %v2477, %v2481
        %vm2483 = vweird.f32 %v2433
        %vm2484 = vweird.f32 %v2477
        %vm2485 = vmor %vm2483, %vm2484
        %v2486 = vsel %vm2485, %v2477, %v2482
        %v2487 = vrsqrt.pop %v2434
        %v2488 = vmul.f32 %v2487, %v2434
        %v2489 = vmul.f32 %v2488, %v2487
        %v2490 = vmul.f32 0.5, %v2489
        %v2491 = vsub.f32 1.5, %v2490
        %v2492 = vmul.f32 %v2487, %v2491
        %vm2493 = vweird.f32 %v2434
        %vm2494 = vweird.f32 %v2487
        %vm2495 = vmor %vm2493, %vm2494
        %v2496 = vsel %vm2495, %v2487, %v2492
        %v2497 = vrsqrt.pop %v2435
        %v2498 = vmul.f32 %v2497, %v2435
        %v2499 = vmul.f32 %v2498, %v2497
        %v2500 = vmul.f32 0.5, %v2499
        %v2501 = vsub.f32 1.5, %v2500
        %v2502 = vmul.f32 %v2497, %v2501
        %vm2503 = vweird.f32 %v2435
        %vm2504 = vweird.f32 %v2497
        %vm2505 = vmor %vm2503, %vm2504
        %v2506 = vsel %vm2505, %v2497, %v2502
        %v2507 = vrsqrt.pop %v2436
        %v2508 = vmul.f32 %v2507, %v2436
        %v2509 = vmul.f32 %v2508, %v2507
        %v2510 = vmul.f32 0.5, %v2509
        %v2511 = vsub.f32 1.5, %v2510
        %v2512 = vmul.f32 %v2507, %v2511
        %vm2513 = vweird.f32 %v2436
        %vm2514 = vweird.f32 %v2507
        %vm2515 = vmor %vm2513, %vm2514
        %v2516 = vsel %vm2515, %v2507, %v2512
        %v2517 = vmul.f32 %v2381, %v2446
        %v2518 = vmul.f32 %v2382, %v2456
        %v2519 = vmul.f32 %v2383, %v2466
        %v2520 = vmul.f32 %v2384, %v2476
        %v2521 = vmul.f32 %v2385, %v2486
        %v2522 = vmul.f32 %v2386, %v2496
        %v2523 = vmul.f32 %v2387, %v2506
        %v2524 = vmul.f32 %v2388, %v2516
        %v2525 = vperm.slane %v480, 3
        %v2526 = vmul.f32 %v2517, %v2525
        %v2527 = vmul.f32 %v2518, %v2525
        %v2528 = vmul.f32 %v2519, %v2525
        %v2529 = vmul.f32 %v2520, %v2525
        %v2530 = vmul.f32 %v2521, %v2525
        %v2531 = vmul.f32 %v2522, %v2525
        %v2532 = vmul.f32 %v2523, %v2525
        %v2533 = vmul.f32 %v2524, %v2525
        %v2534 = vperm.slane %v480, 4
        %v2535 = vadd.f32 %v2526, %v2534
        %v2536 = vadd.f32 %v2527, %v2534
        %v2537 = vadd.f32 %v2528, %v2534
        %v2538 = vadd.f32 %v2529, %v2534
        %v2539 = vadd.f32 %v2530, %v2534
        %v2540 = vadd.f32 %v2531, %v2534
        %v2541 = vadd.f32 %v2532, %v2534
        %v2542 = vadd.f32 %v2533, %v2534
        %v2543 = vpack.c.bf16 %v2536, %v2535
        %v2544 = vpack.c.bf16 %v2538, %v2537
        %v2545 = vpack.c.bf16 %v2540, %v2539
        %v2546 = vpack.c.bf16 %v2542, %v2541
        %v2547 = vld [vmem:[%s9] sm:$0xf]
        %v2548 = vld [vmem:[%s9 + $0x4] sm:$0xf]
        %v2549 = vld [vmem:[%s9 + $0x8] sm:$0xf]
        %v2550 = vld [vmem:[%s9 + $0xc] sm:$0xf]
        %v2551 = vperm.slane %v481, 0
        %v2556 = vunpack.c.l.b16 %v2547
        %v2557 = vunpack.c.l.b16 %v2548
        %v2558 = vunpack.c.l.b16 %v2549
        %v2559 = vunpack.c.l.b16 %v2550
        %v2560 = vpack.c.b16 %v2557, %v2556
        %v2561 = vpack.c.b16 %v2559, %v2558
        %v2565 = vsel %vm615, %v2543, 0
        %v2568 = vsel %vm615, %v2544, 0
        %v2571 = vsel %vm615, %v2545, 0
        %v2574 = vsel %vm615, %v2546, 0
        %2576 = vmatpush.bf16.msra.mxu0 0
        %2577 = vmatpush.bf16.msra.mxu0 0
        %2578 = vmatpush.bf16.msra.mxu0 0
        %2579 = vmatpush.bf16.msra.mxu0 0
        %2580 = vmatpush.bf16.msra.mxu0 0
        %2581 = vmatpush.bf16.msra.mxu0 0
        %2582 = vmatpush.bf16.msra.mxu0 %v2561
        %2583 = vmatpush.bf16.msra.mxu0 %v2560
        %2584 = vmatmul.bf16.gmra.mxu0 %v2565
        %v2585 = vpop.f32.mrf.mxu0
        %v2586 = vadd.f32 %v2551, %v2585
        %v2587 = vpop.f32.mrf.mxu0
        %v2588 = vadd.f32 %v2551, %v2587
        %2589 = vmatmul.bf16.gmra.mxu0 %v2568
        %v2590 = vpop.f32.mrf.mxu0
        %v2591 = vadd.f32 %v2551, %v2590
        %v2592 = vpop.f32.mrf.mxu0
        %v2593 = vadd.f32 %v2551, %v2592
        %2594 = vmatmul.bf16.gmra.mxu0 %v2571
        %v2595 = vpop.f32.mrf.mxu0
        %v2596 = vadd.f32 %v2551, %v2595
        %v2597 = vpop.f32.mrf.mxu0
        %v2598 = vadd.f32 %v2551, %v2597
        %2599 = vmatmul.bf16.gmra.mxu0 %v2574
        %v2600 = vpop.f32.mrf.mxu0
        %v2601 = vadd.f32 %v2551, %v2600
        %v2602 = vpop.f32.mrf.mxu0
        %v2603 = vadd.f32 %v2551, %v2602
        %2604 = vdwg.mxu0
        %v2605 = vmul.f32 %v2586, %v2586
        %v2606 = vmul.f32 %v2588, %v2588
        %v2607 = vmul.f32 %v2591, %v2591
        %v2608 = vmul.f32 %v2593, %v2593
        %v2609 = vmul.f32 %v2596, %v2596
        %v2610 = vmul.f32 %v2598, %v2598
        %v2611 = vmul.f32 %v2601, %v2601
        %v2612 = vmul.f32 %v2603, %v2603
        %v2613 = vmul.f32 %v2586, %v2605
        %v2614 = vmul.f32 %v2588, %v2606
        %v2615 = vmul.f32 %v2591, %v2607
        %v2616 = vmul.f32 %v2593, %v2608
        %v2617 = vmul.f32 %v2596, %v2609
        %v2618 = vmul.f32 %v2598, %v2610
        %v2619 = vmul.f32 %v2601, %v2611
        %v2620 = vmul.f32 %v2603, %v2612
        %v2621 = vmul.f32 %v2613, 0.044715
        %v2622 = vmul.f32 %v2614, 0.044715
        %v2623 = vmul.f32 %v2615, 0.044715
        %v2624 = vmul.f32 %v2616, 0.044715
        %v2625 = vmul.f32 %v2617, 0.044715
        %v2626 = vmul.f32 %v2618, 0.044715
        %v2627 = vmul.f32 %v2619, 0.044715
        %v2628 = vmul.f32 %v2620, 0.044715
        %v2629 = vadd.f32 %v2586, %v2621
        %v2630 = vadd.f32 %v2588, %v2622
        %v2631 = vadd.f32 %v2591, %v2623
        %v2632 = vadd.f32 %v2593, %v2624
        %v2633 = vadd.f32 %v2596, %v2625
        %v2634 = vadd.f32 %v2598, %v2626
        %v2635 = vadd.f32 %v2601, %v2627
        %v2636 = vadd.f32 %v2603, %v2628
        %v2637 = vmul.f32 %v2629, 0.7978846
        %v2638 = vmul.f32 %v2630, 0.7978846
        %v2639 = vmul.f32 %v2631, 0.7978846
        %v2640 = vmul.f32 %v2632, 0.7978846
        %v2641 = vmul.f32 %v2633, 0.7978846
        %v2642 = vmul.f32 %v2634, 0.7978846
        %v2643 = vmul.f32 %v2635, 0.7978846
        %v2644 = vmul.f32 %v2636, 0.7978846
        %v2645 = vtanh.pop %v2637
        %v2646 = vtanh.pop %v2638
        %v2647 = vtanh.pop %v2639
        %v2648 = vtanh.pop %v2640
        %v2649 = vtanh.pop %v2641
        %v2650 = vtanh.pop %v2642
        %v2651 = vtanh.pop %v2643
        %v2652 = vtanh.pop %v2644
        %v2653 = vadd.f32 %v2645, 1.0
        %v2654 = vadd.f32 %v2646, 1.0
        %v2655 = vadd.f32 %v2647, 1.0
        %v2656 = vadd.f32 %v2648, 1.0
        %v2657 = vadd.f32 %v2649, 1.0
        %v2658 = vadd.f32 %v2650, 1.0
        %v2659 = vadd.f32 %v2651, 1.0
        %v2660 = vadd.f32 %v2652, 1.0
        %v2661 = vmul.f32 %v2653, 0.5
        %v2662 = vmul.f32 %v2654, 0.5
        %v2663 = vmul.f32 %v2655, 0.5
        %v2664 = vmul.f32 %v2656, 0.5
        %v2665 = vmul.f32 %v2657, 0.5
        %v2666 = vmul.f32 %v2658, 0.5
        %v2667 = vmul.f32 %v2659, 0.5
        %v2668 = vmul.f32 %v2660, 0.5
        %v2669 = vmul.f32 %v2586, %v2661
        %v2670 = vmul.f32 %v2588, %v2662
        %v2671 = vmul.f32 %v2591, %v2663
        %v2672 = vmul.f32 %v2593, %v2664
        %v2673 = vmul.f32 %v2596, %v2665
        %v2674 = vmul.f32 %v2598, %v2666
        %v2675 = vmul.f32 %v2601, %v2667
        %v2676 = vmul.f32 %v2603, %v2668
        %v2677 = vpack.c.bf16 %v2670, %v2669
        %v2678 = vpack.c.bf16 %v2672, %v2671
        %v2679 = vpack.c.bf16 %v2674, %v2673
        %v2680 = vpack.c.bf16 %v2676, %v2675
        %v2681 = vld [vmem:[%s10] sm:$0xf]
        %v2682 = vld [vmem:[%s10 + $0x4] sm:$0xf]
        %v2683 = vld [vmem:[%s10 + $0x8] sm:$0xf]
        %v2684 = vld [vmem:[%s10 + $0xc] sm:$0xf]
        %v2685 = vld [vmem:[%s10 + $0x10] sm:$0xf]
        %v2686 = vld [vmem:[%s10 + $0x14] sm:$0xf]
        %v2687 = vld [vmem:[%s10 + $0x18] sm:$0xf]
        %v2688 = vld [vmem:[%s10 + $0x1c] sm:$0xf]
        %v2689 = vld [vmem:[%s10 + $0x20] sm:$0xf]
        %v2690 = vld [vmem:[%s10 + $0x24] sm:$0xf]
        %v2691 = vld [vmem:[%s10 + $0x28] sm:$0xf]
        %v2692 = vld [vmem:[%s10 + $0x2c] sm:$0xf]
        %v2693 = vld [vmem:[%s10 + $0x30] sm:$0xf]
        %v2694 = vld [vmem:[%s10 + $0x34] sm:$0xf]
        %v2695 = vld [vmem:[%s10 + $0x38] sm:$0xf]
        %v2696 = vld [vmem:[%s10 + $0x3c] sm:$0xf]
        %v2697 = vperm.slane %v480, 6
        %v2714 = vunpack.c.l.b16 %v2681
        %v2715 = vunpack.c.l.b16 %v2682
        %v2716 = vunpack.c.l.b16 %v2683
        %v2717 = vunpack.c.l.b16 %v2684
        %v2718 = vunpack.c.l.b16 %v2685
        %v2719 = vunpack.c.l.b16 %v2686
        %v2720 = vunpack.c.l.b16 %v2687
        %v2721 = vunpack.c.l.b16 %v2688
        %v2722 = vunpack.c.l.b16 %v2689
        %v2723 = vunpack.c.l.b16 %v2690
        %v2724 = vunpack.c.l.b16 %v2691
        %v2725 = vunpack.c.l.b16 %v2692
        %v2726 = vunpack.c.l.b16 %v2693
        %v2727 = vunpack.c.l.b16 %v2694
        %v2728 = vunpack.c.l.b16 %v2695
        %v2729 = vunpack.c.l.b16 %v2696
        %v2730 = vpack.c.b16 %v2715, %v2714
        %v2731 = vpack.c.b16 %v2717, %v2716
        %v2732 = vpack.c.b16 %v2719, %v2718
        %v2733 = vpack.c.b16 %v2721, %v2720
        %v2734 = vpack.c.b16 %v2723, %v2722
        %v2735 = vpack.c.b16 %v2725, %v2724
        %v2736 = vpack.c.b16 %v2727, %v2726
        %v2737 = vpack.c.b16 %v2729, %v2728
        %2746 = vmatpush.bf16.msra.mxu0 %v2737
        %2747 = vmatpush.bf16.msra.mxu0 %v2736
        %2748 = vmatpush.bf16.msra.mxu0 %v2735
        %2749 = vmatpush.bf16.msra.mxu0 %v2734
        %2750 = vmatpush.bf16.msra.mxu0 %v2733
        %2751 = vmatpush.bf16.msra.mxu0 %v2732
        %2752 = vmatpush.bf16.msra.mxu0 %v2731
        %2753 = vmatpush.bf16.msra.mxu0 %v2730
        %2754 = vmatmul.bf16.gmra.mxu0 %v2677
        %v2755 = vpop.f32.mrf.mxu0
        %v2756 = vadd.f32 %v2697, %v2755
        %v2757 = vpop.f32.mrf.mxu0
        %v2758 = vadd.f32 %v2697, %v2757
        %2759 = vmatmul.bf16.gmra.mxu0 %v2678
        %v2760 = vpop.f32.mrf.mxu0
        %v2761 = vadd.f32 %v2697, %v2760
        %v2762 = vpop.f32.mrf.mxu0
        %v2763 = vadd.f32 %v2697, %v2762
        %2764 = vmatmul.bf16.gmra.mxu0 %v2679
        %v2765 = vpop.f32.mrf.mxu0
        %v2766 = vadd.f32 %v2697, %v2765
        %v2767 = vpop.f32.mrf.mxu0
        %v2768 = vadd.f32 %v2697, %v2767
        %2769 = vmatmul.bf16.gmra.mxu0 %v2680
        %v2770 = vpop.f32.mrf.mxu0
        %v2771 = vadd.f32 %v2697, %v2770
        %v2772 = vpop.f32.mrf.mxu0
        %v2773 = vadd.f32 %v2697, %v2772
        %2774 = vdwg.mxu0
        %v2775 = vadd.f32 %v2341, %v2756
        %v2776 = vadd.f32 %v2342, %v2758
        %v2777 = vadd.f32 %v2343, %v2761
        %v2778 = vadd.f32 %v2344, %v2763
        %v2779 = vadd.f32 %v2345, %v2766
        %v2780 = vadd.f32 %v2346, %v2768
        %v2781 = vadd.f32 %v2347, %v2771
        %v2782 = vadd.f32 %v2348, %v2773
        %v2783 = vpack.c.bf16 %v2776, %v2775
        %v2784 = vpack.c.bf16 %v2778, %v2777
        %v2785 = vpack.c.bf16 %v2780, %v2779
        %v2786 = vpack.c.bf16 %v2782, %v2781
        %v2787 = vld [vmem:[#allocation2] sm:$0xf]
        %v2788 = vld [vmem:[#allocation2 + $0x4] sm:$0xf]
        %v2789 = vld [vmem:[#allocation2 + $0x8] sm:$0xf]
        %v2790 = vld [vmem:[#allocation2 + $0xc] sm:$0xf]
        %v2795 = vunpack.c.l.b16 %v2787
        %v2796 = vunpack.c.l.b16 %v2788
        %v2797 = vunpack.c.l.b16 %v2789
        %v2798 = vunpack.c.l.b16 %v2790
        %v2799 = vpack.c.b16 %v2796, %v2795
        %v2800 = vpack.c.b16 %v2798, %v2797
        %v2804 = vsel %vm615, %v2783, 0
        %v2807 = vsel %vm615, %v2784, 0
        %v2810 = vsel %vm615, %v2785, 0
        %v2813 = vsel %vm615, %v2786, 0
        %2815 = vmatpush.bf16.msra.mxu0 0
        %2816 = vmatpush.bf16.msra.mxu0 0
        %2817 = vmatpush.bf16.msra.mxu0 0
        %2818 = vmatpush.bf16.msra.mxu0 0
        %2819 = vmatpush.bf16.msra.mxu0 0
        %2820 = vmatpush.bf16.msra.mxu0 0
        %2821 = vmatpush.bf16.msra.mxu0 %v2800
        %2822 = vmatpush.bf16.msra.mxu0 %v2799
        %2823 = vmatmul.bf16.gmra.mxu0 %v2804
        %v2824 = vpop.f32.mrf.mxu0
        %v2825 = vadd.f32 0.0, %v2824
        %v2826 = vpop.f32.mrf.mxu0
        %v2827 = vadd.f32 0.0, %v2826
        %2828 = vmatmul.bf16.gmra.mxu0 %v2807
        %v2829 = vpop.f32.mrf.mxu0
        %v2830 = vadd.f32 0.0, %v2829
        %v2831 = vpop.f32.mrf.mxu0
        %v2832 = vadd.f32 0.0, %v2831
        %2833 = vmatmul.bf16.gmra.mxu0 %v2810
        %v2834 = vpop.f32.mrf.mxu0
        %v2835 = vadd.f32 0.0, %v2834
        %v2836 = vpop.f32.mrf.mxu0
        %v2837 = vadd.f32 0.0, %v2836
        %2838 = vmatmul.bf16.gmra.mxu0 %v2813
        %v2839 = vpop.f32.mrf.mxu0
        %v2840 = vadd.f32 0.0, %v2839
        %v2841 = vpop.f32.mrf.mxu0
        %v2842 = vadd.f32 0.0, %v2841
        %2843 = vdwg.mxu0
        %v2844 = vsel %vm517, %v2825, 0.0
        %2845 = vadd.xlane.f32.xlu0 %v2844
        %v2846 = vpop.xlane.xlu0 %2845
        %v2847 = vsel %vm517, %v2827, 0.0
        %2848 = vadd.xlane.f32.xlu0 %v2847
        %v2849 = vpop.xlane.xlu0 %2848
        %v2850 = vsel %vm517, %v2830, 0.0
        %2851 = vadd.xlane.f32.xlu0 %v2850
        %v2852 = vpop.xlane.xlu0 %2851
        %v2853 = vsel %vm517, %v2832, 0.0
        %2854 = vadd.xlane.f32.xlu0 %v2853
        %v2855 = vpop.xlane.xlu0 %2854
        %v2856 = vsel %vm517, %v2835, 0.0
        %2857 = vadd.xlane.f32.xlu0 %v2856
        %v2858 = vpop.xlane.xlu0 %2857
        %v2859 = vsel %vm517, %v2837, 0.0
        %2860 = vadd.xlane.f32.xlu0 %v2859
        %v2861 = vpop.xlane.xlu0 %2860
        %v2862 = vsel %vm517, %v2840, 0.0
        %2863 = vadd.xlane.f32.xlu0 %v2862
        %v2864 = vpop.xlane.xlu0 %2863
        %v2865 = vsel %vm517, %v2842, 0.0
        %2866 = vadd.xlane.f32.xlu0 %v2865
        %v2867 = vpop.xlane.xlu0 %2866
        %v2868 = vrcp.pop 16.0
        %v2869 = vmul.f32 16.0, %v2868
        %v2870 = vsub.f32 1.0, %v2869
        %v2871 = vmul.f32 %v2868, %v2870
        %v2872 = vadd.f32 %v2868, %v2871
        %vm2873 = vweird.f32 %v2868
        %v2874 = vsel %vm2873, %v2868, %v2872
        %v2875 = vmul.f32 %v2846, %v2874
        %v2876 = vmul.f32 %v2849, %v2874
        %v2877 = vmul.f32 %v2852, %v2874
        %v2878 = vmul.f32 %v2855, %v2874
        %v2879 = vmul.f32 %v2858, %v2874
        %v2880 = vmul.f32 %v2861, %v2874
        %v2881 = vmul.f32 %v2864, %v2874
        %v2882 = vmul.f32 %v2867, %v2874
        %v2883 = vsub.f32 %v2825, %v2875
        %v2884 = vsub.f32 %v2827, %v2876
        %v2885 = vsub.f32 %v2830, %v2877
        %v2886 = vsub.f32 %v2832, %v2878
        %v2887 = vsub.f32 %v2835, %v2879
        %v2888 = vsub.f32 %v2837, %v2880
        %v2889 = vsub.f32 %v2840, %v2881
        %v2890 = vsub.f32 %v2842, %v2882
        %v2891 = vmul.f32 %v2883, %v2883
        %v2892 = vmul.f32 %v2884, %v2884
        %v2893 = vmul.f32 %v2885, %v2885
        %v2894 = vmul.f32 %v2886, %v2886
        %v2895 = vmul.f32 %v2887, %v2887
        %v2896 = vmul.f32 %v2888, %v2888
        %v2897 = vmul.f32 %v2889, %v2889
        %v2898 = vmul.f32 %v2890, %v2890
        %v2899 = vsel %vm517, %v2891, 0.0
        %2900 = vadd.xlane.f32.xlu0 %v2899
        %v2901 = vpop.xlane.xlu0 %2900
        %v2902 = vsel %vm517, %v2892, 0.0
        %2903 = vadd.xlane.f32.xlu0 %v2902
        %v2904 = vpop.xlane.xlu0 %2903
        %v2905 = vsel %vm517, %v2893, 0.0
        %2906 = vadd.xlane.f32.xlu0 %v2905
        %v2907 = vpop.xlane.xlu0 %2906
        %v2908 = vsel %vm517, %v2894, 0.0
        %2909 = vadd.xlane.f32.xlu0 %v2908
        %v2910 = vpop.xlane.xlu0 %2909
        %v2911 = vsel %vm517, %v2895, 0.0
        %2912 = vadd.xlane.f32.xlu0 %v2911
        %v2913 = vpop.xlane.xlu0 %2912
        %v2914 = vsel %vm517, %v2896, 0.0
        %2915 = vadd.xlane.f32.xlu0 %v2914
        %v2916 = vpop.xlane.xlu0 %2915
        %v2917 = vsel %vm517, %v2897, 0.0
        %2918 = vadd.xlane.f32.xlu0 %v2917
        %v2919 = vpop.xlane.xlu0 %2918
        %v2920 = vsel %vm517, %v2898, 0.0
        %2921 = vadd.xlane.f32.xlu0 %v2920
        %v2922 = vpop.xlane.xlu0 %2921
        %v2923 = vmul.f32 %v2901, %v2874
        %v2924 = vmul.f32 %v2904, %v2874
        %v2925 = vmul.f32 %v2907, %v2874
        %v2926 = vmul.f32 %v2910, %v2874
        %v2927 = vmul.f32 %v2913, %v2874
        %v2928 = vmul.f32 %v2916, %v2874
        %v2929 = vmul.f32 %v2919, %v2874
        %v2930 = vmul.f32 %v2922, %v2874
        %v2931 = vadd.f32 %v2923, 1e-05
        %v2932 = vadd.f32 %v2924, 1e-05
        %v2933 = vadd.f32 %v2925, 1e-05
        %v2934 = vadd.f32 %v2926, 1e-05
        %v2935 = vadd.f32 %v2927, 1e-05
        %v2936 = vadd.f32 %v2928, 1e-05
        %v2937 = vadd.f32 %v2929, 1e-05
        %v2938 = vadd.f32 %v2930, 1e-05
        %v2939 = vrsqrt.pop %v2931
        %v2940 = vmul.f32 %v2939, %v2931
        %v2941 = vmul.f32 %v2940, %v2939
        %v2942 = vmul.f32 0.5, %v2941
        %v2943 = vsub.f32 1.5, %v2942
        %v2944 = vmul.f32 %v2939, %v2943
        %vm2945 = vweird.f32 %v2931
        %vm2946 = vweird.f32 %v2939
        %vm2947 = vmor %vm2945, %vm2946
        %v2948 = vsel %vm2947, %v2939, %v2944
        %v2949 = vrsqrt.pop %v2932
        %v2950 = vmul.f32 %v2949, %v2932
        %v2951 = vmul.f32 %v2950, %v2949
        %v2952 = vmul.f32 0.5, %v2951
        %v2953 = vsub.f32 1.5, %v2952
        %v2954 = vmul.f32 %v2949, %v2953
        %vm2955 = vweird.f32 %v2932
        %vm2956 = vweird.f32 %v2949
        %vm2957 = vmor %vm2955, %vm2956
        %v2958 = vsel %vm2957, %v2949, %v2954
        %v2959 = vrsqrt.pop %v2933
        %v2960 = vmul.f32 %v2959, %v2933
        %v2961 = vmul.f32 %v2960, %v2959
        %v2962 = vmul.f32 0.5, %v2961
        %v2963 = vsub.f32 1.5, %v2962
        %v2964 = vmul.f32 %v2959, %v2963
        %vm2965 = vweird.f32 %v2933
        %vm2966 = vweird.f32 %v2959
        %vm2967 = vmor %vm2965, %vm2966
        %v2968 = vsel %vm2967, %v2959, %v2964
        %v2969 = vrsqrt.pop %v2934
        %v2970 = vmul.f32 %v2969, %v2934
        %v2971 = vmul.f32 %v2970, %v2969
        %v2972 = vmul.f32 0.5, %v2971
        %v2973 = vsub.f32 1.5, %v2972
        %v2974 = vmul.f32 %v2969, %v2973
        %vm2975 = vweird.f32 %v2934
        %vm2976 = vweird.f32 %v2969
        %vm2977 = vmor %vm2975, %vm2976
        %v2978 = vsel %vm2977, %v2969, %v2974
        %v2979 = vrsqrt.pop %v2935
        %v2980 = vmul.f32 %v2979, %v2935
        %v2981 = vmul.f32 %v2980, %v2979
        %v2982 = vmul.f32 0.5, %v2981
        %v2983 = vsub.f32 1.5, %v2982
        %v2984 = vmul.f32 %v2979, %v2983
        %vm2985 = vweird.f32 %v2935
        %vm2986 = vweird.f32 %v2979
        %vm2987 = vmor %vm2985, %vm2986
        %v2988 = vsel %vm2987, %v2979, %v2984
        %v2989 = vrsqrt.pop %v2936
        %v2990 = vmul.f32 %v2989, %v2936
        %v2991 = vmul.f32 %v2990, %v2989
        %v2992 = vmul.f32 0.5, %v2991
        %v2993 = vsub.f32 1.5, %v2992
        %v2994 = vmul.f32 %v2989, %v2993
        %vm2995 = vweird.f32 %v2936
        %vm2996 = vweird.f32 %v2989
        %vm2997 = vmor %vm2995, %vm2996
        %v2998 = vsel %vm2997, %v2989, %v2994
        %v2999 = vrsqrt.pop %v2937
        %v3000 = vmul.f32 %v2999, %v2937
        %v3001 = vmul.f32 %v3000, %v2999
        %v3002 = vmul.f32 0.5, %v3001
        %v3003 = vsub.f32 1.5, %v3002
        %v3004 = vmul.f32 %v2999, %v3003
        %vm3005 = vweird.f32 %v2937
        %vm3006 = vweird.f32 %v2999
        %vm3007 = vmor %vm3005, %vm3006
        %v3008 = vsel %vm3007, %v2999, %v3004
        %v3009 = vrsqrt.pop %v2938
        %v3010 = vmul.f32 %v3009, %v2938
        %v3011 = vmul.f32 %v3010, %v3009
        %v3012 = vmul.f32 0.5, %v3011
        %v3013 = vsub.f32 1.5, %v3012
        %v3014 = vmul.f32 %v3009, %v3013
        %vm3015 = vweird.f32 %v2938
        %vm3016 = vweird.f32 %v3009
        %vm3017 = vmor %vm3015, %vm3016
        %v3018 = vsel %vm3017, %v3009, %v3014
        %v3019 = vmul.f32 %v2883, %v2948
        %v3020 = vmul.f32 %v2884, %v2958
        %v3021 = vmul.f32 %v2885, %v2968
        %v3022 = vmul.f32 %v2886, %v2978
        %v3023 = vmul.f32 %v2887, %v2988
        %v3024 = vmul.f32 %v2888, %v2998
        %v3025 = vmul.f32 %v2889, %v3008
        %v3026 = vmul.f32 %v2890, %v3018
        %v3027 = vperm.slane %v481, 1
        %v3028 = vmul.f32 %v3019, %v3027
        %v3029 = vmul.f32 %v3020, %v3027
        %v3030 = vmul.f32 %v3021, %v3027
        %v3031 = vmul.f32 %v3022, %v3027
        %v3032 = vmul.f32 %v3023, %v3027
        %v3033 = vmul.f32 %v3024, %v3027
        %v3034 = vmul.f32 %v3025, %v3027
        %v3035 = vmul.f32 %v3026, %v3027
        %v3036 = vperm.slane %v481, 2
        %v3037 = vadd.f32 %v3028, %v3036
        %v3038 = vadd.f32 %v3029, %v3036
        %v3039 = vadd.f32 %v3030, %v3036
        %v3040 = vadd.f32 %v3031, %v3036
        %v3041 = vadd.f32 %v3032, %v3036
        %v3042 = vadd.f32 %v3033, %v3036
        %v3043 = vadd.f32 %v3034, %v3036
        %v3044 = vadd.f32 %v3035, %v3036
        %3045 = vst.msk [vmem:[%s477] sm:$0xff] %vm517, %v3037
        %3046 = vst.msk [vmem:[%s477 + $0x8] sm:$0xff] %vm517, %v3038
        %3047 = vst.msk [vmem:[%s477 + $0x10] sm:$0xff] %vm517, %v3039
        %3048 = vst.msk [vmem:[%s477 + $0x18] sm:$0xff] %vm517, %v3040
        %3049 = vst.msk [vmem:[%s477 + $0x20] sm:$0xff] %vm517, %v3041
        %3050 = vst.msk [vmem:[%s477 + $0x28] sm:$0xff] %vm517, %v3042
        %3051 = vst.msk [vmem:[%s477 + $0x30] sm:$0xff] %vm517, %v3043
        %3052 = vst.msk [vmem:[%s477 + $0x38] sm:$0xff] %vm517, %v3044
        %3061 = vrot.lane.b32.xlu0 %v2825, 112
        %v3062 = vpop.permute.xlu0 %3061
        %3063 = vrot.lane.b32.xlu0 %v2827, 112
        %v3064 = vpop.permute.xlu0 %3063
        %3065 = vrot.lane.b32.xlu0 %v2830, 112
        %v3066 = vpop.permute.xlu0 %3065
        %3067 = vrot.lane.b32.xlu0 %v2832, 112
        %v3068 = vpop.permute.xlu0 %3067
        %3069 = vrot.lane.b32.xlu0 %v2835, 112
        %v3070 = vpop.permute.xlu0 %3069
        %3071 = vrot.lane.b32.xlu0 %v2837, 112
        %v3072 = vpop.permute.xlu0 %3071
        %3073 = vrot.lane.b32.xlu0 %v2840, 112
        %v3074 = vpop.permute.xlu0 %3073
        %3075 = vrot.lane.b32.xlu0 %v2842, 112
        %v3076 = vpop.permute.xlu0 %3075
        %v3085 = vsel %vm517, %v3062, 0.0
        %3086 = vadd.xlane.f32.xlu0 %v3085
        %v3087 = vpop.xlane.xlu0 %3086
        %v3088 = vsel %vm517, %v3064, 0.0
        %3089 = vadd.xlane.f32.xlu0 %v3088
        %v3090 = vpop.xlane.xlu0 %3089
        %v3091 = vsel %vm517, %v3066, 0.0
        %3092 = vadd.xlane.f32.xlu0 %v3091
        %v3093 = vpop.xlane.xlu0 %3092
        %v3094 = vsel %vm517, %v3068, 0.0
        %3095 = vadd.xlane.f32.xlu0 %v3094
        %v3096 = vpop.xlane.xlu0 %3095
        %v3097 = vsel %vm517, %v3070, 0.0
        %3098 = vadd.xlane.f32.xlu0 %v3097
        %v3099 = vpop.xlane.xlu0 %3098
        %v3100 = vsel %vm517, %v3072, 0.0
        %3101 = vadd.xlane.f32.xlu0 %v3100
        %v3102 = vpop.xlane.xlu0 %3101
        %v3103 = vsel %vm517, %v3074, 0.0
        %3104 = vadd.xlane.f32.xlu0 %v3103
        %v3105 = vpop.xlane.xlu0 %3104
        %v3106 = vsel %vm517, %v3076, 0.0
        %3107 = vadd.xlane.f32.xlu0 %v3106
        %v3108 = vpop.xlane.xlu0 %3107
        %v3109 = vmul.f32 %v3087, %v2874
        %v3110 = vmul.f32 %v3090, %v2874
        %v3111 = vmul.f32 %v3093, %v2874
        %v3112 = vmul.f32 %v3096, %v2874
        %v3113 = vmul.f32 %v3099, %v2874
        %v3114 = vmul.f32 %v3102, %v2874
        %v3115 = vmul.f32 %v3105, %v2874
        %v3116 = vmul.f32 %v3108, %v2874
        %v3117 = vsub.f32 %v2825, %v3109
        %v3118 = vsub.f32 %v2827, %v3110
        %v3119 = vsub.f32 %v2830, %v3111
        %v3120 = vsub.f32 %v2832, %v3112
        %v3121 = vsub.f32 %v2835, %v3113
        %v3122 = vsub.f32 %v2837, %v3114
        %v3123 = vsub.f32 %v2840, %v3115
        %v3124 = vsub.f32 %v2842, %v3116
        %v3125 = vmul.f32 %v3117, %v3117
        %v3126 = vmul.f32 %v3118, %v3118
        %v3127 = vmul.f32 %v3119, %v3119
        %v3128 = vmul.f32 %v3120, %v3120
        %v3129 = vmul.f32 %v3121, %v3121
        %v3130 = vmul.f32 %v3122, %v3122
        %v3131 = vmul.f32 %v3123, %v3123
        %v3132 = vmul.f32 %v3124, %v3124
        %3141 = vrot.lane.b32.xlu0 %v3125, 112
        %v3142 = vpop.permute.xlu0 %3141
        %3143 = vrot.lane.b32.xlu0 %v3126, 112
        %v3144 = vpop.permute.xlu0 %3143
        %3145 = vrot.lane.b32.xlu0 %v3127, 112
        %v3146 = vpop.permute.xlu0 %3145
        %3147 = vrot.lane.b32.xlu0 %v3128, 112
        %v3148 = vpop.permute.xlu0 %3147
        %3149 = vrot.lane.b32.xlu0 %v3129, 112
        %v3150 = vpop.permute.xlu0 %3149
        %3151 = vrot.lane.b32.xlu0 %v3130, 112
        %v3152 = vpop.permute.xlu0 %3151
        %3153 = vrot.lane.b32.xlu0 %v3131, 112
        %v3154 = vpop.permute.xlu0 %3153
        %3155 = vrot.lane.b32.xlu0 %v3132, 112
        %v3156 = vpop.permute.xlu0 %3155
        %v3165 = vsel %vm517, %v3142, 0.0
        %3166 = vadd.xlane.f32.xlu0 %v3165
        %v3167 = vpop.xlane.xlu0 %3166
        %v3168 = vsel %vm517, %v3144, 0.0
        %3169 = vadd.xlane.f32.xlu0 %v3168
        %v3170 = vpop.xlane.xlu0 %3169
        %v3171 = vsel %vm517, %v3146, 0.0
        %3172 = vadd.xlane.f32.xlu0 %v3171
        %v3173 = vpop.xlane.xlu0 %3172
        %v3174 = vsel %vm517, %v3148, 0.0
        %3175 = vadd.xlane.f32.xlu0 %v3174
        %v3176 = vpop.xlane.xlu0 %3175
        %v3177 = vsel %vm517, %v3150, 0.0
        %3178 = vadd.xlane.f32.xlu0 %v3177
        %v3179 = vpop.xlane.xlu0 %3178
        %v3180 = vsel %vm517, %v3152, 0.0
        %3181 = vadd.xlane.f32.xlu0 %v3180
        %v3182 = vpop.xlane.xlu0 %3181
        %v3183 = vsel %vm517, %v3154, 0.0
        %3184 = vadd.xlane.f32.xlu0 %v3183
        %v3185 = vpop.xlane.xlu0 %3184
        %v3186 = vsel %vm517, %v3156, 0.0
        %3187 = vadd.xlane.f32.xlu0 %v3186
        %v3188 = vpop.xlane.xlu0 %3187
        %v3189 = vmul.f32 %v3167, %v2874
        %v3190 = vmul.f32 %v3170, %v2874
        %v3191 = vmul.f32 %v3173, %v2874
        %v3192 = vmul.f32 %v3176, %v2874
        %v3193 = vmul.f32 %v3179, %v2874
        %v3194 = vmul.f32 %v3182, %v2874
        %v3195 = vmul.f32 %v3185, %v2874
        %v3196 = vmul.f32 %v3188, %v2874
        %v3197 = vadd.f32 %v3189, 1e-05
        %v3198 = vadd.f32 %v3190, 1e-05
        %v3199 = vadd.f32 %v3191, 1e-05
        %v3200 = vadd.f32 %v3192, 1e-05
        %v3201 = vadd.f32 %v3193, 1e-05
        %v3202 = vadd.f32 %v3194, 1e-05
        %v3203 = vadd.f32 %v3195, 1e-05
        %v3204 = vadd.f32 %v3196, 1e-05
        %v3205 = vrsqrt.pop %v3197
        %v3206 = vmul.f32 %v3205, %v3197
        %v3207 = vmul.f32 %v3206, %v3205
        %v3208 = vmul.f32 0.5, %v3207
        %v3209 = vsub.f32 1.5, %v3208
        %v3210 = vmul.f32 %v3205, %v3209
        %vm3211 = vweird.f32 %v3197
        %vm3212 = vweird.f32 %v3205
        %vm3213 = vmor %vm3211, %vm3212
        %v3214 = vsel %vm3213, %v3205, %v3210
        %v3215 = vrsqrt.pop %v3198
        %v3216 = vmul.f32 %v3215, %v3198
        %v3217 = vmul.f32 %v3216, %v3215
        %v3218 = vmul.f32 0.5, %v3217
        %v3219 = vsub.f32 1.5, %v3218
        %v3220 = vmul.f32 %v3215, %v3219
        %vm3221 = vweird.f32 %v3198
        %vm3222 = vweird.f32 %v3215
        %vm3223 = vmor %vm3221, %vm3222
        %v3224 = vsel %vm3223, %v3215, %v3220
        %v3225 = vrsqrt.pop %v3199
        %v3226 = vmul.f32 %v3225, %v3199
        %v3227 = vmul.f32 %v3226, %v3225
        %v3228 = vmul.f32 0.5, %v3227
        %v3229 = vsub.f32 1.5, %v3228
        %v3230 = vmul.f32 %v3225, %v3229
        %vm3231 = vweird.f32 %v3199
        %vm3232 = vweird.f32 %v3225
        %vm3233 = vmor %vm3231, %vm3232
        %v3234 = vsel %vm3233, %v3225, %v3230
        %v3235 = vrsqrt.pop %v3200
        %v3236 = vmul.f32 %v3235, %v3200
        %v3237 = vmul.f32 %v3236, %v3235
        %v3238 = vmul.f32 0.5, %v3237
        %v3239 = vsub.f32 1.5, %v3238
        %v3240 = vmul.f32 %v3235, %v3239
        %vm3241 = vweird.f32 %v3200
        %vm3242 = vweird.f32 %v3235
        %vm3243 = vmor %vm3241, %vm3242
        %v3244 = vsel %vm3243, %v3235, %v3240
        %v3245 = vrsqrt.pop %v3201
        %v3246 = vmul.f32 %v3245, %v3201
        %v3247 = vmul.f32 %v3246, %v3245
        %v3248 = vmul.f32 0.5, %v3247
        %v3249 = vsub.f32 1.5, %v3248
        %v3250 = vmul.f32 %v3245, %v3249
        %vm3251 = vweird.f32 %v3201
        %vm3252 = vweird.f32 %v3245
        %vm3253 = vmor %vm3251, %vm3252
        %v3254 = vsel %vm3253, %v3245, %v3250
        %v3255 = vrsqrt.pop %v3202
        %v3256 = vmul.f32 %v3255, %v3202
        %v3257 = vmul.f32 %v3256, %v3255
        %v3258 = vmul.f32 0.5, %v3257
        %v3259 = vsub.f32 1.5, %v3258
        %v3260 = vmul.f32 %v3255, %v3259
        %vm3261 = vweird.f32 %v3202
        %vm3262 = vweird.f32 %v3255
        %vm3263 = vmor %vm3261, %vm3262
        %v3264 = vsel %vm3263, %v3255, %v3260
        %v3265 = vrsqrt.pop %v3203
        %v3266 = vmul.f32 %v3265, %v3203
        %v3267 = vmul.f32 %v3266, %v3265
        %v3268 = vmul.f32 0.5, %v3267
        %v3269 = vsub.f32 1.5, %v3268
        %v3270 = vmul.f32 %v3265, %v3269
        %vm3271 = vweird.f32 %v3203
        %vm3272 = vweird.f32 %v3265
        %vm3273 = vmor %vm3271, %vm3272
        %v3274 = vsel %vm3273, %v3265, %v3270
        %v3275 = vrsqrt.pop %v3204
        %v3276 = vmul.f32 %v3275, %v3204
        %v3277 = vmul.f32 %v3276, %v3275
        %v3278 = vmul.f32 0.5, %v3277
        %v3279 = vsub.f32 1.5, %v3278
        %v3280 = vmul.f32 %v3275, %v3279
        %vm3281 = vweird.f32 %v3204
        %vm3282 = vweird.f32 %v3275
        %vm3283 = vmor %vm3281, %vm3282
        %v3284 = vsel %vm3283, %v3275, %v3280
        %v3285 = vmul.f32 %v3117, %v3214
        %v3286 = vmul.f32 %v3118, %v3224
        %v3287 = vmul.f32 %v3119, %v3234
        %v3288 = vmul.f32 %v3120, %v3244
        %v3289 = vmul.f32 %v3121, %v3254
        %v3290 = vmul.f32 %v3122, %v3264
        %v3291 = vmul.f32 %v3123, %v3274
        %v3292 = vmul.f32 %v3124, %v3284
        %3294 = vrot.lane.b32.xlu0 %v3027, 16
        %v3295 = vpop.permute.xlu0 %3294
        %v3297 = vmul.f32 %v3285, %v3295
        %v3298 = vmul.f32 %v3286, %v3295
        %v3299 = vmul.f32 %v3287, %v3295
        %v3300 = vmul.f32 %v3288, %v3295
        %v3301 = vmul.f32 %v3289, %v3295
        %v3302 = vmul.f32 %v3290, %v3295
        %v3303 = vmul.f32 %v3291, %v3295
        %v3304 = vmul.f32 %v3292, %v3295
        %3306 = vrot.lane.b32.xlu0 %v3036, 16
        %v3307 = vpop.permute.xlu0 %3306
        %v3309 = vadd.f32 %v3297, %v3307
        %v3310 = vadd.f32 %v3298, %v3307
        %v3311 = vadd.f32 %v3299, %v3307
        %v3312 = vadd.f32 %v3300, %v3307
        %v3313 = vadd.f32 %v3301, %v3307
        %v3314 = vadd.f32 %v3302, %v3307
        %v3315 = vadd.f32 %v3303, %v3307
        %v3316 = vadd.f32 %v3304, %v3307
        %vm3317 = vcmask 261248
        %3318 = vst.msk [vmem:[%s477] sm:$0xff] %vm3317, %v3309
        %3319 = vst.msk [vmem:[%s477 + $0x8] sm:$0xff] %vm3317, %v3310
        %3320 = vst.msk [vmem:[%s477 + $0x10] sm:$0xff] %vm3317, %v3311
        %3321 = vst.msk [vmem:[%s477 + $0x18] sm:$0xff] %vm3317, %v3312
        %3322 = vst.msk [vmem:[%s477 + $0x20] sm:$0xff] %vm3317, %v3313
        %3323 = vst.msk [vmem:[%s477 + $0x28] sm:$0xff] %vm3317, %v3314
        %3324 = vst.msk [vmem:[%s477 + $0x30] sm:$0xff] %vm3317, %v3315
        %3325 = vst.msk [vmem:[%s477 + $0x38] sm:$0xff] %vm3317, %v3316
        %3326 = vrot.lane.b32.xlu0 %v2825, 96
        %v3327 = vpop.permute.xlu0 %3326
        %3328 = vrot.lane.b32.xlu0 %v2827, 96
        %v3329 = vpop.permute.xlu0 %3328
        %3330 = vrot.lane.b32.xlu0 %v2830, 96
        %v3331 = vpop.permute.xlu0 %3330
        %3332 = vrot.lane.b32.xlu0 %v2832, 96
        %v3333 = vpop.permute.xlu0 %3332
        %3334 = vrot.lane.b32.xlu0 %v2835, 96
        %v3335 = vpop.permute.xlu0 %3334
        %3336 = vrot.lane.b32.xlu0 %v2837, 96
        %v3337 = vpop.permute.xlu0 %3336
        %3338 = vrot.lane.b32.xlu0 %v2840, 96
        %v3339 = vpop.permute.xlu0 %3338
        %3340 = vrot.lane.b32.xlu0 %v2842, 96
        %v3341 = vpop.permute.xlu0 %3340
        %v3350 = vsel %vm517, %v3327, 0.0
        %3351 = vadd.xlane.f32.xlu0 %v3350
        %v3352 = vpop.xlane.xlu0 %3351
        %v3353 = vsel %vm517, %v3329, 0.0
        %3354 = vadd.xlane.f32.xlu0 %v3353
        %v3355 = vpop.xlane.xlu0 %3354
        %v3356 = vsel %vm517, %v3331, 0.0
        %3357 = vadd.xlane.f32.xlu0 %v3356
        %v3358 = vpop.xlane.xlu0 %3357
        %v3359 = vsel %vm517, %v3333, 0.0
        %3360 = vadd.xlane.f32.xlu0 %v3359
        %v3361 = vpop.xlane.xlu0 %3360
        %v3362 = vsel %vm517, %v3335, 0.0
        %3363 = vadd.xlane.f32.xlu0 %v3362
        %v3364 = vpop.xlane.xlu0 %3363
        %v3365 = vsel %vm517, %v3337, 0.0
        %3366 = vadd.xlane.f32.xlu0 %v3365
        %v3367 = vpop.xlane.xlu0 %3366
        %v3368 = vsel %vm517, %v3339, 0.0
        %3369 = vadd.xlane.f32.xlu0 %v3368
        %v3370 = vpop.xlane.xlu0 %3369
        %v3371 = vsel %vm517, %v3341, 0.0
        %3372 = vadd.xlane.f32.xlu0 %v3371
        %v3373 = vpop.xlane.xlu0 %3372
        %v3374 = vmul.f32 %v3352, %v2874
        %v3375 = vmul.f32 %v3355, %v2874
        %v3376 = vmul.f32 %v3358, %v2874
        %v3377 = vmul.f32 %v3361, %v2874
        %v3378 = vmul.f32 %v3364, %v2874
        %v3379 = vmul.f32 %v3367, %v2874
        %v3380 = vmul.f32 %v3370, %v2874
        %v3381 = vmul.f32 %v3373, %v2874
        %v3382 = vsub.f32 %v2825, %v3374
        %v3383 = vsub.f32 %v2827, %v3375
        %v3384 = vsub.f32 %v2830, %v3376
        %v3385 = vsub.f32 %v2832, %v3377
        %v3386 = vsub.f32 %v2835, %v3378
        %v3387 = vsub.f32 %v2837, %v3379
        %v3388 = vsub.f32 %v2840, %v3380
        %v3389 = vsub.f32 %v2842, %v3381
        %v3390 = vmul.f32 %v3382, %v3382
        %v3391 = vmul.f32 %v3383, %v3383
        %v3392 = vmul.f32 %v3384, %v3384
        %v3393 = vmul.f32 %v3385, %v3385
        %v3394 = vmul.f32 %v3386, %v3386
        %v3395 = vmul.f32 %v3387, %v3387
        %v3396 = vmul.f32 %v3388, %v3388
        %v3397 = vmul.f32 %v3389, %v3389
        %3406 = vrot.lane.b32.xlu0 %v3390, 96
        %v3407 = vpop.permute.xlu0 %3406
        %3408 = vrot.lane.b32.xlu0 %v3391, 96
        %v3409 = vpop.permute.xlu0 %3408
        %3410 = vrot.lane.b32.xlu0 %v3392, 96
        %v3411 = vpop.permute.xlu0 %3410
        %3412 = vrot.lane.b32.xlu0 %v3393, 96
        %v3413 = vpop.permute.xlu0 %3412
        %3414 = vrot.lane.b32.xlu0 %v3394, 96
        %v3415 = vpop.permute.xlu0 %3414
        %3416 = vrot.lane.b32.xlu0 %v3395, 96
        %v3417 = vpop.permute.xlu0 %3416
        %3418 = vrot.lane.b32.xlu0 %v3396, 96
        %v3419 = vpop.permute.xlu0 %3418
        %3420 = vrot.lane.b32.xlu0 %v3397, 96
        %v3421 = vpop.permute.xlu0 %3420
        %v3430 = vsel %vm517, %v3407, 0.0
        %3431 = vadd.xlane.f32.xlu0 %v3430
        %v3432 = vpop.xlane.xlu0 %3431
        %v3433 = vsel %vm517, %v3409, 0.0
        %3434 = vadd.xlane.f32.xlu0 %v3433
        %v3435 = vpop.xlane.xlu0 %3434
        %v3436 = vsel %vm517, %v3411, 0.0
        %3437 = vadd.xlane.f32.xlu0 %v3436
        %v3438 = vpop.xlane.xlu0 %3437
        %v3439 = vsel %vm517, %v3413, 0.0
        %3440 = vadd.xlane.f32.xlu0 %v3439
        %v3441 = vpop.xlane.xlu0 %3440
        %v3442 = vsel %vm517, %v3415, 0.0
        %3443 = vadd.xlane.f32.xlu0 %v3442
        %v3444 = vpop.xlane.xlu0 %3443
        %v3445 = vsel %vm517, %v3417, 0.0
        %3446 = vadd.xlane.f32.xlu0 %v3445
        %v3447 = vpop.xlane.xlu0 %3446
        %v3448 = vsel %vm517, %v3419, 0.0
        %3449 = vadd.xlane.f32.xlu0 %v3448
        %v3450 = vpop.xlane.xlu0 %3449
        %v3451 = vsel %vm517, %v3421, 0.0
        %3452 = vadd.xlane.f32.xlu0 %v3451
        %v3453 = vpop.xlane.xlu0 %3452
        %v3454 = vmul.f32 %v3432, %v2874
        %v3455 = vmul.f32 %v3435, %v2874
        %v3456 = vmul.f32 %v3438, %v2874
        %v3457 = vmul.f32 %v3441, %v2874
        %v3458 = vmul.f32 %v3444, %v2874
        %v3459 = vmul.f32 %v3447, %v2874
        %v3460 = vmul.f32 %v3450, %v2874
        %v3461 = vmul.f32 %v3453, %v2874
        %v3462 = vadd.f32 %v3454, 1e-05
        %v3463 = vadd.f32 %v3455, 1e-05
        %v3464 = vadd.f32 %v3456, 1e-05
        %v3465 = vadd.f32 %v3457, 1e-05
        %v3466 = vadd.f32 %v3458, 1e-05
        %v3467 = vadd.f32 %v3459, 1e-05
        %v3468 = vadd.f32 %v3460, 1e-05
        %v3469 = vadd.f32 %v3461, 1e-05
        %v3470 = vrsqrt.pop %v3462
        %v3471 = vmul.f32 %v3470, %v3462
        %v3472 = vmul.f32 %v3471, %v3470
        %v3473 = vmul.f32 0.5, %v3472
        %v3474 = vsub.f32 1.5, %v3473
        %v3475 = vmul.f32 %v3470, %v3474
        %vm3476 = vweird.f32 %v3462
        %vm3477 = vweird.f32 %v3470
        %vm3478 = vmor %vm3476, %vm3477
        %v3479 = vsel %vm3478, %v3470, %v3475
        %v3480 = vrsqrt.pop %v3463
        %v3481 = vmul.f32 %v3480, %v3463
        %v3482 = vmul.f32 %v3481, %v3480
        %v3483 = vmul.f32 0.5, %v3482
        %v3484 = vsub.f32 1.5, %v3483
        %v3485 = vmul.f32 %v3480, %v3484
        %vm3486 = vweird.f32 %v3463
        %vm3487 = vweird.f32 %v3480
        %vm3488 = vmor %vm3486, %vm3487
        %v3489 = vsel %vm3488, %v3480, %v3485
        %v3490 = vrsqrt.pop %v3464
        %v3491 = vmul.f32 %v3490, %v3464
        %v3492 = vmul.f32 %v3491, %v3490
        %v3493 = vmul.f32 0.5, %v3492
        %v3494 = vsub.f32 1.5, %v3493
        %v3495 = vmul.f32 %v3490, %v3494
        %vm3496 = vweird.f32 %v3464
        %vm3497 = vweird.f32 %v3490
        %vm3498 = vmor %vm3496, %vm3497
        %v3499 = vsel %vm3498, %v3490, %v3495
        %v3500 = vrsqrt.pop %v3465
        %v3501 = vmul.f32 %v3500, %v3465
        %v3502 = vmul.f32 %v3501, %v3500
        %v3503 = vmul.f32 0.5, %v3502
        %v3504 = vsub.f32 1.5, %v3503
        %v3505 = vmul.f32 %v3500, %v3504
        %vm3506 = vweird.f32 %v3465
        %vm3507 = vweird.f32 %v3500
        %vm3508 = vmor %vm3506, %vm3507
        %v3509 = vsel %vm3508, %v3500, %v3505
        %v3510 = vrsqrt.pop %v3466
        %v3511 = vmul.f32 %v3510, %v3466
        %v3512 = vmul.f32 %v3511, %v3510
        %v3513 = vmul.f32 0.5, %v3512
        %v3514 = vsub.f32 1.5, %v3513
        %v3515 = vmul.f32 %v3510, %v3514
        %vm3516 = vweird.f32 %v3466
        %vm3517 = vweird.f32 %v3510
        %vm3518 = vmor %vm3516, %vm3517
        %v3519 = vsel %vm3518, %v3510, %v3515
        %v3520 = vrsqrt.pop %v3467
        %v3521 = vmul.f32 %v3520, %v3467
        %v3522 = vmul.f32 %v3521, %v3520
        %v3523 = vmul.f32 0.5, %v3522
        %v3524 = vsub.f32 1.5, %v3523
        %v3525 = vmul.f32 %v3520, %v3524
        %vm3526 = vweird.f32 %v3467
        %vm3527 = vweird.f32 %v3520
        %vm3528 = vmor %vm3526, %vm3527
        %v3529 = vsel %vm3528, %v3520, %v3525
        %v3530 = vrsqrt.pop %v3468
        %v3531 = vmul.f32 %v3530, %v3468
        %v3532 = vmul.f32 %v3531, %v3530
        %v3533 = vmul.f32 0.5, %v3532
        %v3534 = vsub.f32 1.5, %v3533
        %v3535 = vmul.f32 %v3530, %v3534
        %vm3536 = vweird.f32 %v3468
        %vm3537 = vweird.f32 %v3530
        %vm3538 = vmor %vm3536, %vm3537
        %v3539 = vsel %vm3538, %v3530, %v3535
        %v3540 = vrsqrt.pop %v3469
        %v3541 = vmul.f32 %v3540, %v3469
        %v3542 = vmul.f32 %v3541, %v3540
        %v3543 = vmul.f32 0.5, %v3542
        %v3544 = vsub.f32 1.5, %v3543
        %v3545 = vmul.f32 %v3540, %v3544
        %vm3546 = vweird.f32 %v3469
        %vm3547 = vweird.f32 %v3540
        %vm3548 = vmor %vm3546, %vm3547
        %v3549 = vsel %vm3548, %v3540, %v3545
        %v3550 = vmul.f32 %v3382, %v3479
        %v3551 = vmul.f32 %v3383, %v3489
        %v3552 = vmul.f32 %v3384, %v3499
        %v3553 = vmul.f32 %v3385, %v3509
        %v3554 = vmul.f32 %v3386, %v3519
        %v3555 = vmul.f32 %v3387, %v3529
        %v3556 = vmul.f32 %v3388, %v3539
        %v3557 = vmul.f32 %v3389, %v3549
        %3558 = vrot.lane.b32.xlu0 %v3027, 32
        %v3559 = vpop.permute.xlu0 %3558
        %v3561 = vmul.f32 %v3550, %v3559
        %v3562 = vmul.f32 %v3551, %v3559
        %v3563 = vmul.f32 %v3552, %v3559
        %v3564 = vmul.f32 %v3553, %v3559
        %v3565 = vmul.f32 %v3554, %v3559
        %v3566 = vmul.f32 %v3555, %v3559
        %v3567 = vmul.f32 %v3556, %v3559
        %v3568 = vmul.f32 %v3557, %v3559
        %3569 = vrot.lane.b32.xlu0 %v3036, 32
        %v3570 = vpop.permute.xlu0 %3569
        %v3572 = vadd.f32 %v3561, %v3570
        %v3573 = vadd.f32 %v3562, %v3570
        %v3574 = vadd.f32 %v3563, %v3570
        %v3575 = vadd.f32 %v3564, %v3570
        %v3576 = vadd.f32 %v3565, %v3570
        %v3577 = vadd.f32 %v3566, %v3570
        %v3578 = vadd.f32 %v3567, %v3570
        %v3579 = vadd.f32 %v3568, %v3570
        %vm3580 = vcmask 392448
        %3581 = vst.msk [vmem:[%s477] sm:$0xff] %vm3580, %v3572
        %3582 = vst.msk [vmem:[%s477 + $0x8] sm:$0xff] %vm3580, %v3573
        %3583 = vst.msk [vmem:[%s477 + $0x10] sm:$0xff] %vm3580, %v3574
        %3584 = vst.msk [vmem:[%s477 + $0x18] sm:$0xff] %vm3580, %v3575
        %3585 = vst.msk [vmem:[%s477 + $0x20] sm:$0xff] %vm3580, %v3576
        %3586 = vst.msk [vmem:[%s477 + $0x28] sm:$0xff] %vm3580, %v3577
        %3587 = vst.msk [vmem:[%s477 + $0x30] sm:$0xff] %vm3580, %v3578
        %3588 = vst.msk [vmem:[%s477 + $0x38] sm:$0xff] %vm3580, %v3579
        %3589 = vrot.lane.b32.xlu0 %v2825, 80
        %v3590 = vpop.permute.xlu0 %3589
        %3591 = vrot.lane.b32.xlu0 %v2827, 80
        %v3592 = vpop.permute.xlu0 %3591
        %3593 = vrot.lane.b32.xlu0 %v2830, 80
        %v3594 = vpop.permute.xlu0 %3593
        %3595 = vrot.lane.b32.xlu0 %v2832, 80
        %v3596 = vpop.permute.xlu0 %3595
        %3597 = vrot.lane.b32.xlu0 %v2835, 80
        %v3598 = vpop.permute.xlu0 %3597
        %3599 = vrot.lane.b32.xlu0 %v2837, 80
        %v3600 = vpop.permute.xlu0 %3599
        %3601 = vrot.lane.b32.xlu0 %v2840, 80
        %v3602 = vpop.permute.xlu0 %3601
        %3603 = vrot.lane.b32.xlu0 %v2842, 80
        %v3604 = vpop.permute.xlu0 %3603
        %v3613 = vsel %vm517, %v3590, 0.0
        %3614 = vadd.xlane.f32.xlu0 %v3613
        %v3615 = vpop.xlane.xlu0 %3614
        %v3616 = vsel %vm517, %v3592, 0.0
        %3617 = vadd.xlane.f32.xlu0 %v3616
        %v3618 = vpop.xlane.xlu0 %3617
        %v3619 = vsel %vm517, %v3594, 0.0
        %3620 = vadd.xlane.f32.xlu0 %v3619
        %v3621 = vpop.xlane.xlu0 %3620
        %v3622 = vsel %vm517, %v3596, 0.0
        %3623 = vadd.xlane.f32.xlu0 %v3622
        %v3624 = vpop.xlane.xlu0 %3623
        %v3625 = vsel %vm517, %v3598, 0.0
        %3626 = vadd.xlane.f32.xlu0 %v3625
        %v3627 = vpop.xlane.xlu0 %3626
        %v3628 = vsel %vm517, %v3600, 0.0
        %3629 = vadd.xlane.f32.xlu0 %v3628
        %v3630 = vpop.xlane.xlu0 %3629
        %v3631 = vsel %vm517, %v3602, 0.0
        %3632 = vadd.xlane.f32.xlu0 %v3631
        %v3633 = vpop.xlane.xlu0 %3632
        %v3634 = vsel %vm517, %v3604, 0.0
        %3635 = vadd.xlane.f32.xlu0 %v3634
        %v3636 = vpop.xlane.xlu0 %3635
        %v3637 = vmul.f32 %v3615, %v2874
        %v3638 = vmul.f32 %v3618, %v2874
        %v3639 = vmul.f32 %v3621, %v2874
        %v3640 = vmul.f32 %v3624, %v2874
        %v3641 = vmul.f32 %v3627, %v2874
        %v3642 = vmul.f32 %v3630, %v2874
        %v3643 = vmul.f32 %v3633, %v2874
        %v3644 = vmul.f32 %v3636, %v2874
        %v3645 = vsub.f32 %v2825, %v3637
        %v3646 = vsub.f32 %v2827, %v3638
        %v3647 = vsub.f32 %v2830, %v3639
        %v3648 = vsub.f32 %v2832, %v3640
        %v3649 = vsub.f32 %v2835, %v3641
        %v3650 = vsub.f32 %v2837, %v3642
        %v3651 = vsub.f32 %v2840, %v3643
        %v3652 = vsub.f32 %v2842, %v3644
        %v3653 = vmul.f32 %v3645, %v3645
        %v3654 = vmul.f32 %v3646, %v3646
        %v3655 = vmul.f32 %v3647, %v3647
        %v3656 = vmul.f32 %v3648, %v3648
        %v3657 = vmul.f32 %v3649, %v3649
        %v3658 = vmul.f32 %v3650, %v3650
        %v3659 = vmul.f32 %v3651, %v3651
        %v3660 = vmul.f32 %v3652, %v3652
        %3669 = vrot.lane.b32.xlu0 %v3653, 80
        %v3670 = vpop.permute.xlu0 %3669
        %3671 = vrot.lane.b32.xlu0 %v3654, 80
        %v3672 = vpop.permute.xlu0 %3671
        %3673 = vrot.lane.b32.xlu0 %v3655, 80
        %v3674 = vpop.permute.xlu0 %3673
        %3675 = vrot.lane.b32.xlu0 %v3656, 80
        %v3676 = vpop.permute.xlu0 %3675
        %3677 = vrot.lane.b32.xlu0 %v3657, 80
        %v3678 = vpop.permute.xlu0 %3677
        %3679 = vrot.lane.b32.xlu0 %v3658, 80
        %v3680 = vpop.permute.xlu0 %3679
        %3681 = vrot.lane.b32.xlu0 %v3659, 80
        %v3682 = vpop.permute.xlu0 %3681
        %3683 = vrot.lane.b32.xlu0 %v3660, 80
        %v3684 = vpop.permute.xlu0 %3683
        %v3693 = vsel %vm517, %v3670, 0.0
        %3694 = vadd.xlane.f32.xlu0 %v3693
        %v3695 = vpop.xlane.xlu0 %3694
        %v3696 = vsel %vm517, %v3672, 0.0
        %3697 = vadd.xlane.f32.xlu0 %v3696
        %v3698 = vpop.xlane.xlu0 %3697
        %v3699 = vsel %vm517, %v3674, 0.0
        %3700 = vadd.xlane.f32.xlu0 %v3699
        %v3701 = vpop.xlane.xlu0 %3700
        %v3702 = vsel %vm517, %v3676, 0.0
        %3703 = vadd.xlane.f32.xlu0 %v3702
        %v3704 = vpop.xlane.xlu0 %3703
        %v3705 = vsel %vm517, %v3678, 0.0
        %3706 = vadd.xlane.f32.xlu0 %v3705
        %v3707 = vpop.xlane.xlu0 %3706
        %v3708 = vsel %vm517, %v3680, 0.0
        %3709 = vadd.xlane.f32.xlu0 %v3708
        %v3710 = vpop.xlane.xlu0 %3709
        %v3711 = vsel %vm517, %v3682, 0.0
        %3712 = vadd.xlane.f32.xlu0 %v3711
        %v3713 = vpop.xlane.xlu0 %3712
        %v3714 = vsel %vm517, %v3684, 0.0
        %3715 = vadd.xlane.f32.xlu0 %v3714
        %v3716 = vpop.xlane.xlu0 %3715
        %v3717 = vmul.f32 %v3695, %v2874
        %v3718 = vmul.f32 %v3698, %v2874
        %v3719 = vmul.f32 %v3701, %v2874
        %v3720 = vmul.f32 %v3704, %v2874
        %v3721 = vmul.f32 %v3707, %v2874
        %v3722 = vmul.f32 %v3710, %v2874
        %v3723 = vmul.f32 %v3713, %v2874
        %v3724 = vmul.f32 %v3716, %v2874
        %v3725 = vadd.f32 %v3717, 1e-05
        %v3726 = vadd.f32 %v3718, 1e-05
        %v3727 = vadd.f32 %v3719, 1e-05
        %v3728 = vadd.f32 %v3720, 1e-05
        %v3729 = vadd.f32 %v3721, 1e-05
        %v3730 = vadd.f32 %v3722, 1e-05
        %v3731 = vadd.f32 %v3723, 1e-05
        %v3732 = vadd.f32 %v3724, 1e-05
        %v3733 = vrsqrt.pop %v3725
        %v3734 = vmul.f32 %v3733, %v3725
        %v3735 = vmul.f32 %v3734, %v3733
        %v3736 = vmul.f32 0.5, %v3735
        %v3737 = vsub.f32 1.5, %v3736
        %v3738 = vmul.f32 %v3733, %v3737
        %vm3739 = vweird.f32 %v3725
        %vm3740 = vweird.f32 %v3733
        %vm3741 = vmor %vm3739, %vm3740
        %v3742 = vsel %vm3741, %v3733, %v3738
        %v3743 = vrsqrt.pop %v3726
        %v3744 = vmul.f32 %v3743, %v3726
        %v3745 = vmul.f32 %v3744, %v3743
        %v3746 = vmul.f32 0.5, %v3745
        %v3747 = vsub.f32 1.5, %v3746
        %v3748 = vmul.f32 %v3743, %v3747
        %vm3749 = vweird.f32 %v3726
        %vm3750 = vweird.f32 %v3743
        %vm3751 = vmor %vm3749, %vm3750
        %v3752 = vsel %vm3751, %v3743, %v3748
        %v3753 = vrsqrt.pop %v3727
        %v3754 = vmul.f32 %v3753, %v3727
        %v3755 = vmul.f32 %v3754, %v3753
        %v3756 = vmul.f32 0.5, %v3755
        %v3757 = vsub.f32 1.5, %v3756
        %v3758 = vmul.f32 %v3753, %v3757
        %vm3759 = vweird.f32 %v3727
        %vm3760 = vweird.f32 %v3753
        %vm3761 = vmor %vm3759, %vm3760
        %v3762 = vsel %vm3761, %v3753, %v3758
        %v3763 = vrsqrt.pop %v3728
        %v3764 = vmul.f32 %v3763, %v3728
        %v3765 = vmul.f32 %v3764, %v3763
        %v3766 = vmul.f32 0.5, %v3765
        %v3767 = vsub.f32 1.5, %v3766
        %v3768 = vmul.f32 %v3763, %v3767
        %vm3769 = vweird.f32 %v3728
        %vm3770 = vweird.f32 %v3763
        %vm3771 = vmor %vm3769, %vm3770
        %v3772 = vsel %vm3771, %v3763, %v3768
        %v3773 = vrsqrt.pop %v3729
        %v3774 = vmul.f32 %v3773, %v3729
        %v3775 = vmul.f32 %v3774, %v3773
        %v3776 = vmul.f32 0.5, %v3775
        %v3777 = vsub.f32 1.5, %v3776
        %v3778 = vmul.f32 %v3773, %v3777
        %vm3779 = vweird.f32 %v3729
        %vm3780 = vweird.f32 %v3773
        %vm3781 = vmor %vm3779, %vm3780
        %v3782 = vsel %vm3781, %v3773, %v3778
        %v3783 = vrsqrt.pop %v3730
        %v3784 = vmul.f32 %v3783, %v3730
        %v3785 = vmul.f32 %v3784, %v3783
        %v3786 = vmul.f32 0.5, %v3785
        %v3787 = vsub.f32 1.5, %v3786
        %v3788 = vmul.f32 %v3783, %v3787
        %vm3789 = vweird.f32 %v3730
        %vm3790 = vweird.f32 %v3783
        %vm3791 = vmor %vm3789, %vm3790
        %v3792 = vsel %vm3791, %v3783, %v3788
        %v3793 = vrsqrt.pop %v3731
        %v3794 = vmul.f32 %v3793, %v3731
        %v3795 = vmul.f32 %v3794, %v3793
        %v3796 = vmul.f32 0.5, %v3795
        %v3797 = vsub.f32 1.5, %v3796
        %v3798 = vmul.f32 %v3793, %v3797
        %vm3799 = vweird.f32 %v3731
        %vm3800 = vweird.f32 %v3793
        %vm3801 = vmor %vm3799, %vm3800
        %v3802 = vsel %vm3801, %v3793, %v3798
        %v3803 = vrsqrt.pop %v3732
        %v3804 = vmul.f32 %v3803, %v3732
        %v3805 = vmul.f32 %v3804, %v3803
        %v3806 = vmul.f32 0.5, %v3805
        %v3807 = vsub.f32 1.5, %v3806
        %v3808 = vmul.f32 %v3803, %v3807
        %vm3809 = vweird.f32 %v3732
        %vm3810 = vweird.f32 %v3803
        %vm3811 = vmor %vm3809, %vm3810
        %v3812 = vsel %vm3811, %v3803, %v3808
        %v3813 = vmul.f32 %v3645, %v3742
        %v3814 = vmul.f32 %v3646, %v3752
        %v3815 = vmul.f32 %v3647, %v3762
        %v3816 = vmul.f32 %v3648, %v3772
        %v3817 = vmul.f32 %v3649, %v3782
        %v3818 = vmul.f32 %v3650, %v3792
        %v3819 = vmul.f32 %v3651, %v3802
        %v3820 = vmul.f32 %v3652, %v3812
        %3821 = vrot.lane.b32.xlu0 %v3027, 48
        %v3822 = vpop.permute.xlu0 %3821
        %v3824 = vmul.f32 %v3813, %v3822
        %v3825 = vmul.f32 %v3814, %v3822
        %v3826 = vmul.f32 %v3815, %v3822
        %v3827 = vmul.f32 %v3816, %v3822
        %v3828 = vmul.f32 %v3817, %v3822
        %v3829 = vmul.f32 %v3818, %v3822
        %v3830 = vmul.f32 %v3819, %v3822
        %v3831 = vmul.f32 %v3820, %v3822
        %3832 = vrot.lane.b32.xlu0 %v3036, 48
        %v3833 = vpop.permute.xlu0 %3832
        %v3835 = vadd.f32 %v3824, %v3833
        %v3836 = vadd.f32 %v3825, %v3833
        %v3837 = vadd.f32 %v3826, %v3833
        %v3838 = vadd.f32 %v3827, %v3833
        %v3839 = vadd.f32 %v3828, %v3833
        %v3840 = vadd.f32 %v3829, %v3833
        %v3841 = vadd.f32 %v3830, %v3833
        %v3842 = vadd.f32 %v3831, %v3833
        %vm3843 = vcmask 523648
        %3844 = vst.msk [vmem:[%s477] sm:$0xff] %vm3843, %v3835
        %3845 = vst.msk [vmem:[%s477 + $0x8] sm:$0xff] %vm3843, %v3836
        %3846 = vst.msk [vmem:[%s477 + $0x10] sm:$0xff] %vm3843, %v3837
        %3847 = vst.msk [vmem:[%s477 + $0x18] sm:$0xff] %vm3843, %v3838
        %3848 = vst.msk [vmem:[%s477 + $0x20] sm:$0xff] %vm3843, %v3839
        %3849 = vst.msk [vmem:[%s477 + $0x28] sm:$0xff] %vm3843, %v3840
        %3850 = vst.msk [vmem:[%s477 + $0x30] sm:$0xff] %vm3843, %v3841
        %3851 = vst.msk [vmem:[%s477 + $0x38] sm:$0xff] %vm3843, %v3842
        %p3852 = scmp.lt.s32.totalorder %s25, 1
        %s3853 = scalar_select %p3852, %s25, 1
        %s3854 = smul.addr %s3853, 8
        %s3855 = smul.addr %s3854, 8
        %s3856 = scalar_lea.vmem %s13, %s3855
        // Predicated region
        $region77: #{my_decoder_layer_forward.1} parent=71 // pred_check
          %p3857 = pneg %p326
        $region78: #{my_decoder_layer_forward.1} parent=71 // pred_check_branch
          %3859 = sbr.rel (%p3857) target = $region80
        $region79: #{my_decoder_layer_forward.1} parent=71 // pred_region
          _
        $region80: #{my_decoder_layer_forward.1} parent=71 // pred_fallthru
          _
      $region72: #{my_decoder_layer_forward.1} parent=5 // pred_fallthru
        _
      %p3860 = scmp.le.s32.totalorder 2, %s20
      // Predicated region
      $region81: #{my_decoder_layer_forward.1} parent=5 // pred_check
        %p3861 = pneg %p3860
      $region82: #{my_decoder_layer_forward.1} parent=5 // pred_check_branch
        %3863 = sbr.rel (%p3861) target = $region84
      $region83: #{my_decoder_layer_forward.1} parent=5 // pred_region
        %s3864 = ssub.s32 %s20, 2
        // Predicated region
        $region85: #{my_decoder_layer_forward.1} parent=83 // pred_check
          %p3865 = pneg %p332
        $region86: #{my_decoder_layer_forward.1} parent=83 // pred_check_branch
          %3867 = sbr.rel (%p3865) target = $region88
        $region87: #{my_decoder_layer_forward.1} parent=83 // pred_region
          %p3868 = scmp.lt.s32.totalorder %s26, 1
          %s3869 = scalar_select %p3868, %s26, 1
          %s3870 = smul.addr %s3869, 8
          %s3871 = smul.addr %s3870, 8
          %s3872 = scalar_lea.vmem %s13, %s3871
        $region88: #{my_decoder_layer_forward.1} parent=83 // pred_fallthru
          _
      $region84: #{my_decoder_layer_forward.1} parent=5 // pred_fallthru
        _
    $region6: #{my_decoder_layer_forward.1} parent=1 // loop_footer
      %s24 = sadd.s32 1, %s20
    $region7: #{my_decoder_layer_forward.1} parent=1 // loop_footer_branch
      %19 = sbr.rel target = $region3
    $region8: #{my_decoder_layer_forward.1} parent=1 // loop_exit
      _
    %3873 = vsyncpa [#allocation3], 1
    %s3874 = scalar_lea.sflag [#allocation3], 1
    %3875 = vsyncpa %s3874, 1

</llo_original>
